<compile_context>
chip_gen: v7x
topology: tpu7x:2x2x1
jax: 0.10.0
libtpu: 0.0.40
codegen_flags: <defaults>
</compile_context>

<pallas_src>
import functools
import math

import jax
import jax.numpy as jnp
import numpy as np
from jax.experimental import pallas as pl
from jax.experimental.pallas import tpu as pltpu


# ----------------------------- in-kernel helpers -----------------------------

def _layernorm(x, w, b, eps=1e-5):
    mu = jnp.mean(x, axis=-1, keepdims=True)
    var = jnp.mean((x - mu) ** 2, axis=-1, keepdims=True)
    return (x - mu) * jax.lax.rsqrt(var + eps) * w + b


_SQRT_HALF = 0.7071067811865476


def _erf(x):
    # Abramowitz & Stegun 7.1.26 (|err| < 1.5e-7); built only from ops with
    # guaranteed Mosaic lowerings (exp runs on the EUP slot).
    a1, a2, a3, a4, a5 = (0.254829592, -0.284496736, 1.421413741,
                          -1.453152027, 1.061405429)
    p = 0.3275911
    ax = jnp.abs(x)
    t = 1.0 / (1.0 + p * ax)
    poly = ((((a5 * t + a4) * t + a3) * t + a2) * t + a1) * t
    y = 1.0 - poly * jnp.exp(-ax * ax)
    return jnp.where(x < 0.0, -y, y)


def _gelu(x):
    # Exact-erf GELU (PyTorch activation='gelu') to ~1.5e-7.
    return 0.5 * x * (1.0 + _erf(x * _SQRT_HALF))


# --------------------------------- kernel ------------------------------------

def fused_transformer_kernel(xt_ref, ctx_ref, mat_ref, vec_ref, o_ref, *,
                             n_layers, mat_idx, vec_idx):
    """Whole forward pass (encoder layers + output MLP) for one token chunk.

    xt_ref : (L, Tc, 1)  f32   x_t slice (L = original batch B = attention seq len)
    ctx_ref: (L, Tc, D)  f32   ctx slice
    mat_ref: (Rm, Wm)    bf16  packed matmul weights, (in, out) layout
    vec_ref: (Rv, Wv)    f32   packed biases / LayerNorm params (1 row each)
    o_ref  : (1, L, Tc)  f32   per-position scalar output
    """
    L, Tc, D = ctx_ref.shape
    f32 = jnp.float32
    bf16 = jnp.bfloat16

    def get_mat(p):
        r, n, c = mat_idx[p]
        return mat_ref[r:r + n, :c]          # static, tile-aligned row slices

    def get_vec(p):
        r, c = vec_idx[p]
        return vec_ref[r:r + 1, :c]          # (1, c) broadcast row

    eh = get_mat(0)                          # (D, H) one-hot: contract D -> heads
    ehT = get_mat(len(mat_idx) - 1)          # (H, D) one-hot: expand heads -> D

    # ---- assemble x = x_t[..., None] + ctx, rows grouped l-major: (L*Tc, D) ----
    xf = jnp.concatenate([ctx_ref[l] + xt_ref[l] for l in range(L)], axis=0)

    for layer in range(n_layers):
        mbase = 1 + 6 * layer
        Wq, Wk, Wv, Wo, W1, W2 = [get_mat(mbase + j) for j in range(6)]
        vbase = 10 * layer
        (bq, bk, bv, bo, ln1w, ln1b,
         b1, b2, ln2w, ln2b) = [get_vec(vbase + j) for j in range(10)]

        xb = xf.astype(bf16)
        # 1/sqrt(head_dim) is folded into Wq / bq on the host.
        q = jnp.dot(xb, Wq, preferred_element_type=f32) + bq
        k = jnp.dot(xb, Wk, preferred_element_type=f32) + bk
        v = jnp.dot(xb, Wv, preferred_element_type=f32) + bv

        q_l = [q[i * Tc:(i + 1) * Tc, :] for i in range(L)]   # aligned sublane slices
        k_l = [k[i * Tc:(i + 1) * Tc, :] for i in range(L)]
        v_l = [v[i * Tc:(i + 1) * Tc, :] for i in range(L)]

        # Attention over the (small) L axis, batched over tokens & heads.
        # Scores live as (Tc, H) tiles: big axis on sublanes, no (L,L) tiles.
        out_l = []
        for i in range(L):
            s = [jnp.dot((q_l[i] * k_l[j]).astype(bf16), eh,
                         preferred_element_type=f32) for j in range(L)]   # (Tc, H)
            m = s[0]
            for j in range(1, L):
                m = jnp.maximum(m, s[j])
            p = [jnp.exp(sj - m) for sj in s]
            den = p[0]
            for j in range(1, L):
                den = den + p[j]
            inv = pl.reciprocal(den, approx=True)                         # EUP
            acc = None
            for j in range(L):
                pe = jnp.dot((p[j] * inv).astype(bf16), ehT,
                             preferred_element_type=f32)                  # (Tc, D)
                term = pe * v_l[j]
                acc = term if acc is None else acc + term
            out_l.append(acc)
        attn = jnp.concatenate(out_l, axis=0)                             # (L*Tc, D)
        attn = jnp.dot(attn.astype(bf16), Wo, preferred_element_type=f32) + bo

        # Post-norm encoder layer (norm_first=False), exact-erf GELU, f32 LN.
        y = _layernorm(xf + attn, ln1w, ln1b)
        h1 = jnp.dot(y.astype(bf16), W1, preferred_element_type=f32) + b1
        h1 = _gelu(h1)
        h2 = jnp.dot(h1.astype(bf16), W2, preferred_element_type=f32) + b2
        xf = _layernorm(y + h2, ln2w, ln2b)

    # ---- output MLP: LN -> Linear(D,64) -> ReLU -> Linear(64,32) -> ReLU -> Linear(32,1)
    Mw1 = get_mat(1 + 6 * n_layers)
    Mw2 = get_mat(2 + 6 * n_layers)
    lnw, lnb, mb1, mb2, mw3_row, mb3 = [get_vec(10 * n_layers + j) for j in range(6)]

    ym = _layernorm(xf, lnw, lnb)
    ym = jnp.maximum(jnp.dot(ym.astype(bf16), Mw1, preferred_element_type=f32) + mb1, 0.0)
    ym = jnp.maximum(jnp.dot(ym.astype(bf16), Mw2, preferred_element_type=f32) + mb2, 0.0)

    # Final Linear(32, 1) as multiply + lane reduce, written as an (L, Tc) slab.
    y3 = ym.reshape(L, Tc, ym.shape[-1])
    out = jnp.sum(y3 * mw3_row, axis=-1) + mb3                            # (L, Tc)
    o_ref[0] = out.astype(o_ref.dtype)


# ------------------------------ host-side setup -------------------------------

def pack_params(layer_params, mlp_params, *, n_heads, head_dim):
    """Pack all parameters into one bf16 matrix slab and one f32 vector slab.

    Matrix slab ((in, out) layout) order:
      [eh] + per-layer [Wq*s, Wk, Wv, Wo, W1, W2] + [Mw1, Mw2] + [ehT]
    Vector slab (1 row each) order:
      per-layer [bq*s, bk, bv, bo, ln1w, ln1b, b1, b2, ln2w, ln2b]
      + [lnw, lnb, mb1, mb2, mw3_row, mb3]
    """
    d_model = n_heads * head_dim
    scale = 1.0 / math.sqrt(head_dim)

    mats, mat_idx = [], []
    vecs, vec_idx = [], []

    def add_mat(w):
        w = np.asarray(w, np.float32)
        mat_idx.append((sum(m.shape[0] for m in mats), int(w.shape[0]), int(w.shape[1])))
        mats.append(w)

    def add_vec(v):
        v = np.asarray(v, np.float32).reshape(1, -1)
        vec_idx.append((len(vecs), int(v.shape[1])))
        vecs.append(v)

    # Head one-hot contract/expand matrices (0/1 -> exact in bf16).
    heads_of_d = np.arange(d_model) // head_dim
    eh = (heads_of_d[:, None] == np.arange(n_heads)[None, :]).astype(np.float32)

    add_mat(eh)
    for (wqkv, bqkv, wo, bo, ln1w, ln1b, w1, b1, w2, b2, ln2w, ln2b) in layer_params:
        wqkv = np.asarray(wqkv, np.float32)
        bqkv = np.asarray(bqkv, np.float32).reshape(1, -1)
        wq, wk, wv = (wqkv[:d_model], wqkv[d_model:2 * d_model], wqkv[2 * d_model:])
        add_mat(wq.T * scale)      # fold attention scale into q projection
        add_mat(wk.T)
        add_mat(wv.T)
        add_mat(np.asarray(wo, np.float32).T)
        add_mat(np.asarray(w1, np.float32).T)
        add_mat(np.asarray(w2, np.float32).T)
        add_vec(bqkv[:, :d_model] * scale)
        add_vec(bqkv[:, d_model:2 * d_model])
        add_vec(bqkv[:, 2 * d_model:])
        add_vec(bo); add_vec(ln1w); add_vec(ln1b)
        add_vec(b1); add_vec(b2); add_vec(ln2w); add_vec(ln2b)

    lnw, lnb, mw1, mb1, mw2, mb2, mw3, mb3 = mlp_params
    add_mat(np.asarray(mw1, np.float32).T)
    add_mat(np.asarray(mw2, np.float32).T)
    add_mat(eh.T)                                         # ehT last (4 rows)
    add_vec(lnw); add_vec(lnb); add_vec(mb1); add_vec(mb2)
    add_vec(np.asarray(mw3, np.float32).reshape(1, -1))   # (1, 32) row for mul+reduce
    add_vec(mb3)

    wm = max(c for (_, _, c) in mat_idx)
    wv = max(c for (_, c) in vec_idx)
    mat_slab = np.concatenate(
        [np.pad(m, ((0, 0), (0, wm - m.shape[1]))) for m in mats], axis=0)
    vec_slab = np.concatenate(
        [np.pad(v, ((0, 0), (0, wv - v.shape[1]))) for v in vecs], axis=0)
    return (jnp.asarray(mat_slab, jnp.bfloat16),
            jnp.asarray(vec_slab, jnp.float32),
            tuple(mat_idx), tuple(vec_idx))


def _default_num_chunks():
    # 1 chunk on single-TensorCore chips (v5e / v6e: grid is a serial loop);
    # 2 chunks (= #TCs) on v7x so dimension_semantics=("parallel",) can shard.
    try:
        kind = jax.devices()[0].device_kind.lower().replace(" ", "")
    except Exception:
        return 1
    return 2 if ("v7" in kind or "tpu7" in kind) else 1


def transformer_forward(x_t, t, ctx, mat_slab, vec_slab, *,
                        mat_idx, vec_idx, n_layers, n_heads, head_dim,
                        num_chunks=None):
    # `t` is accepted for API parity: its token is appended then sliced off by
    # the module, and with batch_first=False the token axis is the attention
    # *batch* axis, so it cannot influence any retained output.
    del t
    B, N, M = x_t.shape
    D = n_heads * head_dim
    NM = N * M
    if num_chunks is None:
        num_chunks = _default_num_chunks()
    Tc = -(-NM // num_chunks)
    Tc = max(8, ((Tc + 7) // 8) * 8)          # sublane-aligned chunk of tokens
    nc = -(-NM // Tc)

    # Only free contiguous reshapes on the host; assembly happens in-kernel.
    ctx2 = ctx.reshape(B, NM, D)
    xt2 = x_t.reshape(B, NM, 1)

    kern = functools.partial(fused_transformer_kernel,
                             n_layers=n_layers, mat_idx=mat_idx, vec_idx=vec_idx)

    out = pl.pallas_call(
        kern,
        out_shape=jax.ShapeDtypeStruct((nc, B, Tc), jnp.float32),
        grid=(nc,),
        in_specs=[
            pl.BlockSpec((B, Tc, 1), lambda i: (0, i, 0)),
            pl.BlockSpec((B, Tc, D), lambda i: (0, i, 0)),
            pl.BlockSpec(mat_slab.shape, lambda i: (0, 0)),
            pl.BlockSpec(vec_slab.shape, lambda i: (0, 0)),
        ],
        out_specs=pl.BlockSpec((1, B, Tc), lambda i: (i, 0, 0)),
        compiler_params=pltpu.CompilerParams(
            dimension_semantics=("parallel",),
            vmem_limit_bytes=32 * 1024 * 1024),
    )(xt2, ctx2, mat_slab, vec_slab)

    y = jnp.transpose(out, (1, 0, 2)).reshape(B, nc * Tc)[:, :NM]
    return y.reshape(B, N, M)


def init_params(key, n_layers, d_model, ffn_dim):
    """PyTorch-layout parameters: Linear weights are (out, in), biases (1, out)."""
    def dense(k, out_d, in_d, scale=0.05):
        kw, kb = jax.random.split(k)
        return (jax.random.normal(kw, (out_d, in_d), jnp.float32) * scale,
                jax.random.normal(kb, (1, out_d), jnp.float32) * 0.01)

    keys = jax.random.split(key, n_layers + 1)
    layer_params = []
    for lk in keys[:n_layers]:
        k1, k2, k3, k4 = jax.random.split(lk, 4)
        wqkv, bqkv = dense(k1, 3 * d_model, d_model)
        wo, bo = dense(k2, d_model, d_model)
        ln1w = jnp.ones((1, d_model), jnp.float32)
        ln1b = jnp.zeros((1, d_model), jnp.float32)
        w1, b1 = dense(k3, ffn_dim, d_model)
        w2, b2 = dense(k4, d_model, ffn_dim)
        ln2w = jnp.ones((1, d_model), jnp.float32)
        ln2b = jnp.zeros((1, d_model), jnp.float32)
        layer_params.append((wqkv, bqkv, wo, bo, ln1w, ln1b,
                             w1, b1, w2, b2, ln2w, ln2b))
    m1, m2, m3 = jax.random.split(keys[-1], 3)
    lnw = jnp.ones((1, d_model), jnp.float32)
    lnb = jnp.zeros((1, d_model), jnp.float32)
    w1, b1 = dense(m1, 64, d_model)
    w2, b2 = dense(m2, 32, 64)
    w3, b3 = dense(m3, 1, 32)
    mlp_params = (lnw, lnb, w1, b1, w2, b2, w3, b3)
    return layer_params, mlp_params


if __name__ == "__main__":
    # Small config consistent with the module: d_model = n_heads * query_dimensions
    B, N, M = 2, 4, 8                 # x_t: (B, N, M); ctx: (B, N, M, d_model)
    n_layers, n_heads, q_dim, ffn_dim = 2, 4, 8, 64
    d_model = n_heads * q_dim         # 32

    key = jax.random.PRNGKey(0)
    kx, kt, kc, kp = jax.random.split(key, 4)
    x_t = jax.random.normal(kx, (B, N, M), jnp.float32)
    t = jax.random.normal(kt, (B, d_model), jnp.float32)
    ctx = jax.random.normal(kc, (B, N, M, d_model), jnp.float32)

    layer_params, mlp_params = init_params(kp, n_layers, d_model, ffn_dim)
    # Parameter packing happens once, outside jit.
    mat_slab, vec_slab, mat_idx, vec_idx = pack_params(
        layer_params, mlp_params, n_heads=n_heads, head_dim=q_dim)

    fwd = jax.jit(functools.partial(
        transformer_forward, mat_idx=mat_idx, vec_idx=vec_idx,
        n_layers=n_layers, n_heads=n_heads, head_dim=q_dim))
    out = fwd(x_t, t, ctx, mat_slab, vec_slab)
    jax.block_until_ready(out)
    assert out.shape == (B, N, M), out.shape
    assert bool(jnp.all(jnp.isfinite(out)))
    print("KERNEL_OK")
</pallas_src>

<mosaic_0001>
module attributes {stable_mosaic.version = 11 : i64} {
  func.func @fused_transformer_kernel(%arg0: i32, %arg1: memref<2x32x1xf32, #tpu.memory_space<vmem>>, %arg2: memref<2x32x32xf32, #tpu.memory_space<vmem>>, %arg3: memref<580x64xbf16, #tpu.memory_space<vmem>>, %arg4: memref<26x64xf32, #tpu.memory_space<vmem>>, %arg5: memref<1x2x32xf32, #tpu.memory_space<vmem>>) attributes {dimension_semantics = [#tpu.dimension_semantics<parallel>], iteration_bounds = array<i64: 1>, scalar_prefetch = 0 : i64, scratch_operands = 0 : i64, tpu.core_type = #tpu.core_type<tc>, window_params = [{transform_indices = @transform_0, window_bounds = array<i64: 2, 32, 1>}, {transform_indices = @transform_1, window_bounds = array<i64: 2, 32, 32>}, {pipeline_mode = #tpu.pipeline_mode<synchronous>, transform_indices = @transform_2, window_bounds = array<i64: 580, 64>}, {pipeline_mode = #tpu.pipeline_mode<synchronous>, transform_indices = @transform_3, window_bounds = array<i64: 26, 64>}, {transform_indices = @transform_4, window_bounds = array<i64: 1, 2, 32>}]} {
    %c0 = arith.constant 0 : index
    %c0_0 = arith.constant 0 : index
    %0 = vector.load %arg3[%c0, %c0_0] : memref<580x64xbf16, #tpu.memory_space<vmem>>, vector<32x4xbf16>
    %c576 = arith.constant 576 : index
    %c0_1 = arith.constant 0 : index
    %1 = vector.load %arg3[%c576, %c0_1] : memref<580x64xbf16, #tpu.memory_space<vmem>>, vector<4x32xbf16>
    %c0_2 = arith.constant 0 : index
    %c0_3 = arith.constant 0 : index
    %c0_4 = arith.constant 0 : index
    %2 = vector.load %arg2[%c0_2, %c0_3, %c0_4] : memref<2x32x32xf32, #tpu.memory_space<vmem>>, vector<1x32x32xf32>
    %3 = vector.shape_cast %2 : vector<1x32x32xf32> to vector<32x32xf32>
    %c0_5 = arith.constant 0 : index
    %c0_6 = arith.constant 0 : index
    %c0_7 = arith.constant 0 : index
    %4 = vector.load %arg1[%c0_5, %c0_6, %c0_7] : memref<2x32x1xf32, #tpu.memory_space<vmem>>, vector<1x32x1xf32>
    %5 = vector.shape_cast %4 : vector<1x32x1xf32> to vector<32x1xf32>
    %6 = vector.broadcast %5 : vector<32x1xf32> to vector<32x32xf32>
    %7 = arith.addf %3, %6 : vector<32x32xf32>
    %c1 = arith.constant 1 : index
    %c0_8 = arith.constant 0 : index
    %c0_9 = arith.constant 0 : index
    %8 = vector.load %arg2[%c1, %c0_8, %c0_9] : memref<2x32x32xf32, #tpu.memory_space<vmem>>, vector<1x32x32xf32>
    %9 = vector.shape_cast %8 : vector<1x32x32xf32> to vector<32x32xf32>
    %c1_10 = arith.constant 1 : index
    %c0_11 = arith.constant 0 : index
    %c0_12 = arith.constant 0 : index
    %10 = vector.load %arg1[%c1_10, %c0_11, %c0_12] : memref<2x32x1xf32, #tpu.memory_space<vmem>>, vector<1x32x1xf32>
    %11 = vector.shape_cast %10 : vector<1x32x1xf32> to vector<32x1xf32>
    %12 = vector.broadcast %11 : vector<32x1xf32> to vector<32x32xf32>
    %13 = arith.addf %9, %12 : vector<32x32xf32>
    %14 = tpu.concatenate %7, %13 in 0 : vector<32x32xf32>, vector<32x32xf32> -> vector<64x32xf32>
    %c32 = arith.constant 32 : index
    %c0_13 = arith.constant 0 : index
    %15 = vector.load %arg3[%c32, %c0_13] : memref<580x64xbf16, #tpu.memory_space<vmem>>, vector<32x32xbf16>
    %c64 = arith.constant 64 : index
    %c0_14 = arith.constant 0 : index
    %16 = vector.load %arg3[%c64, %c0_14] : memref<580x64xbf16, #tpu.memory_space<vmem>>, vector<32x32xbf16>
    %c96 = arith.constant 96 : index
    %c0_15 = arith.constant 0 : index
    %17 = vector.load %arg3[%c96, %c0_15] : memref<580x64xbf16, #tpu.memory_space<vmem>>, vector<32x32xbf16>
    %c128 = arith.constant 128 : index
    %c0_16 = arith.constant 0 : index
    %18 = vector.load %arg3[%c128, %c0_16] : memref<580x64xbf16, #tpu.memory_space<vmem>>, vector<32x32xbf16>
    %c160 = arith.constant 160 : index
    %c0_17 = arith.constant 0 : index
    %19 = vector.load %arg3[%c160, %c0_17] : memref<580x64xbf16, #tpu.memory_space<vmem>>, vector<32x64xbf16>
    %c192 = arith.constant 192 : index
    %c0_18 = arith.constant 0 : index
    %20 = vector.load %arg3[%c192, %c0_18] : memref<580x64xbf16, #tpu.memory_space<vmem>>, vector<64x32xbf16>
    %c0_19 = arith.constant 0 : index
    %c0_20 = arith.constant 0 : index
    %21 = vector.load %arg4[%c0_19, %c0_20] : memref<26x64xf32, #tpu.memory_space<vmem>>, vector<1x32xf32>
    %c1_21 = arith.constant 1 : index
    %c0_22 = arith.constant 0 : index
    %22 = vector.load %arg4[%c1_21, %c0_22] : memref<26x64xf32, #tpu.memory_space<vmem>>, vector<1x32xf32>
    %c2 = arith.constant 2 : index
    %c0_23 = arith.constant 0 : index
    %23 = vector.load %arg4[%c2, %c0_23] : memref<26x64xf32, #tpu.memory_space<vmem>>, vector<1x32xf32>
    %c3 = arith.constant 3 : index
    %c0_24 = arith.constant 0 : index
    %24 = vector.load %arg4[%c3, %c0_24] : memref<26x64xf32, #tpu.memory_space<vmem>>, vector<1x32xf32>
    %c4 = arith.constant 4 : index
    %c0_25 = arith.constant 0 : index
    %25 = vector.load %arg4[%c4, %c0_25] : memref<26x64xf32, #tpu.memory_space<vmem>>, vector<1x32xf32>
    %c5 = arith.constant 5 : index
    %c0_26 = arith.constant 0 : index
    %26 = vector.load %arg4[%c5, %c0_26] : memref<26x64xf32, #tpu.memory_space<vmem>>, vector<1x32xf32>
    %c6 = arith.constant 6 : index
    %c0_27 = arith.constant 0 : index
    %27 = vector.load %arg4[%c6, %c0_27] : memref<26x64xf32, #tpu.memory_space<vmem>>, vector<1x64xf32>
    %c7 = arith.constant 7 : index
    %c0_28 = arith.constant 0 : index
    %28 = vector.load %arg4[%c7, %c0_28] : memref<26x64xf32, #tpu.memory_space<vmem>>, vector<1x32xf32>
    %c8 = arith.constant 8 : index
    %c0_29 = arith.constant 0 : index
    %29 = vector.load %arg4[%c8, %c0_29] : memref<26x64xf32, #tpu.memory_space<vmem>>, vector<1x32xf32>
    %c9 = arith.constant 9 : index
    %c0_30 = arith.constant 0 : index
    %30 = vector.load %arg4[%c9, %c0_30] : memref<26x64xf32, #tpu.memory_space<vmem>>, vector<1x32xf32>
    %31 = arith.truncf %14 : vector<64x32xf32> to vector<64x32xbf16>
    %cst = arith.constant dense<0.000000e+00> : vector<64x32xf32>
    %32 = tpu.matmul %31, %15, %cst {dimension_numbers = #tpu.dot_dimension_numbers<[1], [0], [0], [1], [0, 0, 1, 1], [], []>} : vector<64x32xbf16>, vector<32x32xbf16>, vector<64x32xf32> -> vector<64x32xf32>
    %33 = vector.broadcast %21 : vector<1x32xf32> to vector<64x32xf32>
    %34 = arith.addf %32, %33 : vector<64x32xf32>
    %cst_31 = arith.constant dense<0.000000e+00> : vector<64x32xf32>
    %35 = tpu.matmul %31, %16, %cst_31 {dimension_numbers = #tpu.dot_dimension_numbers<[1], [0], [0], [1], [0, 0, 1, 1], [], []>} : vector<64x32xbf16>, vector<32x32xbf16>, vector<64x32xf32> -> vector<64x32xf32>
    %36 = vector.broadcast %22 : vector<1x32xf32> to vector<64x32xf32>
    %37 = arith.addf %35, %36 : vector<64x32xf32>
    %cst_32 = arith.constant dense<0.000000e+00> : vector<64x32xf32>
    %38 = tpu.matmul %31, %17, %cst_32 {dimension_numbers = #tpu.dot_dimension_numbers<[1], [0], [0], [1], [0, 0, 1, 1], [], []>} : vector<64x32xbf16>, vector<32x32xbf16>, vector<64x32xf32> -> vector<64x32xf32>
    %39 = vector.broadcast %23 : vector<1x32xf32> to vector<64x32xf32>
    %40 = arith.addf %38, %39 : vector<64x32xf32>
    %41 = vector.extract_strided_slice %34 {offsets = [0, 0], sizes = [32, 32], strides = [1, 1]} : vector<64x32xf32> to vector<32x32xf32>
    %42 = vector.extract_strided_slice %34 {offsets = [32, 0], sizes = [32, 32], strides = [1, 1]} : vector<64x32xf32> to vector<32x32xf32>
    %43 = vector.extract_strided_slice %37 {offsets = [0, 0], sizes = [32, 32], strides = [1, 1]} : vector<64x32xf32> to vector<32x32xf32>
    %44 = vector.extract_strided_slice %37 {offsets = [32, 0], sizes = [32, 32], strides = [1, 1]} : vector<64x32xf32> to vector<32x32xf32>
    %45 = vector.extract_strided_slice %40 {offsets = [0, 0], sizes = [32, 32], strides = [1, 1]} : vector<64x32xf32> to vector<32x32xf32>
    %46 = vector.extract_strided_slice %40 {offsets = [32, 0], sizes = [32, 32], strides = [1, 1]} : vector<64x32xf32> to vector<32x32xf32>
    %47 = arith.mulf %41, %43 : vector<32x32xf32>
    %48 = arith.truncf %47 : vector<32x32xf32> to vector<32x32xbf16>
    %cst_33 = arith.constant dense<0.000000e+00> : vector<32x4xf32>
    %49 = tpu.matmul %48, %0, %cst_33 {dimension_numbers = #tpu.dot_dimension_numbers<[1], [0], [0], [1], [0, 0, 1, 1], [], []>} : vector<32x32xbf16>, vector<32x4xbf16>, vector<32x4xf32> -> vector<32x4xf32>
    %50 = arith.mulf %41, %44 : vector<32x32xf32>
    %51 = arith.truncf %50 : vector<32x32xf32> to vector<32x32xbf16>
    %cst_34 = arith.constant dense<0.000000e+00> : vector<32x4xf32>
    %52 = tpu.matmul %51, %0, %cst_34 {dimension_numbers = #tpu.dot_dimension_numbers<[1], [0], [0], [1], [0, 0, 1, 1], [], []>} : vector<32x32xbf16>, vector<32x4xbf16>, vector<32x4xf32> -> vector<32x4xf32>
    %53 = arith.maximumf %49, %52 : vector<32x4xf32>
    %54 = arith.subf %49, %53 : vector<32x4xf32>
    %55 = math.exp %54 : vector<32x4xf32>
    %56 = arith.subf %52, %53 : vector<32x4xf32>
    %57 = math.exp %56 : vector<32x4xf32>
    %58 = arith.addf %55, %57 : vector<32x4xf32>
    %59 = tpu.reciprocal %58 {approx = true} : vector<32x4xf32> -> vector<32x4xf32>
    %60 = arith.mulf %55, %59 : vector<32x4xf32>
    %61 = arith.truncf %60 : vector<32x4xf32> to vector<32x4xbf16>
    %cst_35 = arith.constant dense<0.000000e+00> : vector<32x32xf32>
    %62 = tpu.matmul %61, %1, %cst_35 {dimension_numbers = #tpu.dot_dimension_numbers<[1], [0], [0], [1], [0, 0, 1, 1], [], []>} : vector<32x4xbf16>, vector<4x32xbf16>, vector<32x32xf32> -> vector<32x32xf32>
    %63 = arith.mulf %62, %45 : vector<32x32xf32>
    %64 = arith.mulf %57, %59 : vector<32x4xf32>
    %65 = arith.truncf %64 : vector<32x4xf32> to vector<32x4xbf16>
    %cst_36 = arith.constant dense<0.000000e+00> : vector<32x32xf32>
    %66 = tpu.matmul %65, %1, %cst_36 {dimension_numbers = #tpu.dot_dimension_numbers<[1], [0], [0], [1], [0, 0, 1, 1], [], []>} : vector<32x4xbf16>, vector<4x32xbf16>, vector<32x32xf32> -> vector<32x32xf32>
    %67 = arith.mulf %66, %46 : vector<32x32xf32>
    %68 = arith.addf %63, %67 : vector<32x32xf32>
    %69 = arith.mulf %42, %43 : vector<32x32xf32>
    %70 = arith.truncf %69 : vector<32x32xf32> to vector<32x32xbf16>
    %cst_37 = arith.constant dense<0.000000e+00> : vector<32x4xf32>
    %71 = tpu.matmul %70, %0, %cst_37 {dimension_numbers = #tpu.dot_dimension_numbers<[1], [0], [0], [1], [0, 0, 1, 1], [], []>} : vector<32x32xbf16>, vector<32x4xbf16>, vector<32x4xf32> -> vector<32x4xf32>
    %72 = arith.mulf %42, %44 : vector<32x32xf32>
    %73 = arith.truncf %72 : vector<32x32xf32> to vector<32x32xbf16>
    %cst_38 = arith.constant dense<0.000000e+00> : vector<32x4xf32>
    %74 = tpu.matmul %73, %0, %cst_38 {dimension_numbers = #tpu.dot_dimension_numbers<[1], [0], [0], [1], [0, 0, 1, 1], [], []>} : vector<32x32xbf16>, vector<32x4xbf16>, vector<32x4xf32> -> vector<32x4xf32>
    %75 = arith.maximumf %71, %74 : vector<32x4xf32>
    %76 = arith.subf %71, %75 : vector<32x4xf32>
    %77 = math.exp %76 : vector<32x4xf32>
    %78 = arith.subf %74, %75 : vector<32x4xf32>
    %79 = math.exp %78 : vector<32x4xf32>
    %80 = arith.addf %77, %79 : vector<32x4xf32>
    %81 = tpu.reciprocal %80 {approx = true} : vector<32x4xf32> -> vector<32x4xf32>
    %82 = arith.mulf %77, %81 : vector<32x4xf32>
    %83 = arith.truncf %82 : vector<32x4xf32> to vector<32x4xbf16>
    %cst_39 = arith.constant dense<0.000000e+00> : vector<32x32xf32>
    %84 = tpu.matmul %83, %1, %cst_39 {dimension_numbers = #tpu.dot_dimension_numbers<[1], [0], [0], [1], [0, 0, 1, 1], [], []>} : vector<32x4xbf16>, vector<4x32xbf16>, vector<32x32xf32> -> vector<32x32xf32>
    %85 = arith.mulf %84, %45 : vector<32x32xf32>
    %86 = arith.mulf %79, %81 : vector<32x4xf32>
    %87 = arith.truncf %86 : vector<32x4xf32> to vector<32x4xbf16>
    %cst_40 = arith.constant dense<0.000000e+00> : vector<32x32xf32>
    %88 = tpu.matmul %87, %1, %cst_40 {dimension_numbers = #tpu.dot_dimension_numbers<[1], [0], [0], [1], [0, 0, 1, 1], [], []>} : vector<32x4xbf16>, vector<4x32xbf16>, vector<32x32xf32> -> vector<32x32xf32>
    %89 = arith.mulf %88, %46 : vector<32x32xf32>
    %90 = arith.addf %85, %89 : vector<32x32xf32>
    %91 = tpu.concatenate %68, %90 in 0 : vector<32x32xf32>, vector<32x32xf32> -> vector<64x32xf32>
    %92 = arith.truncf %91 : vector<64x32xf32> to vector<64x32xbf16>
    %cst_41 = arith.constant dense<0.000000e+00> : vector<64x32xf32>
    %93 = tpu.matmul %92, %18, %cst_41 {dimension_numbers = #tpu.dot_dimension_numbers<[1], [0], [0], [1], [0, 0, 1, 1], [], []>} : vector<64x32xbf16>, vector<32x32xbf16>, vector<64x32xf32> -> vector<64x32xf32>
    %94 = vector.broadcast %24 : vector<1x32xf32> to vector<64x32xf32>
    %95 = arith.addf %93, %94 : vector<64x32xf32>
    %96 = arith.addf %14, %95 : vector<64x32xf32>
    %cst_42 = arith.constant dense<0.000000e+00> : vector<64xf32>
    %97 = vector.multi_reduction <add>, %96, %cst_42 [1] : vector<64x32xf32> to vector<64xf32>
    %98 = vector.shape_cast %97 : vector<64xf32> to vector<64x1xf32>
    %cst_43 = arith.constant 3.200000e+01 : f32
    %99 = vector.broadcast %cst_43 : f32 to vector<64x1xf32>
    %100 = arith.divf %98, %99 : vector<64x1xf32>
    %101 = vector.broadcast %100 : vector<64x1xf32> to vector<64x32xf32>
    %102 = arith.subf %96, %101 : vector<64x32xf32>
    %103 = arith.mulf %102, %102 : vector<64x32xf32>
    %cst_44 = arith.constant dense<0.000000e+00> : vector<64xf32>
    %104 = vector.multi_reduction <add>, %103, %cst_44 [1] : vector<64x32xf32> to vector<64xf32>
    %105 = vector.shape_cast %104 : vector<64xf32> to vector<64x1xf32>
    %cst_45 = arith.constant 3.200000e+01 : f32
    %106 = vector.broadcast %cst_45 : f32 to vector<64x1xf32>
    %107 = arith.divf %105, %106 : vector<64x1xf32>
    %108 = vector.broadcast %100 : vector<64x1xf32> to vector<64x32xf32>
    %109 = arith.subf %96, %108 : vector<64x32xf32>
    %cst_46 = arith.constant 9.99999974E-6 : f32
    %110 = vector.broadcast %cst_46 : f32 to vector<64x1xf32>
    %111 = arith.addf %107, %110 : vector<64x1xf32>
    %112 = math.rsqrt %111 : vector<64x1xf32>
    %113 = vector.broadcast %112 : vector<64x1xf32> to vector<64x32xf32>
    %114 = arith.mulf %109, %113 : vector<64x32xf32>
    %115 = vector.broadcast %25 : vector<1x32xf32> to vector<64x32xf32>
    %116 = arith.mulf %114, %115 : vector<64x32xf32>
    %117 = vector.broadcast %26 : vector<1x32xf32> to vector<64x32xf32>
    %118 = arith.addf %116, %117 : vector<64x32xf32>
    %119 = arith.truncf %118 : vector<64x32xf32> to vector<64x32xbf16>
    %cst_47 = arith.constant dense<0.000000e+00> : vector<64x64xf32>
    %120 = tpu.matmul %119, %19, %cst_47 {dimension_numbers = #tpu.dot_dimension_numbers<[1], [0], [0], [1], [0, 0, 1, 1], [], []>} : vector<64x32xbf16>, vector<32x64xbf16>, vector<64x64xf32> -> vector<64x64xf32>
    %121 = vector.broadcast %27 : vector<1x64xf32> to vector<64x64xf32>
    %122 = arith.addf %120, %121 : vector<64x64xf32>
    %cst_48 = arith.constant 5.000000e-01 : f32
    %123 = vector.broadcast %cst_48 : f32 to vector<64x64xf32>
    %124 = arith.mulf %123, %122 : vector<64x64xf32>
    %cst_49 = arith.constant 0.707106769 : f32
    %125 = vector.broadcast %cst_49 : f32 to vector<64x64xf32>
    %126 = arith.mulf %122, %125 : vector<64x64xf32>
    %127 = math.absf %126 : vector<64x64xf32>
    %cst_50 = arith.constant 0.327591091 : f32
    %128 = vector.broadcast %cst_50 : f32 to vector<64x64xf32>
    %129 = arith.mulf %128, %127 : vector<64x64xf32>
    %cst_51 = arith.constant 1.000000e+00 : f32
    %130 = vector.broadcast %cst_51 : f32 to vector<64x64xf32>
    %131 = arith.addf %130, %129 : vector<64x64xf32>
    %cst_52 = arith.constant 1.000000e+00 : f32
    %132 = vector.broadcast %cst_52 : f32 to vector<64x64xf32>
    %133 = arith.divf %132, %131 : vector<64x64xf32>
    %cst_53 = arith.constant 1.06140542 : f32
    %134 = vector.broadcast %cst_53 : f32 to vector<64x64xf32>
    %135 = arith.mulf %134, %133 : vector<64x64xf32>
    %cst_54 = arith.constant -1.45315206 : f32
    %136 = vector.broadcast %cst_54 : f32 to vector<64x64xf32>
    %137 = arith.addf %135, %136 : vector<64x64xf32>
    %138 = arith.mulf %137, %133 : vector<64x64xf32>
    %cst_55 = arith.constant 1.42141378 : f32
    %139 = vector.broadcast %cst_55 : f32 to vector<64x64xf32>
    %140 = arith.addf %138, %139 : vector<64x64xf32>
    %141 = arith.mulf %140, %133 : vector<64x64xf32>
    %cst_56 = arith.constant -0.284496725 : f32
    %142 = vector.broadcast %cst_56 : f32 to vector<64x64xf32>
    %143 = arith.addf %141, %142 : vector<64x64xf32>
    %144 = arith.mulf %143, %133 : vector<64x64xf32>
    %cst_57 = arith.constant 0.254829586 : f32
    %145 = vector.broadcast %cst_57 : f32 to vector<64x64xf32>
    %146 = arith.addf %144, %145 : vector<64x64xf32>
    %147 = arith.mulf %146, %133 : vector<64x64xf32>
    %cst_58 = arith.constant 0.000000e+00 : f32
    %148 = vector.broadcast %cst_58 : f32 to vector<64x64xf32>
    %149 = arith.subf %148, %127 : vector<64x64xf32>
    %150 = arith.mulf %149, %127 : vector<64x64xf32>
    %151 = math.exp %150 : vector<64x64xf32>
    %152 = arith.mulf %147, %151 : vector<64x64xf32>
    %cst_59 = arith.constant 1.000000e+00 : f32
    %153 = vector.broadcast %cst_59 : f32 to vector<64x64xf32>
    %154 = arith.subf %153, %152 : vector<64x64xf32>
    %cst_60 = arith.constant 0.000000e+00 : f32
    %155 = vector.broadcast %cst_60 : f32 to vector<64x64xf32>
    %156 = arith.cmpf olt, %126, %155 : vector<64x64xf32>
    %cst_61 = arith.constant 0.000000e+00 : f32
    %157 = vector.broadcast %cst_61 : f32 to vector<64x64xf32>
    %158 = arith.subf %157, %154 : vector<64x64xf32>
    %159 = arith.select %156, %158, %154 : vector<64x64xi1>, vector<64x64xf32>
    %cst_62 = arith.constant 1.000000e+00 : f32
    %160 = vector.broadcast %cst_62 : f32 to vector<64x64xf32>
    %161 = arith.addf %160, %159 : vector<64x64xf32>
    %162 = arith.mulf %124, %161 : vector<64x64xf32>
    %163 = arith.truncf %162 : vector<64x64xf32> to vector<64x64xbf16>
    %cst_63 = arith.constant dense<0.000000e+00> : vector<64x32xf32>
    %164 = tpu.matmul %163, %20, %cst_63 {dimension_numbers = #tpu.dot_dimension_numbers<[1], [0], [0], [1], [0, 0, 1, 1], [], []>} : vector<64x64xbf16>, vector<64x32xbf16>, vector<64x32xf32> -> vector<64x32xf32>
    %165 = vector.broadcast %28 : vector<1x32xf32> to vector<64x32xf32>
    %166 = arith.addf %164, %165 : vector<64x32xf32>
    %167 = arith.addf %118, %166 : vector<64x32xf32>
    %cst_64 = arith.constant dense<0.000000e+00> : vector<64xf32>
    %168 = vector.multi_reduction <add>, %167, %cst_64 [1] : vector<64x32xf32> to vector<64xf32>
    %169 = vector.shape_cast %168 : vector<64xf32> to vector<64x1xf32>
    %cst_65 = arith.constant 3.200000e+01 : f32
    %170 = vector.broadcast %cst_65 : f32 to vector<64x1xf32>
    %171 = arith.divf %169, %170 : vector<64x1xf32>
    %172 = vector.broadcast %171 : vector<64x1xf32> to vector<64x32xf32>
    %173 = arith.subf %167, %172 : vector<64x32xf32>
    %174 = arith.mulf %173, %173 : vector<64x32xf32>
    %cst_66 = arith.constant dense<0.000000e+00> : vector<64xf32>
    %175 = vector.multi_reduction <add>, %174, %cst_66 [1] : vector<64x32xf32> to vector<64xf32>
    %176 = vector.shape_cast %175 : vector<64xf32> to vector<64x1xf32>
    %cst_67 = arith.constant 3.200000e+01 : f32
    %177 = vector.broadcast %cst_67 : f32 to vector<64x1xf32>
    %178 = arith.divf %176, %177 : vector<64x1xf32>
    %179 = vector.broadcast %171 : vector<64x1xf32> to vector<64x32xf32>
    %180 = arith.subf %167, %179 : vector<64x32xf32>
    %cst_68 = arith.constant 9.99999974E-6 : f32
    %181 = vector.broadcast %cst_68 : f32 to vector<64x1xf32>
    %182 = arith.addf %178, %181 : vector<64x1xf32>
    %183 = math.rsqrt %182 : vector<64x1xf32>
    %184 = vector.broadcast %183 : vector<64x1xf32> to vector<64x32xf32>
    %185 = arith.mulf %180, %184 : vector<64x32xf32>
    %186 = vector.broadcast %29 : vector<1x32xf32> to vector<64x32xf32>
    %187 = arith.mulf %185, %186 : vector<64x32xf32>
    %188 = vector.broadcast %30 : vector<1x32xf32> to vector<64x32xf32>
    %189 = arith.addf %187, %188 : vector<64x32xf32>
    %c256 = arith.constant 256 : index
    %c0_69 = arith.constant 0 : index
    %190 = vector.load %arg3[%c256, %c0_69] : memref<580x64xbf16, #tpu.memory_space<vmem>>, vector<32x32xbf16>
    %c288 = arith.constant 288 : index
    %c0_70 = arith.constant 0 : index
    %191 = vector.load %arg3[%c288, %c0_70] : memref<580x64xbf16, #tpu.memory_space<vmem>>, vector<32x32xbf16>
    %c320 = arith.constant 320 : index
    %c0_71 = arith.constant 0 : index
    %192 = vector.load %arg3[%c320, %c0_71] : memref<580x64xbf16, #tpu.memory_space<vmem>>, vector<32x32xbf16>
    %c352 = arith.constant 352 : index
    %c0_72 = arith.constant 0 : index
    %193 = vector.load %arg3[%c352, %c0_72] : memref<580x64xbf16, #tpu.memory_space<vmem>>, vector<32x32xbf16>
    %c384 = arith.constant 384 : index
    %c0_73 = arith.constant 0 : index
    %194 = vector.load %arg3[%c384, %c0_73] : memref<580x64xbf16, #tpu.memory_space<vmem>>, vector<32x64xbf16>
    %c416 = arith.constant 416 : index
    %c0_74 = arith.constant 0 : index
    %195 = vector.load %arg3[%c416, %c0_74] : memref<580x64xbf16, #tpu.memory_space<vmem>>, vector<64x32xbf16>
    %c10 = arith.constant 10 : index
    %c0_75 = arith.constant 0 : index
    %196 = vector.load %arg4[%c10, %c0_75] : memref<26x64xf32, #tpu.memory_space<vmem>>, vector<1x32xf32>
    %c11 = arith.constant 11 : index
    %c0_76 = arith.constant 0 : index
    %197 = vector.load %arg4[%c11, %c0_76] : memref<26x64xf32, #tpu.memory_space<vmem>>, vector<1x32xf32>
    %c12 = arith.constant 12 : index
    %c0_77 = arith.constant 0 : index
    %198 = vector.load %arg4[%c12, %c0_77] : memref<26x64xf32, #tpu.memory_space<vmem>>, vector<1x32xf32>
    %c13 = arith.constant 13 : index
    %c0_78 = arith.constant 0 : index
    %199 = vector.load %arg4[%c13, %c0_78] : memref<26x64xf32, #tpu.memory_space<vmem>>, vector<1x32xf32>
    %c14 = arith.constant 14 : index
    %c0_79 = arith.constant 0 : index
    %200 = vector.load %arg4[%c14, %c0_79] : memref<26x64xf32, #tpu.memory_space<vmem>>, vector<1x32xf32>
    %c15 = arith.constant 15 : index
    %c0_80 = arith.constant 0 : index
    %201 = vector.load %arg4[%c15, %c0_80] : memref<26x64xf32, #tpu.memory_space<vmem>>, vector<1x32xf32>
    %c16 = arith.constant 16 : index
    %c0_81 = arith.constant 0 : index
    %202 = vector.load %arg4[%c16, %c0_81] : memref<26x64xf32, #tpu.memory_space<vmem>>, vector<1x64xf32>
    %c17 = arith.constant 17 : index
    %c0_82 = arith.constant 0 : index
    %203 = vector.load %arg4[%c17, %c0_82] : memref<26x64xf32, #tpu.memory_space<vmem>>, vector<1x32xf32>
    %c18 = arith.constant 18 : index
    %c0_83 = arith.constant 0 : index
    %204 = vector.load %arg4[%c18, %c0_83] : memref<26x64xf32, #tpu.memory_space<vmem>>, vector<1x32xf32>
    %c19 = arith.constant 19 : index
    %c0_84 = arith.constant 0 : index
    %205 = vector.load %arg4[%c19, %c0_84] : memref<26x64xf32, #tpu.memory_space<vmem>>, vector<1x32xf32>
    %206 = arith.truncf %189 : vector<64x32xf32> to vector<64x32xbf16>
    %cst_85 = arith.constant dense<0.000000e+00> : vector<64x32xf32>
    %207 = tpu.matmul %206, %190, %cst_85 {dimension_numbers = #tpu.dot_dimension_numbers<[1], [0], [0], [1], [0, 0, 1, 1], [], []>} : vector<64x32xbf16>, vector<32x32xbf16>, vector<64x32xf32> -> vector<64x32xf32>
    %208 = vector.broadcast %196 : vector<1x32xf32> to vector<64x32xf32>
    %209 = arith.addf %207, %208 : vector<64x32xf32>
    %cst_86 = arith.constant dense<0.000000e+00> : vector<64x32xf32>
    %210 = tpu.matmul %206, %191, %cst_86 {dimension_numbers = #tpu.dot_dimension_numbers<[1], [0], [0], [1], [0, 0, 1, 1], [], []>} : vector<64x32xbf16>, vector<32x32xbf16>, vector<64x32xf32> -> vector<64x32xf32>
    %211 = vector.broadcast %197 : vector<1x32xf32> to vector<64x32xf32>
    %212 = arith.addf %210, %211 : vector<64x32xf32>
    %cst_87 = arith.constant dense<0.000000e+00> : vector<64x32xf32>
    %213 = tpu.matmul %206, %192, %cst_87 {dimension_numbers = #tpu.dot_dimension_numbers<[1], [0], [0], [1], [0, 0, 1, 1], [], []>} : vector<64x32xbf16>, vector<32x32xbf16>, vector<64x32xf32> -> vector<64x32xf32>
    %214 = vector.broadcast %198 : vector<1x32xf32> to vector<64x32xf32>
    %215 = arith.addf %213, %214 : vector<64x32xf32>
    %216 = vector.extract_strided_slice %209 {offsets = [0, 0], sizes = [32, 32], strides = [1, 1]} : vector<64x32xf32> to vector<32x32xf32>
    %217 = vector.extract_strided_slice %209 {offsets = [32, 0], sizes = [32, 32], strides = [1, 1]} : vector<64x32xf32> to vector<32x32xf32>
    %218 = vector.extract_strided_slice %212 {offsets = [0, 0], sizes = [32, 32], strides = [1, 1]} : vector<64x32xf32> to vector<32x32xf32>
    %219 = vector.extract_strided_slice %212 {offsets = [32, 0], sizes = [32, 32], strides = [1, 1]} : vector<64x32xf32> to vector<32x32xf32>
    %220 = vector.extract_strided_slice %215 {offsets = [0, 0], sizes = [32, 32], strides = [1, 1]} : vector<64x32xf32> to vector<32x32xf32>
    %221 = vector.extract_strided_slice %215 {offsets = [32, 0], sizes = [32, 32], strides = [1, 1]} : vector<64x32xf32> to vector<32x32xf32>
    %222 = arith.mulf %216, %218 : vector<32x32xf32>
    %223 = arith.truncf %222 : vector<32x32xf32> to vector<32x32xbf16>
    %cst_88 = arith.constant dense<0.000000e+00> : vector<32x4xf32>
    %224 = tpu.matmul %223, %0, %cst_88 {dimension_numbers = #tpu.dot_dimension_numbers<[1], [0], [0], [1], [0, 0, 1, 1], [], []>} : vector<32x32xbf16>, vector<32x4xbf16>, vector<32x4xf32> -> vector<32x4xf32>
    %225 = arith.mulf %216, %219 : vector<32x32xf32>
    %226 = arith.truncf %225 : vector<32x32xf32> to vector<32x32xbf16>
    %cst_89 = arith.constant dense<0.000000e+00> : vector<32x4xf32>
    %227 = tpu.matmul %226, %0, %cst_89 {dimension_numbers = #tpu.dot_dimension_numbers<[1], [0], [0], [1], [0, 0, 1, 1], [], []>} : vector<32x32xbf16>, vector<32x4xbf16>, vector<32x4xf32> -> vector<32x4xf32>
    %228 = arith.maximumf %224, %227 : vector<32x4xf32>
    %229 = arith.subf %224, %228 : vector<32x4xf32>
    %230 = math.exp %229 : vector<32x4xf32>
    %231 = arith.subf %227, %228 : vector<32x4xf32>
    %232 = math.exp %231 : vector<32x4xf32>
    %233 = arith.addf %230, %232 : vector<32x4xf32>
    %234 = tpu.reciprocal %233 {approx = true} : vector<32x4xf32> -> vector<32x4xf32>
    %235 = arith.mulf %230, %234 : vector<32x4xf32>
    %236 = arith.truncf %235 : vector<32x4xf32> to vector<32x4xbf16>
    %cst_90 = arith.constant dense<0.000000e+00> : vector<32x32xf32>
    %237 = tpu.matmul %236, %1, %cst_90 {dimension_numbers = #tpu.dot_dimension_numbers<[1], [0], [0], [1], [0, 0, 1, 1], [], []>} : vector<32x4xbf16>, vector<4x32xbf16>, vector<32x32xf32> -> vector<32x32xf32>
    %238 = arith.mulf %237, %220 : vector<32x32xf32>
    %239 = arith.mulf %232, %234 : vector<32x4xf32>
    %240 = arith.truncf %239 : vector<32x4xf32> to vector<32x4xbf16>
    %cst_91 = arith.constant dense<0.000000e+00> : vector<32x32xf32>
    %241 = tpu.matmul %240, %1, %cst_91 {dimension_numbers = #tpu.dot_dimension_numbers<[1], [0], [0], [1], [0, 0, 1, 1], [], []>} : vector<32x4xbf16>, vector<4x32xbf16>, vector<32x32xf32> -> vector<32x32xf32>
    %242 = arith.mulf %241, %221 : vector<32x32xf32>
    %243 = arith.addf %238, %242 : vector<32x32xf32>
    %244 = arith.mulf %217, %218 : vector<32x32xf32>
    %245 = arith.truncf %244 : vector<32x32xf32> to vector<32x32xbf16>
    %cst_92 = arith.constant dense<0.000000e+00> : vector<32x4xf32>
    %246 = tpu.matmul %245, %0, %cst_92 {dimension_numbers = #tpu.dot_dimension_numbers<[1], [0], [0], [1], [0, 0, 1, 1], [], []>} : vector<32x32xbf16>, vector<32x4xbf16>, vector<32x4xf32> -> vector<32x4xf32>
    %247 = arith.mulf %217, %219 : vector<32x32xf32>
    %248 = arith.truncf %247 : vector<32x32xf32> to vector<32x32xbf16>
    %cst_93 = arith.constant dense<0.000000e+00> : vector<32x4xf32>
    %249 = tpu.matmul %248, %0, %cst_93 {dimension_numbers = #tpu.dot_dimension_numbers<[1], [0], [0], [1], [0, 0, 1, 1], [], []>} : vector<32x32xbf16>, vector<32x4xbf16>, vector<32x4xf32> -> vector<32x4xf32>
    %250 = arith.maximumf %246, %249 : vector<32x4xf32>
    %251 = arith.subf %246, %250 : vector<32x4xf32>
    %252 = math.exp %251 : vector<32x4xf32>
    %253 = arith.subf %249, %250 : vector<32x4xf32>
    %254 = math.exp %253 : vector<32x4xf32>
    %255 = arith.addf %252, %254 : vector<32x4xf32>
    %256 = tpu.reciprocal %255 {approx = true} : vector<32x4xf32> -> vector<32x4xf32>
    %257 = arith.mulf %252, %256 : vector<32x4xf32>
    %258 = arith.truncf %257 : vector<32x4xf32> to vector<32x4xbf16>
    %cst_94 = arith.constant dense<0.000000e+00> : vector<32x32xf32>
    %259 = tpu.matmul %258, %1, %cst_94 {dimension_numbers = #tpu.dot_dimension_numbers<[1], [0], [0], [1], [0, 0, 1, 1], [], []>} : vector<32x4xbf16>, vector<4x32xbf16>, vector<32x32xf32> -> vector<32x32xf32>
    %260 = arith.mulf %259, %220 : vector<32x32xf32>
    %261 = arith.mulf %254, %256 : vector<32x4xf32>
    %262 = arith.truncf %261 : vector<32x4xf32> to vector<32x4xbf16>
    %cst_95 = arith.constant dense<0.000000e+00> : vector<32x32xf32>
    %263 = tpu.matmul %262, %1, %cst_95 {dimension_numbers = #tpu.dot_dimension_numbers<[1], [0], [0], [1], [0, 0, 1, 1], [], []>} : vector<32x4xbf16>, vector<4x32xbf16>, vector<32x32xf32> -> vector<32x32xf32>
    %264 = arith.mulf %263, %221 : vector<32x32xf32>
    %265 = arith.addf %260, %264 : vector<32x32xf32>
    %266 = tpu.concatenate %243, %265 in 0 : vector<32x32xf32>, vector<32x32xf32> -> vector<64x32xf32>
    %267 = arith.truncf %266 : vector<64x32xf32> to vector<64x32xbf16>
    %cst_96 = arith.constant dense<0.000000e+00> : vector<64x32xf32>
    %268 = tpu.matmul %267, %193, %cst_96 {dimension_numbers = #tpu.dot_dimension_numbers<[1], [0], [0], [1], [0, 0, 1, 1], [], []>} : vector<64x32xbf16>, vector<32x32xbf16>, vector<64x32xf32> -> vector<64x32xf32>
    %269 = vector.broadcast %199 : vector<1x32xf32> to vector<64x32xf32>
    %270 = arith.addf %268, %269 : vector<64x32xf32>
    %271 = arith.addf %189, %270 : vector<64x32xf32>
    %cst_97 = arith.constant dense<0.000000e+00> : vector<64xf32>
    %272 = vector.multi_reduction <add>, %271, %cst_97 [1] : vector<64x32xf32> to vector<64xf32>
    %273 = vector.shape_cast %272 : vector<64xf32> to vector<64x1xf32>
    %cst_98 = arith.constant 3.200000e+01 : f32
    %274 = vector.broadcast %cst_98 : f32 to vector<64x1xf32>
    %275 = arith.divf %273, %274 : vector<64x1xf32>
    %276 = vector.broadcast %275 : vector<64x1xf32> to vector<64x32xf32>
    %277 = arith.subf %271, %276 : vector<64x32xf32>
    %278 = arith.mulf %277, %277 : vector<64x32xf32>
    %cst_99 = arith.constant dense<0.000000e+00> : vector<64xf32>
    %279 = vector.multi_reduction <add>, %278, %cst_99 [1] : vector<64x32xf32> to vector<64xf32>
    %280 = vector.shape_cast %279 : vector<64xf32> to vector<64x1xf32>
    %cst_100 = arith.constant 3.200000e+01 : f32
    %281 = vector.broadcast %cst_100 : f32 to vector<64x1xf32>
    %282 = arith.divf %280, %281 : vector<64x1xf32>
    %283 = vector.broadcast %275 : vector<64x1xf32> to vector<64x32xf32>
    %284 = arith.subf %271, %283 : vector<64x32xf32>
    %cst_101 = arith.constant 9.99999974E-6 : f32
    %285 = vector.broadcast %cst_101 : f32 to vector<64x1xf32>
    %286 = arith.addf %282, %285 : vector<64x1xf32>
    %287 = math.rsqrt %286 : vector<64x1xf32>
    %288 = vector.broadcast %287 : vector<64x1xf32> to vector<64x32xf32>
    %289 = arith.mulf %284, %288 : vector<64x32xf32>
    %290 = vector.broadcast %200 : vector<1x32xf32> to vector<64x32xf32>
    %291 = arith.mulf %289, %290 : vector<64x32xf32>
    %292 = vector.broadcast %201 : vector<1x32xf32> to vector<64x32xf32>
    %293 = arith.addf %291, %292 : vector<64x32xf32>
    %294 = arith.truncf %293 : vector<64x32xf32> to vector<64x32xbf16>
    %cst_102 = arith.constant dense<0.000000e+00> : vector<64x64xf32>
    %295 = tpu.matmul %294, %194, %cst_102 {dimension_numbers = #tpu.dot_dimension_numbers<[1], [0], [0], [1], [0, 0, 1, 1], [], []>} : vector<64x32xbf16>, vector<32x64xbf16>, vector<64x64xf32> -> vector<64x64xf32>
    %296 = vector.broadcast %202 : vector<1x64xf32> to vector<64x64xf32>
    %297 = arith.addf %295, %296 : vector<64x64xf32>
    %cst_103 = arith.constant 5.000000e-01 : f32
    %298 = vector.broadcast %cst_103 : f32 to vector<64x64xf32>
    %299 = arith.mulf %298, %297 : vector<64x64xf32>
    %cst_104 = arith.constant 0.707106769 : f32
    %300 = vector.broadcast %cst_104 : f32 to vector<64x64xf32>
    %301 = arith.mulf %297, %300 : vector<64x64xf32>
    %302 = math.absf %301 : vector<64x64xf32>
    %cst_105 = arith.constant 0.327591091 : f32
    %303 = vector.broadcast %cst_105 : f32 to vector<64x64xf32>
    %304 = arith.mulf %303, %302 : vector<64x64xf32>
    %cst_106 = arith.constant 1.000000e+00 : f32
    %305 = vector.broadcast %cst_106 : f32 to vector<64x64xf32>
    %306 = arith.addf %305, %304 : vector<64x64xf32>
    %cst_107 = arith.constant 1.000000e+00 : f32
    %307 = vector.broadcast %cst_107 : f32 to vector<64x64xf32>
    %308 = arith.divf %307, %306 : vector<64x64xf32>
    %cst_108 = arith.constant 1.06140542 : f32
    %309 = vector.broadcast %cst_108 : f32 to vector<64x64xf32>
    %310 = arith.mulf %309, %308 : vector<64x64xf32>
    %cst_109 = arith.constant -1.45315206 : f32
    %311 = vector.broadcast %cst_109 : f32 to vector<64x64xf32>
    %312 = arith.addf %310, %311 : vector<64x64xf32>
    %313 = arith.mulf %312, %308 : vector<64x64xf32>
    %cst_110 = arith.constant 1.42141378 : f32
    %314 = vector.broadcast %cst_110 : f32 to vector<64x64xf32>
    %315 = arith.addf %313, %314 : vector<64x64xf32>
    %316 = arith.mulf %315, %308 : vector<64x64xf32>
    %cst_111 = arith.constant -0.284496725 : f32
    %317 = vector.broadcast %cst_111 : f32 to vector<64x64xf32>
    %318 = arith.addf %316, %317 : vector<64x64xf32>
    %319 = arith.mulf %318, %308 : vector<64x64xf32>
    %cst_112 = arith.constant 0.254829586 : f32
    %320 = vector.broadcast %cst_112 : f32 to vector<64x64xf32>
    %321 = arith.addf %319, %320 : vector<64x64xf32>
    %322 = arith.mulf %321, %308 : vector<64x64xf32>
    %cst_113 = arith.constant 0.000000e+00 : f32
    %323 = vector.broadcast %cst_113 : f32 to vector<64x64xf32>
    %324 = arith.subf %323, %302 : vector<64x64xf32>
    %325 = arith.mulf %324, %302 : vector<64x64xf32>
    %326 = math.exp %325 : vector<64x64xf32>
    %327 = arith.mulf %322, %326 : vector<64x64xf32>
    %cst_114 = arith.constant 1.000000e+00 : f32
    %328 = vector.broadcast %cst_114 : f32 to vector<64x64xf32>
    %329 = arith.subf %328, %327 : vector<64x64xf32>
    %cst_115 = arith.constant 0.000000e+00 : f32
    %330 = vector.broadcast %cst_115 : f32 to vector<64x64xf32>
    %331 = arith.cmpf olt, %301, %330 : vector<64x64xf32>
    %cst_116 = arith.constant 0.000000e+00 : f32
    %332 = vector.broadcast %cst_116 : f32 to vector<64x64xf32>
    %333 = arith.subf %332, %329 : vector<64x64xf32>
    %334 = arith.select %331, %333, %329 : vector<64x64xi1>, vector<64x64xf32>
    %cst_117 = arith.constant 1.000000e+00 : f32
    %335 = vector.broadcast %cst_117 : f32 to vector<64x64xf32>
    %336 = arith.addf %335, %334 : vector<64x64xf32>
    %337 = arith.mulf %299, %336 : vector<64x64xf32>
    %338 = arith.truncf %337 : vector<64x64xf32> to vector<64x64xbf16>
    %cst_118 = arith.constant dense<0.000000e+00> : vector<64x32xf32>
    %339 = tpu.matmul %338, %195, %cst_118 {dimension_numbers = #tpu.dot_dimension_numbers<[1], [0], [0], [1], [0, 0, 1, 1], [], []>} : vector<64x64xbf16>, vector<64x32xbf16>, vector<64x32xf32> -> vector<64x32xf32>
    %340 = vector.broadcast %203 : vector<1x32xf32> to vector<64x32xf32>
    %341 = arith.addf %339, %340 : vector<64x32xf32>
    %342 = arith.addf %293, %341 : vector<64x32xf32>
    %cst_119 = arith.constant dense<0.000000e+00> : vector<64xf32>
    %343 = vector.multi_reduction <add>, %342, %cst_119 [1] : vector<64x32xf32> to vector<64xf32>
    %344 = vector.shape_cast %343 : vector<64xf32> to vector<64x1xf32>
    %cst_120 = arith.constant 3.200000e+01 : f32
    %345 = vector.broadcast %cst_120 : f32 to vector<64x1xf32>
    %346 = arith.divf %344, %345 : vector<64x1xf32>
    %347 = vector.broadcast %346 : vector<64x1xf32> to vector<64x32xf32>
    %348 = arith.subf %342, %347 : vector<64x32xf32>
    %349 = arith.mulf %348, %348 : vector<64x32xf32>
    %cst_121 = arith.constant dense<0.000000e+00> : vector<64xf32>
    %350 = vector.multi_reduction <add>, %349, %cst_121 [1] : vector<64x32xf32> to vector<64xf32>
    %351 = vector.shape_cast %350 : vector<64xf32> to vector<64x1xf32>
    %cst_122 = arith.constant 3.200000e+01 : f32
    %352 = vector.broadcast %cst_122 : f32 to vector<64x1xf32>
    %353 = arith.divf %351, %352 : vector<64x1xf32>
    %354 = vector.broadcast %346 : vector<64x1xf32> to vector<64x32xf32>
    %355 = arith.subf %342, %354 : vector<64x32xf32>
    %cst_123 = arith.constant 9.99999974E-6 : f32
    %356 = vector.broadcast %cst_123 : f32 to vector<64x1xf32>
    %357 = arith.addf %353, %356 : vector<64x1xf32>
    %358 = math.rsqrt %357 : vector<64x1xf32>
    %359 = vector.broadcast %358 : vector<64x1xf32> to vector<64x32xf32>
    %360 = arith.mulf %355, %359 : vector<64x32xf32>
    %361 = vector.broadcast %204 : vector<1x32xf32> to vector<64x32xf32>
    %362 = arith.mulf %360, %361 : vector<64x32xf32>
    %363 = vector.broadcast %205 : vector<1x32xf32> to vector<64x32xf32>
    %364 = arith.addf %362, %363 : vector<64x32xf32>
    %c480 = arith.constant 480 : index
    %c0_124 = arith.constant 0 : index
    %365 = vector.load %arg3[%c480, %c0_124] : memref<580x64xbf16, #tpu.memory_space<vmem>>, vector<32x64xbf16>
    %c512 = arith.constant 512 : index
    %c0_125 = arith.constant 0 : index
    %366 = vector.load %arg3[%c512, %c0_125] : memref<580x64xbf16, #tpu.memory_space<vmem>>, vector<64x32xbf16>
    %c20 = arith.constant 20 : index
    %c0_126 = arith.constant 0 : index
    %367 = vector.load %arg4[%c20, %c0_126] : memref<26x64xf32, #tpu.memory_space<vmem>>, vector<1x32xf32>
    %c21 = arith.constant 21 : index
    %c0_127 = arith.constant 0 : index
    %368 = vector.load %arg4[%c21, %c0_127] : memref<26x64xf32, #tpu.memory_space<vmem>>, vector<1x32xf32>
    %c22 = arith.constant 22 : index
    %c0_128 = arith.constant 0 : index
    %369 = vector.load %arg4[%c22, %c0_128] : memref<26x64xf32, #tpu.memory_space<vmem>>, vector<1x64xf32>
    %c23 = arith.constant 23 : index
    %c0_129 = arith.constant 0 : index
    %370 = vector.load %arg4[%c23, %c0_129] : memref<26x64xf32, #tpu.memory_space<vmem>>, vector<1x32xf32>
    %c24 = arith.constant 24 : index
    %c0_130 = arith.constant 0 : index
    %371 = vector.load %arg4[%c24, %c0_130] : memref<26x64xf32, #tpu.memory_space<vmem>>, vector<1x32xf32>
    %c25 = arith.constant 25 : index
    %c0_131 = arith.constant 0 : index
    %372 = vector.load %arg4[%c25, %c0_131] : memref<26x64xf32, #tpu.memory_space<vmem>>, vector<1x1xf32>
    %cst_132 = arith.constant dense<0.000000e+00> : vector<64xf32>
    %373 = vector.multi_reduction <add>, %364, %cst_132 [1] : vector<64x32xf32> to vector<64xf32>
    %374 = vector.shape_cast %373 : vector<64xf32> to vector<64x1xf32>
    %cst_133 = arith.constant 3.200000e+01 : f32
    %375 = vector.broadcast %cst_133 : f32 to vector<64x1xf32>
    %376 = arith.divf %374, %375 : vector<64x1xf32>
    %377 = vector.broadcast %376 : vector<64x1xf32> to vector<64x32xf32>
    %378 = arith.subf %364, %377 : vector<64x32xf32>
    %379 = arith.mulf %378, %378 : vector<64x32xf32>
    %cst_134 = arith.constant dense<0.000000e+00> : vector<64xf32>
    %380 = vector.multi_reduction <add>, %379, %cst_134 [1] : vector<64x32xf32> to vector<64xf32>
    %381 = vector.shape_cast %380 : vector<64xf32> to vector<64x1xf32>
    %cst_135 = arith.constant 3.200000e+01 : f32
    %382 = vector.broadcast %cst_135 : f32 to vector<64x1xf32>
    %383 = arith.divf %381, %382 : vector<64x1xf32>
    %384 = vector.broadcast %376 : vector<64x1xf32> to vector<64x32xf32>
    %385 = arith.subf %364, %384 : vector<64x32xf32>
    %cst_136 = arith.constant 9.99999974E-6 : f32
    %386 = vector.broadcast %cst_136 : f32 to vector<64x1xf32>
    %387 = arith.addf %383, %386 : vector<64x1xf32>
    %388 = math.rsqrt %387 : vector<64x1xf32>
    %389 = vector.broadcast %388 : vector<64x1xf32> to vector<64x32xf32>
    %390 = arith.mulf %385, %389 : vector<64x32xf32>
    %391 = vector.broadcast %367 : vector<1x32xf32> to vector<64x32xf32>
    %392 = arith.mulf %390, %391 : vector<64x32xf32>
    %393 = vector.broadcast %368 : vector<1x32xf32> to vector<64x32xf32>
    %394 = arith.addf %392, %393 : vector<64x32xf32>
    %395 = arith.truncf %394 : vector<64x32xf32> to vector<64x32xbf16>
    %cst_137 = arith.constant dense<0.000000e+00> : vector<64x64xf32>
    %396 = tpu.matmul %395, %365, %cst_137 {dimension_numbers = #tpu.dot_dimension_numbers<[1], [0], [0], [1], [0, 0, 1, 1], [], []>} : vector<64x32xbf16>, vector<32x64xbf16>, vector<64x64xf32> -> vector<64x64xf32>
    %397 = vector.broadcast %369 : vector<1x64xf32> to vector<64x64xf32>
    %398 = arith.addf %396, %397 : vector<64x64xf32>
    %cst_138 = arith.constant 0.000000e+00 : f32
    %399 = vector.broadcast %cst_138 : f32 to vector<64x64xf32>
    %400 = arith.maximumf %398, %399 : vector<64x64xf32>
    %401 = arith.truncf %400 : vector<64x64xf32> to vector<64x64xbf16>
    %cst_139 = arith.constant dense<0.000000e+00> : vector<64x32xf32>
    %402 = tpu.matmul %401, %366, %cst_139 {dimension_numbers = #tpu.dot_dimension_numbers<[1], [0], [0], [1], [0, 0, 1, 1], [], []>} : vector<64x64xbf16>, vector<64x32xbf16>, vector<64x32xf32> -> vector<64x32xf32>
    %403 = vector.broadcast %370 : vector<1x32xf32> to vector<64x32xf32>
    %404 = arith.addf %402, %403 : vector<64x32xf32>
    %cst_140 = arith.constant 0.000000e+00 : f32
    %405 = vector.broadcast %cst_140 : f32 to vector<64x32xf32>
    %406 = arith.maximumf %404, %405 : vector<64x32xf32>
    %407 = vector.shape_cast %406 : vector<64x32xf32> to vector<2x32x32xf32>
    %408 = vector.shape_cast %371 : vector<1x32xf32> to vector<1x1x32xf32>
    %409 = vector.broadcast %408 : vector<1x1x32xf32> to vector<2x32x32xf32>
    %410 = arith.mulf %407, %409 : vector<2x32x32xf32>
    %cst_141 = arith.constant dense<0.000000e+00> : vector<2x32xf32>
    %411 = vector.multi_reduction <add>, %410, %cst_141 [2] : vector<2x32x32xf32> to vector<2x32xf32>
    %412 = vector.broadcast %372 : vector<1x1xf32> to vector<2x32xf32>
    %413 = arith.addf %411, %412 : vector<2x32xf32>
    %c0_142 = arith.constant 0 : index
    %c0_143 = arith.constant 0 : index
    %c0_144 = arith.constant 0 : index
    %414 = vector.load %arg5[%c0_142, %c0_143, %c0_144] : memref<1x2x32xf32, #tpu.memory_space<vmem>>, vector<1x2x32xf32>
    %415 = vector.shape_cast %414 : vector<1x2x32xf32> to vector<2x32xf32>
    %416 = vector.shape_cast %413 : vector<2x32xf32> to vector<1x2x32xf32>
    tpu.vector_store %arg5[%c0_142, %c0_143, %c0_144], %416 {strides = array<i32>} : memref<1x2x32xf32, #tpu.memory_space<vmem>>, vector<1x2x32xf32>,
    return
  }
  func.func @transform_0(%arg0: i32) -> (i32, i32, i32) {
    %c0_i32 = arith.constant 0 : i32
    %c0_i32_0 = arith.constant 0 : i32
    %c0_i32_1 = arith.constant 0 : i32
    return %c0_i32, %arg0, %c0_i32_0 : i32, i32, i32
  }
  func.func @transform_1(%arg0: i32) -> (i32, i32, i32) {
    %c0_i32 = arith.constant 0 : i32
    %c0_i32_0 = arith.constant 0 : i32
    %c0_i32_1 = arith.constant 0 : i32
    return %c0_i32, %arg0, %c0_i32_0 : i32, i32, i32
  }
  func.func @transform_2(%arg0: i32) -> (i32, i32) {
    %c0_i32 = arith.constant 0 : i32
    %c0_i32_0 = arith.constant 0 : i32
    %c0_i32_1 = arith.constant 0 : i32
    return %c0_i32, %c0_i32_0 : i32, i32
  }
  func.func @transform_3(%arg0: i32) -> (i32, i32) {
    %c0_i32 = arith.constant 0 : i32
    %c0_i32_0 = arith.constant 0 : i32
    %c0_i32_1 = arith.constant 0 : i32
    return %c0_i32, %c0_i32_0 : i32, i32
  }
  func.func @transform_4(%arg0: i32) -> (i32, i32, i32) {
    %c0_i32 = arith.constant 0 : i32
    %c0_i32_0 = arith.constant 0 : i32
    %c0_i32_1 = arith.constant 0 : i32
    return %arg0, %c0_i32, %c0_i32_0 : i32, i32, i32
  }
}

</mosaic_0001>

<llo_original>
// kernel: transformer_forward.1
$region0: #{transformer_forward.1}
  #allocation0 [shape = 'u32[]', space=smem, size = 0x4, offset = 0x4, fixed_abs, tag = 'smem constant byte address 0x4 - core index']
  #allocation1 [shape = 'u32[144,128]{1,0:T(1,128)}', space=vmem, size = 0x12000, scoped, tag = 'internal scratch']
  %s0 = inlined_call_operand.vmem [shape: f32[2,32,1], index: 0, kind: input, shape index: {}]
  %s1 = inlined_call_operand.vmem [shape: f32[2,32,32], index: 1, kind: input, shape index: {}]
  %s2 = inlined_call_operand.vmem [shape: bf16[580,64], index: 2, kind: input, shape index: {}]
  %s3 = inlined_call_operand.vmem [shape: f32[26,64], index: 3, kind: input, shape index: {}]
  %s4 = inlined_call_operand.vmem [shape: f32[1,2,32], index: 4, kind: output, shape index: {}]
  %s5 = sld [smem:[#allocation0]]
  $region26: #{transformer_forward.1} parent=0
    _
  %s7 = ssub.s32 1, %s5
  %s8 = scalar_select 0, %s7, %s5
  // Predicated region
  $region2: #{transformer_forward.1} parent=0 // pred_check
    _
  $region3: #{transformer_forward.1} parent=0 // pred_check_branch
    %10 = sbr.rel (0) target = $region5
  $region4: #{transformer_forward.1} parent=0 // pred_region
    _
  $region5: #{transformer_forward.1} parent=0 // pred_fallthru
    _
  // Predicated region
  $region6: #{transformer_forward.1} parent=0 // pred_check
    _
  $region7: #{transformer_forward.1} parent=0 // pred_check_branch
    %12 = sbr.rel (0) target = $region9
  $region8: #{transformer_forward.1} parent=0 // pred_region
    _
  $region9: #{transformer_forward.1} parent=0 // pred_fallthru
    _
  // Predicated region
  $region10: #{transformer_forward.1} parent=0 // pred_check
    _
  $region11: #{transformer_forward.1} parent=0 // pred_check_branch
    %14 = sbr.rel (0) target = $region13
  $region12: #{transformer_forward.1} parent=0 // pred_region
    _
  $region13: #{transformer_forward.1} parent=0 // pred_fallthru
    _
  // Predicated region
  $region14: #{transformer_forward.1} parent=0 // pred_check
    _
  $region15: #{transformer_forward.1} parent=0 // pred_check_branch
    %16 = sbr.rel (0) target = $region17
  $region16: #{transformer_forward.1} parent=0 // pred_region
    _
  $region17: #{transformer_forward.1} parent=0 // pred_fallthru
    _
  %v18 = vld [vmem:[%s2] sm:$0xf]
  %v19 = vld [vmem:[%s2 + $0x4] sm:$0xf]
  %v20 = vld [vmem:[%s2 + $0x8] sm:$0xf]
  %v21 = vld [vmem:[%s2 + $0xc] sm:$0xf]
  %v22 = vld [vmem:[%s2 + $0x120] sm:$0x3]
  %v23 = vld [vmem:[%s1] sm:$0xff]
  %v24 = vld [vmem:[%s1 + $0x8] sm:$0xff]
  %v25 = vld [vmem:[%s1 + $0x10] sm:$0xff]
  %v26 = vld [vmem:[%s1 + $0x18] sm:$0xff]
  %v27 = vld [vmem:[%s0] sm:$0xff]
  %v28 = vld [vmem:[%s0 + $0x8] sm:$0xff]
  %v29 = vld [vmem:[%s0 + $0x10] sm:$0xff]
  %v30 = vld [vmem:[%s0 + $0x18] sm:$0xff]
  %32 = vset.pattern.permute.xlu0 0
  %33 = vperm.xlu0 %32, %v27
  %v34 = vpop.permute.xlu0 %33
  %37 = vset.pattern.permute.xlu0 0
  %38 = vperm.xlu0 %37, %v28
  %v39 = vpop.permute.xlu0 %38
  %42 = vset.pattern.permute.xlu0 0
  %43 = vperm.xlu0 %42, %v29
  %v44 = vpop.permute.xlu0 %43
  %47 = vset.pattern.permute.xlu0 0
  %48 = vperm.xlu0 %47, %v30
  %v49 = vpop.permute.xlu0 %48
  %v51 = vadd.f32 %v23, %v34
  %v52 = vadd.f32 %v24, %v39
  %v53 = vadd.f32 %v25, %v44
  %v54 = vadd.f32 %v26, %v49
  %s55 = scalar_lea.vmem %s1, 32
  %v56 = vld [vmem:[%s55] sm:$0xff]
  %v57 = vld [vmem:[%s55 + $0x8] sm:$0xff]
  %v58 = vld [vmem:[%s55 + $0x10] sm:$0xff]
  %v59 = vld [vmem:[%s55 + $0x18] sm:$0xff]
  %s60 = scalar_lea.vmem %s0, 32
  %v61 = vld [vmem:[%s60] sm:$0xff]
  %v62 = vld [vmem:[%s60 + $0x8] sm:$0xff]
  %v63 = vld [vmem:[%s60 + $0x10] sm:$0xff]
  %v64 = vld [vmem:[%s60 + $0x18] sm:$0xff]
  %66 = vset.pattern.permute.xlu0 0
  %67 = vperm.xlu0 %66, %v61
  %v68 = vpop.permute.xlu0 %67
  %71 = vset.pattern.permute.xlu0 0
  %72 = vperm.xlu0 %71, %v62
  %v73 = vpop.permute.xlu0 %72
  %76 = vset.pattern.permute.xlu0 0
  %77 = vperm.xlu0 %76, %v63
  %v78 = vpop.permute.xlu0 %77
  %81 = vset.pattern.permute.xlu0 0
  %82 = vperm.xlu0 %81, %v64
  %v83 = vpop.permute.xlu0 %82
  %v85 = vadd.f32 %v56, %v68
  %v86 = vadd.f32 %v57, %v73
  %v87 = vadd.f32 %v58, %v78
  %v88 = vadd.f32 %v59, %v83
  %v89 = vld [vmem:[%s2 + $0x10] sm:$0xf]
  %v90 = vld [vmem:[%s2 + $0x14] sm:$0xf]
  %v91 = vld [vmem:[%s2 + $0x18] sm:$0xf]
  %v92 = vld [vmem:[%s2 + $0x1c] sm:$0xf]
  %v93 = vld [vmem:[%s2 + $0x20] sm:$0xf]
  %v94 = vld [vmem:[%s2 + $0x24] sm:$0xf]
  %v95 = vld [vmem:[%s2 + $0x28] sm:$0xf]
  %v96 = vld [vmem:[%s2 + $0x2c] sm:$0xf]
  %v97 = vld [vmem:[%s2 + $0x30] sm:$0xf]
  %v98 = vld [vmem:[%s2 + $0x34] sm:$0xf]
  %v99 = vld [vmem:[%s2 + $0x38] sm:$0xf]
  %v100 = vld [vmem:[%s2 + $0x3c] sm:$0xf]
  %v101 = vld [vmem:[%s2 + $0x40] sm:$0xf]
  %v102 = vld [vmem:[%s2 + $0x44] sm:$0xf]
  %v103 = vld [vmem:[%s2 + $0x48] sm:$0xf]
  %v104 = vld [vmem:[%s2 + $0x4c] sm:$0xf]
  %v105 = vld [vmem:[%s2 + $0x50] sm:$0xf]
  %v106 = vld [vmem:[%s2 + $0x54] sm:$0xf]
  %v107 = vld [vmem:[%s2 + $0x58] sm:$0xf]
  %v108 = vld [vmem:[%s2 + $0x5c] sm:$0xf]
  %v109 = vld [vmem:[%s2 + $0x60] sm:$0xf]
  %v110 = vld [vmem:[%s2 + $0x64] sm:$0xf]
  %v111 = vld [vmem:[%s2 + $0x68] sm:$0xf]
  %v112 = vld [vmem:[%s2 + $0x6c] sm:$0xf]
  %v113 = vld [vmem:[%s2 + $0x70] sm:$0xf]
  %v114 = vld [vmem:[%s2 + $0x74] sm:$0xf]
  %v115 = vld [vmem:[%s2 + $0x78] sm:$0xf]
  %v116 = vld [vmem:[%s2 + $0x7c] sm:$0xf]
  %v117 = vld [vmem:[%s3] sm:$0x1]
  %v118 = vld [vmem:[%s3 + $0x1] sm:$0x1]
  %v119 = vld [vmem:[%s3 + $0x2] sm:$0x1]
  %v120 = vld [vmem:[%s3 + $0x3] sm:$0x1]
  %v121 = vld [vmem:[%s3 + $0x4] sm:$0x1]
  %v122 = vld [vmem:[%s3 + $0x5] sm:$0x1]
  %v123 = vld [vmem:[%s3 + $0x6] sm:$0x1]
  %v124 = vld [vmem:[%s3 + $0x7] sm:$0x1]
  %v125 = vld [vmem:[%s3 + $0x8] sm:$0x1]
  %v126 = vld [vmem:[%s3 + $0x9] sm:$0x1]
  %v127 = vpack.c.bf16 %v52, %v51
  %v128 = vpack.c.bf16 %v54, %v53
  %v129 = vpack.c.bf16 %v86, %v85
  %v130 = vpack.c.bf16 %v88, %v87
  %v131 = vlaneseq
  %v132 = vshrl.u32 %v131, 7
  %v133 = vsub.s32 0, %v132
  %v134 = vrot.slane %v117, %v133
  %v139 = vunpack.c.l.b16 %v89
  %v140 = vunpack.c.l.b16 %v90
  %v141 = vunpack.c.l.b16 %v91
  %v142 = vunpack.c.l.b16 %v92
  %v143 = vpack.c.b16 %v140, %v139
  %v144 = vpack.c.b16 %v142, %v141
  %vm147 = vcmask 261120
  %v149 = vsel %vm147, %v127, 0
  %v152 = vsel %vm147, %v128, 0
  %v155 = vsel %vm147, %v129, 0
  %v158 = vsel %vm147, %v130, 0
  %160 = vmatprep.subr.bf16.mxu0 0
  %161 = vmatpush1.bf16.msra.mxu0 %v143
  %162 = vmatprep.subr.bf16.mxu0 0
  %163 = vmatpush1.bf16.msra.mxu0 %v144
  %164 = vmatprep.subr.bf16.mxu0 0
  %165 = vmatpush1.bf16.msra.mxu0 0
  %166 = vmatprep.subr.bf16.mxu0 0
  %167 = vmatpush1.bf16.msra.mxu0 0
  %168 = vmatprep.subr.bf16.mxu0 0
  %169 = vmatpush1.bf16.msra.mxu0 0
  %170 = vmatprep.subr.bf16.mxu0 0
  %171 = vmatpush1.bf16.msra.mxu0 0
  %172 = vmatprep.subr.bf16.mxu0 0
  %173 = vmatpush1.bf16.msra.mxu0 0
  %174 = vmatprep.subr.bf16.mxu0 0
  %175 = vmatpush1.bf16.msra.mxu0 0
  %176 = vmatprep.subr.bf16.mxu0 0
  %177 = vmatpush1.bf16.msra.mxu0 0
  %178 = vmatprep.subr.bf16.mxu0 0
  %179 = vmatpush1.bf16.msra.mxu0 0
  %180 = vmatprep.subr.bf16.mxu0 0
  %181 = vmatpush1.bf16.msra.mxu0 0
  %182 = vmatprep.subr.bf16.mxu0 0
  %183 = vmatpush1.bf16.msra.mxu0 0
  %184 = vmatprep.subr.bf16.mxu0 0
  %185 = vmatpush1.bf16.msra.mxu0 0
  %186 = vmatprep.subr.bf16.mxu0 0
  %187 = vmatpush1.bf16.msra.mxu0 0
  %188 = vmatprep.subr.bf16.mxu0 0
  %189 = vmatpush1.bf16.msra.mxu0 0
  %190 = vmatprep.subr.bf16.mxu0 0
  %191 = vmatpush1.bf16.msra.mxu0 0
  %192 = vmatprep.mubr.bf16.mxu0 0
  %193 = vmatmul.mubr.bf16.gmra.mrb[0].mxu0 %v149
  %v194 = vpop.f32.mrb[0].mxu0
  %v195 = vadd.f32 %v134, %v194
  %v196 = vpop.f32.mrb[0].mxu0
  %v197 = vpop.f32.mrb[0].mxu0
  %v198 = vadd.f32 %v134, %v197
  %v199 = vpop.f32.mrb[0].mxu0
  %200 = vmatprep.mubr.bf16.mxu0 0
  %201 = vmatmul.mubr.bf16.gmra.mrb[0].mxu0 %v152
  %v202 = vpop.f32.mrb[0].mxu0
  %v203 = vadd.f32 %v134, %v202
  %v204 = vpop.f32.mrb[0].mxu0
  %v205 = vpop.f32.mrb[0].mxu0
  %v206 = vadd.f32 %v134, %v205
  %v207 = vpop.f32.mrb[0].mxu0
  %208 = vmatprep.mubr.bf16.mxu0 0
  %209 = vmatmul.mubr.bf16.gmra.mrb[0].mxu0 %v155
  %v210 = vpop.f32.mrb[0].mxu0
  %v211 = vadd.f32 %v134, %v210
  %v212 = vpop.f32.mrb[0].mxu0
  %v213 = vpop.f32.mrb[0].mxu0
  %v214 = vadd.f32 %v134, %v213
  %v215 = vpop.f32.mrb[0].mxu0
  %216 = vmatprep.mubr.bf16.mxu0 0
  %217 = vmatmul.mubr.bf16.gmra.mrb[0].mxu0 %v158
  %v218 = vpop.f32.mrb[0].mxu0
  %v219 = vadd.f32 %v134, %v218
  %v220 = vpop.f32.mrb[0].mxu0
  %v221 = vpop.f32.mrb[0].mxu0
  %v222 = vadd.f32 %v134, %v221
  %v223 = vpop.f32.mrb[0].mxu0
  %224 = vdwg.mxu0
  %v225 = vlaneseq
  %v226 = vshrl.u32 %v225, 7
  %v227 = vsub.s32 0, %v226
  %v228 = vrot.slane %v118, %v227
  %v233 = vunpack.c.l.b16 %v93
  %v234 = vunpack.c.l.b16 %v94
  %v235 = vunpack.c.l.b16 %v95
  %v236 = vunpack.c.l.b16 %v96
  %v237 = vpack.c.b16 %v234, %v233
  %v238 = vpack.c.b16 %v236, %v235
  %241 = vmatprep.subr.bf16.mxu0 0
  %242 = vmatpush1.bf16.msra.mxu0 %v237
  %243 = vmatprep.subr.bf16.mxu0 0
  %244 = vmatpush1.bf16.msra.mxu0 %v238
  %245 = vmatprep.subr.bf16.mxu0 0
  %246 = vmatpush1.bf16.msra.mxu0 0
  %247 = vmatprep.subr.bf16.mxu0 0
  %248 = vmatpush1.bf16.msra.mxu0 0
  %249 = vmatprep.subr.bf16.mxu0 0
  %250 = vmatpush1.bf16.msra.mxu0 0
  %251 = vmatprep.subr.bf16.mxu0 0
  %252 = vmatpush1.bf16.msra.mxu0 0
  %253 = vmatprep.subr.bf16.mxu0 0
  %254 = vmatpush1.bf16.msra.mxu0 0
  %255 = vmatprep.subr.bf16.mxu0 0
  %256 = vmatpush1.bf16.msra.mxu0 0
  %257 = vmatprep.subr.bf16.mxu0 0
  %258 = vmatpush1.bf16.msra.mxu0 0
  %259 = vmatprep.subr.bf16.mxu0 0
  %260 = vmatpush1.bf16.msra.mxu0 0
  %261 = vmatprep.subr.bf16.mxu0 0
  %262 = vmatpush1.bf16.msra.mxu0 0
  %263 = vmatprep.subr.bf16.mxu0 0
  %264 = vmatpush1.bf16.msra.mxu0 0
  %265 = vmatprep.subr.bf16.mxu0 0
  %266 = vmatpush1.bf16.msra.mxu0 0
  %267 = vmatprep.subr.bf16.mxu0 0
  %268 = vmatpush1.bf16.msra.mxu0 0
  %269 = vmatprep.subr.bf16.mxu0 0
  %270 = vmatpush1.bf16.msra.mxu0 0
  %271 = vmatprep.subr.bf16.mxu0 0
  %272 = vmatpush1.bf16.msra.mxu0 0
  %273 = vmatprep.mubr.bf16.mxu0 0
  %274 = vmatmul.mubr.bf16.gmra.mrb[0].mxu0 %v149
  %v275 = vpop.f32.mrb[0].mxu0
  %v276 = vadd.f32 %v228, %v275
  %v277 = vpop.f32.mrb[0].mxu0
  %v278 = vpop.f32.mrb[0].mxu0
  %v279 = vadd.f32 %v228, %v278
  %v280 = vpop.f32.mrb[0].mxu0
  %281 = vmatprep.mubr.bf16.mxu0 0
  %282 = vmatmul.mubr.bf16.gmra.mrb[0].mxu0 %v152
  %v283 = vpop.f32.mrb[0].mxu0
  %v284 = vadd.f32 %v228, %v283
  %v285 = vpop.f32.mrb[0].mxu0
  %v286 = vpop.f32.mrb[0].mxu0
  %v287 = vadd.f32 %v228, %v286
  %v288 = vpop.f32.mrb[0].mxu0
  %289 = vmatprep.mubr.bf16.mxu0 0
  %290 = vmatmul.mubr.bf16.gmra.mrb[0].mxu0 %v155
  %v291 = vpop.f32.mrb[0].mxu0
  %v292 = vadd.f32 %v228, %v291
  %v293 = vpop.f32.mrb[0].mxu0
  %v294 = vpop.f32.mrb[0].mxu0
  %v295 = vadd.f32 %v228, %v294
  %v296 = vpop.f32.mrb[0].mxu0
  %297 = vmatprep.mubr.bf16.mxu0 0
  %298 = vmatmul.mubr.bf16.gmra.mrb[0].mxu0 %v158
  %v299 = vpop.f32.mrb[0].mxu0
  %v300 = vadd.f32 %v228, %v299
  %v301 = vpop.f32.mrb[0].mxu0
  %v302 = vpop.f32.mrb[0].mxu0
  %v303 = vadd.f32 %v228, %v302
  %v304 = vpop.f32.mrb[0].mxu0
  %305 = vdwg.mxu0
  %v306 = vlaneseq
  %v307 = vshrl.u32 %v306, 7
  %v308 = vsub.s32 0, %v307
  %v309 = vrot.slane %v119, %v308
  %v314 = vunpack.c.l.b16 %v97
  %v315 = vunpack.c.l.b16 %v98
  %v316 = vunpack.c.l.b16 %v99
  %v317 = vunpack.c.l.b16 %v100
  %v318 = vpack.c.b16 %v315, %v314
  %v319 = vpack.c.b16 %v317, %v316
  %322 = vmatprep.subr.bf16.mxu0 0
  %323 = vmatpush1.bf16.msra.mxu0 %v318
  %324 = vmatprep.subr.bf16.mxu0 0
  %325 = vmatpush1.bf16.msra.mxu0 %v319
  %326 = vmatprep.subr.bf16.mxu0 0
  %327 = vmatpush1.bf16.msra.mxu0 0
  %328 = vmatprep.subr.bf16.mxu0 0
  %329 = vmatpush1.bf16.msra.mxu0 0
  %330 = vmatprep.subr.bf16.mxu0 0
  %331 = vmatpush1.bf16.msra.mxu0 0
  %332 = vmatprep.subr.bf16.mxu0 0
  %333 = vmatpush1.bf16.msra.mxu0 0
  %334 = vmatprep.subr.bf16.mxu0 0
  %335 = vmatpush1.bf16.msra.mxu0 0
  %336 = vmatprep.subr.bf16.mxu0 0
  %337 = vmatpush1.bf16.msra.mxu0 0
  %338 = vmatprep.subr.bf16.mxu0 0
  %339 = vmatpush1.bf16.msra.mxu0 0
  %340 = vmatprep.subr.bf16.mxu0 0
  %341 = vmatpush1.bf16.msra.mxu0 0
  %342 = vmatprep.subr.bf16.mxu0 0
  %343 = vmatpush1.bf16.msra.mxu0 0
  %344 = vmatprep.subr.bf16.mxu0 0
  %345 = vmatpush1.bf16.msra.mxu0 0
  %346 = vmatprep.subr.bf16.mxu0 0
  %347 = vmatpush1.bf16.msra.mxu0 0
  %348 = vmatprep.subr.bf16.mxu0 0
  %349 = vmatpush1.bf16.msra.mxu0 0
  %350 = vmatprep.subr.bf16.mxu0 0
  %351 = vmatpush1.bf16.msra.mxu0 0
  %352 = vmatprep.subr.bf16.mxu0 0
  %353 = vmatpush1.bf16.msra.mxu0 0
  %354 = vmatprep.mubr.bf16.mxu0 0
  %355 = vmatmul.mubr.bf16.gmra.mrb[0].mxu0 %v149
  %v356 = vpop.f32.mrb[0].mxu0
  %v357 = vadd.f32 %v309, %v356
  %v358 = vpop.f32.mrb[0].mxu0
  %v359 = vpop.f32.mrb[0].mxu0
  %v360 = vadd.f32 %v309, %v359
  %v361 = vpop.f32.mrb[0].mxu0
  %362 = vmatprep.mubr.bf16.mxu0 0
  %363 = vmatmul.mubr.bf16.gmra.mrb[0].mxu0 %v152
  %v364 = vpop.f32.mrb[0].mxu0
  %v365 = vadd.f32 %v309, %v364
  %v366 = vpop.f32.mrb[0].mxu0
  %v367 = vpop.f32.mrb[0].mxu0
  %v368 = vadd.f32 %v309, %v367
  %v369 = vpop.f32.mrb[0].mxu0
  %370 = vmatprep.mubr.bf16.mxu0 0
  %371 = vmatmul.mubr.bf16.gmra.mrb[0].mxu0 %v155
  %v372 = vpop.f32.mrb[0].mxu0
  %v373 = vadd.f32 %v309, %v372
  %v374 = vpop.f32.mrb[0].mxu0
  %v375 = vpop.f32.mrb[0].mxu0
  %v376 = vadd.f32 %v309, %v375
  %v377 = vpop.f32.mrb[0].mxu0
  %378 = vmatprep.mubr.bf16.mxu0 0
  %379 = vmatmul.mubr.bf16.gmra.mrb[0].mxu0 %v158
  %v380 = vpop.f32.mrb[0].mxu0
  %v381 = vadd.f32 %v309, %v380
  %v382 = vpop.f32.mrb[0].mxu0
  %v383 = vpop.f32.mrb[0].mxu0
  %v384 = vadd.f32 %v309, %v383
  %v385 = vpop.f32.mrb[0].mxu0
  %386 = vdwg.mxu0
  %v387 = vmul.f32 %v195, %v276
  %v388 = vmul.f32 %v198, %v279
  %v389 = vmul.f32 %v203, %v284
  %v390 = vmul.f32 %v206, %v287
  %v391 = vpack.c.bf16 %v388, %v387
  %v392 = vpack.c.bf16 %v390, %v389
  %v397 = vunpack.c.l.b16 %v18
  %v398 = vunpack.c.l.b16 %v19
  %v399 = vunpack.c.l.b16 %v20
  %v400 = vunpack.c.l.b16 %v21
  %v401 = vpack.c.b16 %v398, %v397
  %v402 = vpack.c.b16 %v400, %v399
  %v406 = vsel %vm147, %v391, 0
  %v409 = vsel %vm147, %v392, 0
  %411 = vmatprep.subr.bf16.mxu0 0
  %412 = vmatpush1.bf16.msra.mxu0 %v401
  %413 = vmatprep.subr.bf16.mxu0 0
  %414 = vmatpush1.bf16.msra.mxu0 %v402
  %415 = vmatprep.subr.bf16.mxu0 0
  %416 = vmatpush1.bf16.msra.mxu0 0
  %417 = vmatprep.subr.bf16.mxu0 0
  %418 = vmatpush1.bf16.msra.mxu0 0
  %419 = vmatprep.subr.bf16.mxu0 0
  %420 = vmatpush1.bf16.msra.mxu0 0
  %421 = vmatprep.subr.bf16.mxu0 0
  %422 = vmatpush1.bf16.msra.mxu0 0
  %423 = vmatprep.subr.bf16.mxu0 0
  %424 = vmatpush1.bf16.msra.mxu0 0
  %425 = vmatprep.subr.bf16.mxu0 0
  %426 = vmatpush1.bf16.msra.mxu0 0
  %427 = vmatprep.subr.bf16.mxu0 0
  %428 = vmatpush1.bf16.msra.mxu0 0
  %429 = vmatprep.subr.bf16.mxu0 0
  %430 = vmatpush1.bf16.msra.mxu0 0
  %431 = vmatprep.subr.bf16.mxu0 0
  %432 = vmatpush1.bf16.msra.mxu0 0
  %433 = vmatprep.subr.bf16.mxu0 0
  %434 = vmatpush1.bf16.msra.mxu0 0
  %435 = vmatprep.subr.bf16.mxu0 0
  %436 = vmatpush1.bf16.msra.mxu0 0
  %437 = vmatprep.subr.bf16.mxu0 0
  %438 = vmatpush1.bf16.msra.mxu0 0
  %439 = vmatprep.subr.bf16.mxu0 0
  %440 = vmatpush1.bf16.msra.mxu0 0
  %441 = vmatprep.subr.bf16.mxu0 0
  %442 = vmatpush1.bf16.msra.mxu0 0
  %443 = vmatprep.mubr.bf16.mxu0 0
  %444 = vmatmul.mubr.bf16.gmra.mrb[0].mxu0 %v406
  %v445 = vpop.f32.mrb[0].mxu0
  %v446 = vadd.f32 0.0, %v445
  %v447 = vpop.f32.mrb[0].mxu0
  %v448 = vpop.f32.mrb[0].mxu0
  %v449 = vadd.f32 0.0, %v448
  %v450 = vpop.f32.mrb[0].mxu0
  %451 = vmatprep.mubr.bf16.mxu0 0
  %452 = vmatmul.mubr.bf16.gmra.mrb[0].mxu0 %v409
  %v453 = vpop.f32.mrb[0].mxu0
  %v454 = vadd.f32 0.0, %v453
  %v455 = vpop.f32.mrb[0].mxu0
  %v456 = vpop.f32.mrb[0].mxu0
  %v457 = vadd.f32 0.0, %v456
  %v458 = vpop.f32.mrb[0].mxu0
  %459 = vdwg.mxu0
  %v460 = vmul.f32 %v195, %v292
  %v461 = vmul.f32 %v198, %v295
  %v462 = vmul.f32 %v203, %v300
  %v463 = vmul.f32 %v206, %v303
  %v464 = vpack.c.bf16 %v461, %v460
  %v465 = vpack.c.bf16 %v463, %v462
  %v467 = vsel %vm147, %v464, 0
  %v470 = vsel %vm147, %v465, 0
  %472 = vmatprep.subr.bf16.mxu0 0
  %473 = vmatpush1.bf16.msra.mxu0 %v401
  %474 = vmatprep.subr.bf16.mxu0 0
  %475 = vmatpush1.bf16.msra.mxu0 %v402
  %476 = vmatprep.subr.bf16.mxu0 0
  %477 = vmatpush1.bf16.msra.mxu0 0
  %478 = vmatprep.subr.bf16.mxu0 0
  %479 = vmatpush1.bf16.msra.mxu0 0
  %480 = vmatprep.subr.bf16.mxu0 0
  %481 = vmatpush1.bf16.msra.mxu0 0
  %482 = vmatprep.subr.bf16.mxu0 0
  %483 = vmatpush1.bf16.msra.mxu0 0
  %484 = vmatprep.subr.bf16.mxu0 0
  %485 = vmatpush1.bf16.msra.mxu0 0
  %486 = vmatprep.subr.bf16.mxu0 0
  %487 = vmatpush1.bf16.msra.mxu0 0
  %488 = vmatprep.subr.bf16.mxu0 0
  %489 = vmatpush1.bf16.msra.mxu0 0
  %490 = vmatprep.subr.bf16.mxu0 0
  %491 = vmatpush1.bf16.msra.mxu0 0
  %492 = vmatprep.subr.bf16.mxu0 0
  %493 = vmatpush1.bf16.msra.mxu0 0
  %494 = vmatprep.subr.bf16.mxu0 0
  %495 = vmatpush1.bf16.msra.mxu0 0
  %496 = vmatprep.subr.bf16.mxu0 0
  %497 = vmatpush1.bf16.msra.mxu0 0
  %498 = vmatprep.subr.bf16.mxu0 0
  %499 = vmatpush1.bf16.msra.mxu0 0
  %500 = vmatprep.subr.bf16.mxu0 0
  %501 = vmatpush1.bf16.msra.mxu0 0
  %502 = vmatprep.subr.bf16.mxu0 0
  %503 = vmatpush1.bf16.msra.mxu0 0
  %504 = vmatprep.mubr.bf16.mxu0 0
  %505 = vmatmul.mubr.bf16.gmra.mrb[0].mxu0 %v467
  %v506 = vpop.f32.mrb[0].mxu0
  %v507 = vadd.f32 0.0, %v506
  %v508 = vpop.f32.mrb[0].mxu0
  %v509 = vpop.f32.mrb[0].mxu0
  %v510 = vadd.f32 0.0, %v509
  %v511 = vpop.f32.mrb[0].mxu0
  %512 = vmatprep.mubr.bf16.mxu0 0
  %513 = vmatmul.mubr.bf16.gmra.mrb[0].mxu0 %v470
  %v514 = vpop.f32.mrb[0].mxu0
  %v515 = vadd.f32 0.0, %v514
  %v516 = vpop.f32.mrb[0].mxu0
  %v517 = vpop.f32.mrb[0].mxu0
  %v518 = vadd.f32 0.0, %v517
  %v519 = vpop.f32.mrb[0].mxu0
  %520 = vdwg.mxu0
  %v521 = vmax.f32 %v446, %v507
  %v522 = vmax.f32 %v449, %v510
  %v523 = vmax.f32 %v454, %v515
  %v524 = vmax.f32 %v457, %v518
  %v525 = vsub.f32 %v446, %v521
  %v526 = vsub.f32 %v449, %v522
  %v527 = vsub.f32 %v454, %v523
  %v528 = vsub.f32 %v457, %v524
  %v529 = vmul.f32 %v525, 1.442695
  %v530 = vpow.pop %v529
  %v531 = vmul.f32 %v526, 1.442695
  %v532 = vpow.pop %v531
  %v533 = vmul.f32 %v527, 1.442695
  %v534 = vpow.pop %v533
  %v535 = vmul.f32 %v528, 1.442695
  %v536 = vpow.pop %v535
  %v537 = vsub.f32 %v507, %v521
  %v538 = vsub.f32 %v510, %v522
  %v539 = vsub.f32 %v515, %v523
  %v540 = vsub.f32 %v518, %v524
  %v541 = vmul.f32 %v537, 1.442695
  %v542 = vpow.pop %v541
  %v543 = vmul.f32 %v538, 1.442695
  %v544 = vpow.pop %v543
  %v545 = vmul.f32 %v539, 1.442695
  %v546 = vpow.pop %v545
  %v547 = vmul.f32 %v540, 1.442695
  %v548 = vpow.pop %v547
  %v549 = vadd.f32 %v530, %v542
  %v550 = vadd.f32 %v532, %v544
  %v551 = vadd.f32 %v534, %v546
  %v552 = vadd.f32 %v536, %v548
  %v553 = vrcp.pop %v549
  %v554 = vrcp.pop %v550
  %v555 = vrcp.pop %v551
  %v556 = vrcp.pop %v552
  %v557 = vmul.f32 %v530, %v553
  %v558 = vmul.f32 %v532, %v554
  %v559 = vmul.f32 %v534, %v555
  %v560 = vmul.f32 %v536, %v556
  %v561 = vpack.c.bf16 %v558, %v557
  %v562 = vpack.c.bf16 %v560, %v559
  %vm563 = vcmask 31744
  %v565 = vsel %vm563, %v561, 0
  %v568 = vsel %vm563, %v562, 0
  %vm570 = vcmask 1041408
  %v572 = vsel %vm570, %v22, 0
  %574 = vmatprep.subr.bf16.mxu0 0
  %575 = vmatpush1.bf16.msra.mxu0 %v572
  %576 = vmatprep.subr.bf16.mxu0 0
  %577 = vmatpush1.bf16.msra.mxu0 0
  %578 = vmatprep.subr.bf16.mxu0 0
  %579 = vmatpush1.bf16.msra.mxu0 0
  %580 = vmatprep.subr.bf16.mxu0 0
  %581 = vmatpush1.bf16.msra.mxu0 0
  %582 = vmatprep.subr.bf16.mxu0 0
  %583 = vmatpush1.bf16.msra.mxu0 0
  %584 = vmatprep.subr.bf16.mxu0 0
  %585 = vmatpush1.bf16.msra.mxu0 0
  %586 = vmatprep.subr.bf16.mxu0 0
  %587 = vmatpush1.bf16.msra.mxu0 0
  %588 = vmatprep.subr.bf16.mxu0 0
  %589 = vmatpush1.bf16.msra.mxu0 0
  %590 = vmatprep.subr.bf16.mxu0 0
  %591 = vmatpush1.bf16.msra.mxu0 0
  %592 = vmatprep.subr.bf16.mxu0 0
  %593 = vmatpush1.bf16.msra.mxu0 0
  %594 = vmatprep.subr.bf16.mxu0 0
  %595 = vmatpush1.bf16.msra.mxu0 0
  %596 = vmatprep.subr.bf16.mxu0 0
  %597 = vmatpush1.bf16.msra.mxu0 0
  %598 = vmatprep.subr.bf16.mxu0 0
  %599 = vmatpush1.bf16.msra.mxu0 0
  %600 = vmatprep.subr.bf16.mxu0 0
  %601 = vmatpush1.bf16.msra.mxu0 0
  %602 = vmatprep.subr.bf16.mxu0 0
  %603 = vmatpush1.bf16.msra.mxu0 0
  %604 = vmatprep.subr.bf16.mxu0 0
  %605 = vmatpush1.bf16.msra.mxu0 0
  %606 = vmatprep.mubr.bf16.mxu0 0
  %607 = vmatmul.mubr.bf16.gmra.mrb[0].mxu0 %v565
  %v608 = vpop.f32.mrb[0].mxu0
  %v609 = vadd.f32 0.0, %v608
  %v610 = vpop.f32.mrb[0].mxu0
  %v611 = vpop.f32.mrb[0].mxu0
  %v612 = vadd.f32 0.0, %v611
  %v613 = vpop.f32.mrb[0].mxu0
  %614 = vmatprep.mubr.bf16.mxu0 0
  %615 = vmatmul.mubr.bf16.gmra.mrb[0].mxu0 %v568
  %v616 = vpop.f32.mrb[0].mxu0
  %v617 = vadd.f32 0.0, %v616
  %v618 = vpop.f32.mrb[0].mxu0
  %v619 = vpop.f32.mrb[0].mxu0
  %v620 = vadd.f32 0.0, %v619
  %v621 = vpop.f32.mrb[0].mxu0
  %622 = vdwg.mxu0
  %v623 = vmul.f32 %v609, %v357
  %v624 = vmul.f32 %v612, %v360
  %v625 = vmul.f32 %v617, %v365
  %v626 = vmul.f32 %v620, %v368
  %v627 = vmul.f32 %v542, %v553
  %v628 = vmul.f32 %v544, %v554
  %v629 = vmul.f32 %v546, %v555
  %v630 = vmul.f32 %v548, %v556
  %v631 = vpack.c.bf16 %v628, %v627
  %v632 = vpack.c.bf16 %v630, %v629
  %v634 = vsel %vm563, %v631, 0
  %v637 = vsel %vm563, %v632, 0
  %639 = vmatprep.subr.bf16.mxu0 0
  %640 = vmatpush1.bf16.msra.mxu0 %v572
  %641 = vmatprep.subr.bf16.mxu0 0
  %642 = vmatpush1.bf16.msra.mxu0 0
  %643 = vmatprep.subr.bf16.mxu0 0
  %644 = vmatpush1.bf16.msra.mxu0 0
  %645 = vmatprep.subr.bf16.mxu0 0
  %646 = vmatpush1.bf16.msra.mxu0 0
  %647 = vmatprep.subr.bf16.mxu0 0
  %648 = vmatpush1.bf16.msra.mxu0 0
  %649 = vmatprep.subr.bf16.mxu0 0
  %650 = vmatpush1.bf16.msra.mxu0 0
  %651 = vmatprep.subr.bf16.mxu0 0
  %652 = vmatpush1.bf16.msra.mxu0 0
  %653 = vmatprep.subr.bf16.mxu0 0
  %654 = vmatpush1.bf16.msra.mxu0 0
  %655 = vmatprep.subr.bf16.mxu0 0
  %656 = vmatpush1.bf16.msra.mxu0 0
  %657 = vmatprep.subr.bf16.mxu0 0
  %658 = vmatpush1.bf16.msra.mxu0 0
  %659 = vmatprep.subr.bf16.mxu0 0
  %660 = vmatpush1.bf16.msra.mxu0 0
  %661 = vmatprep.subr.bf16.mxu0 0
  %662 = vmatpush1.bf16.msra.mxu0 0
  %663 = vmatprep.subr.bf16.mxu0 0
  %664 = vmatpush1.bf16.msra.mxu0 0
  %665 = vmatprep.subr.bf16.mxu0 0
  %666 = vmatpush1.bf16.msra.mxu0 0
  %667 = vmatprep.subr.bf16.mxu0 0
  %668 = vmatpush1.bf16.msra.mxu0 0
  %669 = vmatprep.subr.bf16.mxu0 0
  %670 = vmatpush1.bf16.msra.mxu0 0
  %671 = vmatprep.mubr.bf16.mxu0 0
  %672 = vmatmul.mubr.bf16.gmra.mrb[0].mxu0 %v634
  %v673 = vpop.f32.mrb[0].mxu0
  %v674 = vadd.f32 0.0, %v673
  %v675 = vpop.f32.mrb[0].mxu0
  %v676 = vpop.f32.mrb[0].mxu0
  %v677 = vadd.f32 0.0, %v676
  %v678 = vpop.f32.mrb[0].mxu0
  %679 = vmatprep.mubr.bf16.mxu0 0
  %680 = vmatmul.mubr.bf16.gmra.mrb[0].mxu0 %v637
  %v681 = vpop.f32.mrb[0].mxu0
  %v682 = vadd.f32 0.0, %v681
  %v683 = vpop.f32.mrb[0].mxu0
  %v684 = vpop.f32.mrb[0].mxu0
  %v685 = vadd.f32 0.0, %v684
  %v686 = vpop.f32.mrb[0].mxu0
  %687 = vdwg.mxu0
  %v688 = vmul.f32 %v674, %v373
  %v689 = vmul.f32 %v677, %v376
  %v690 = vmul.f32 %v682, %v381
  %v691 = vmul.f32 %v685, %v384
  %v692 = vadd.f32 %v623, %v688
  %v693 = vadd.f32 %v624, %v689
  %v694 = vadd.f32 %v625, %v690
  %v695 = vadd.f32 %v626, %v691
  %v696 = vmul.f32 %v211, %v276
  %v697 = vmul.f32 %v214, %v279
  %v698 = vmul.f32 %v219, %v284
  %v699 = vmul.f32 %v222, %v287
  %v700 = vpack.c.bf16 %v697, %v696
  %v701 = vpack.c.bf16 %v699, %v698
  %v703 = vsel %vm147, %v700, 0
  %v706 = vsel %vm147, %v701, 0
  %708 = vmatprep.subr.bf16.mxu0 0
  %709 = vmatpush1.bf16.msra.mxu0 %v401
  %710 = vmatprep.subr.bf16.mxu0 0
  %711 = vmatpush1.bf16.msra.mxu0 %v402
  %712 = vmatprep.subr.bf16.mxu0 0
  %713 = vmatpush1.bf16.msra.mxu0 0
  %714 = vmatprep.subr.bf16.mxu0 0
  %715 = vmatpush1.bf16.msra.mxu0 0
  %716 = vmatprep.subr.bf16.mxu0 0
  %717 = vmatpush1.bf16.msra.mxu0 0
  %718 = vmatprep.subr.bf16.mxu0 0
  %719 = vmatpush1.bf16.msra.mxu0 0
  %720 = vmatprep.subr.bf16.mxu0 0
  %721 = vmatpush1.bf16.msra.mxu0 0
  %722 = vmatprep.subr.bf16.mxu0 0
  %723 = vmatpush1.bf16.msra.mxu0 0
  %724 = vmatprep.subr.bf16.mxu0 0
  %725 = vmatpush1.bf16.msra.mxu0 0
  %726 = vmatprep.subr.bf16.mxu0 0
  %727 = vmatpush1.bf16.msra.mxu0 0
  %728 = vmatprep.subr.bf16.mxu0 0
  %729 = vmatpush1.bf16.msra.mxu0 0
  %730 = vmatprep.subr.bf16.mxu0 0
  %731 = vmatpush1.bf16.msra.mxu0 0
  %732 = vmatprep.subr.bf16.mxu0 0
  %733 = vmatpush1.bf16.msra.mxu0 0
  %734 = vmatprep.subr.bf16.mxu0 0
  %735 = vmatpush1.bf16.msra.mxu0 0
  %736 = vmatprep.subr.bf16.mxu0 0
  %737 = vmatpush1.bf16.msra.mxu0 0
  %738 = vmatprep.subr.bf16.mxu0 0
  %739 = vmatpush1.bf16.msra.mxu0 0
  %740 = vmatprep.mubr.bf16.mxu0 0
  %741 = vmatmul.mubr.bf16.gmra.mrb[0].mxu0 %v703
  %v742 = vpop.f32.mrb[0].mxu0
  %v743 = vadd.f32 0.0, %v742
  %v744 = vpop.f32.mrb[0].mxu0
  %v745 = vpop.f32.mrb[0].mxu0
  %v746 = vadd.f32 0.0, %v745
  %v747 = vpop.f32.mrb[0].mxu0
  %748 = vmatprep.mubr.bf16.mxu0 0
  %749 = vmatmul.mubr.bf16.gmra.mrb[0].mxu0 %v706
  %v750 = vpop.f32.mrb[0].mxu0
  %v751 = vadd.f32 0.0, %v750
  %v752 = vpop.f32.mrb[0].mxu0
  %v753 = vpop.f32.mrb[0].mxu0
  %v754 = vadd.f32 0.0, %v753
  %v755 = vpop.f32.mrb[0].mxu0
  %756 = vdwg.mxu0
  %v757 = vmul.f32 %v211, %v292
  %v758 = vmul.f32 %v214, %v295
  %v759 = vmul.f32 %v219, %v300
  %v760 = vmul.f32 %v222, %v303
  %v761 = vpack.c.bf16 %v758, %v757
  %v762 = vpack.c.bf16 %v760, %v759
  %v764 = vsel %vm147, %v761, 0
  %v767 = vsel %vm147, %v762, 0
  %769 = vmatprep.subr.bf16.mxu0 0
  %770 = vmatpush1.bf16.msra.mxu0 %v401
  %771 = vmatprep.subr.bf16.mxu0 0
  %772 = vmatpush1.bf16.msra.mxu0 %v402
  %773 = vmatprep.subr.bf16.mxu0 0
  %774 = vmatpush1.bf16.msra.mxu0 0
  %775 = vmatprep.subr.bf16.mxu0 0
  %776 = vmatpush1.bf16.msra.mxu0 0
  %777 = vmatprep.subr.bf16.mxu0 0
  %778 = vmatpush1.bf16.msra.mxu0 0
  %779 = vmatprep.subr.bf16.mxu0 0
  %780 = vmatpush1.bf16.msra.mxu0 0
  %781 = vmatprep.subr.bf16.mxu0 0
  %782 = vmatpush1.bf16.msra.mxu0 0
  %783 = vmatprep.subr.bf16.mxu0 0
  %784 = vmatpush1.bf16.msra.mxu0 0
  %785 = vmatprep.subr.bf16.mxu0 0
  %786 = vmatpush1.bf16.msra.mxu0 0
  %787 = vmatprep.subr.bf16.mxu0 0
  %788 = vmatpush1.bf16.msra.mxu0 0
  %789 = vmatprep.subr.bf16.mxu0 0
  %790 = vmatpush1.bf16.msra.mxu0 0
  %791 = vmatprep.subr.bf16.mxu0 0
  %792 = vmatpush1.bf16.msra.mxu0 0
  %793 = vmatprep.subr.bf16.mxu0 0
  %794 = vmatpush1.bf16.msra.mxu0 0
  %795 = vmatprep.subr.bf16.mxu0 0
  %796 = vmatpush1.bf16.msra.mxu0 0
  %797 = vmatprep.subr.bf16.mxu0 0
  %798 = vmatpush1.bf16.msra.mxu0 0
  %799 = vmatprep.subr.bf16.mxu0 0
  %800 = vmatpush1.bf16.msra.mxu0 0
  %801 = vmatprep.mubr.bf16.mxu0 0
  %802 = vmatmul.mubr.bf16.gmra.mrb[0].mxu0 %v764
  %v803 = vpop.f32.mrb[0].mxu0
  %v804 = vadd.f32 0.0, %v803
  %v805 = vpop.f32.mrb[0].mxu0
  %v806 = vpop.f32.mrb[0].mxu0
  %v807 = vadd.f32 0.0, %v806
  %v808 = vpop.f32.mrb[0].mxu0
  %809 = vmatprep.mubr.bf16.mxu0 0
  %810 = vmatmul.mubr.bf16.gmra.mrb[0].mxu0 %v767
  %v811 = vpop.f32.mrb[0].mxu0
  %v812 = vadd.f32 0.0, %v811
  %v813 = vpop.f32.mrb[0].mxu0
  %v814 = vpop.f32.mrb[0].mxu0
  %v815 = vadd.f32 0.0, %v814
  %v816 = vpop.f32.mrb[0].mxu0
  %817 = vdwg.mxu0
  %v818 = vmax.f32 %v743, %v804
  %v819 = vmax.f32 %v746, %v807
  %v820 = vmax.f32 %v751, %v812
  %v821 = vmax.f32 %v754, %v815
  %v822 = vsub.f32 %v743, %v818
  %v823 = vsub.f32 %v746, %v819
  %v824 = vsub.f32 %v751, %v820
  %v825 = vsub.f32 %v754, %v821
  %v826 = vmul.f32 %v822, 1.442695
  %v827 = vpow.pop %v826
  %v828 = vmul.f32 %v823, 1.442695
  %v829 = vpow.pop %v828
  %v830 = vmul.f32 %v824, 1.442695
  %v831 = vpow.pop %v830
  %v832 = vmul.f32 %v825, 1.442695
  %v833 = vpow.pop %v832
  %v834 = vsub.f32 %v804, %v818
  %v835 = vsub.f32 %v807, %v819
  %v836 = vsub.f32 %v812, %v820
  %v837 = vsub.f32 %v815, %v821
  %v838 = vmul.f32 %v834, 1.442695
  %v839 = vpow.pop %v838
  %v840 = vmul.f32 %v835, 1.442695
  %v841 = vpow.pop %v840
  %v842 = vmul.f32 %v836, 1.442695
  %v843 = vpow.pop %v842
  %v844 = vmul.f32 %v837, 1.442695
  %v845 = vpow.pop %v844
  %v846 = vadd.f32 %v827, %v839
  %v847 = vadd.f32 %v829, %v841
  %v848 = vadd.f32 %v831, %v843
  %v849 = vadd.f32 %v833, %v845
  %v850 = vrcp.pop %v846
  %v851 = vrcp.pop %v847
  %v852 = vrcp.pop %v848
  %v853 = vrcp.pop %v849
  %v854 = vmul.f32 %v827, %v850
  %v855 = vmul.f32 %v829, %v851
  %v856 = vmul.f32 %v831, %v852
  %v857 = vmul.f32 %v833, %v853
  %v858 = vpack.c.bf16 %v855, %v854
  %v859 = vpack.c.bf16 %v857, %v856
  %v861 = vsel %vm563, %v858, 0
  %v864 = vsel %vm563, %v859, 0
  %866 = vmatprep.subr.bf16.mxu0 0
  %867 = vmatpush1.bf16.msra.mxu0 %v572
  %868 = vmatprep.subr.bf16.mxu0 0
  %869 = vmatpush1.bf16.msra.mxu0 0
  %870 = vmatprep.subr.bf16.mxu0 0
  %871 = vmatpush1.bf16.msra.mxu0 0
  %872 = vmatprep.subr.bf16.mxu0 0
  %873 = vmatpush1.bf16.msra.mxu0 0
  %874 = vmatprep.subr.bf16.mxu0 0
  %875 = vmatpush1.bf16.msra.mxu0 0
  %876 = vmatprep.subr.bf16.mxu0 0
  %877 = vmatpush1.bf16.msra.mxu0 0
  %878 = vmatprep.subr.bf16.mxu0 0
  %879 = vmatpush1.bf16.msra.mxu0 0
  %880 = vmatprep.subr.bf16.mxu0 0
  %881 = vmatpush1.bf16.msra.mxu0 0
  %882 = vmatprep.subr.bf16.mxu0 0
  %883 = vmatpush1.bf16.msra.mxu0 0
  %884 = vmatprep.subr.bf16.mxu0 0
  %885 = vmatpush1.bf16.msra.mxu0 0
  %886 = vmatprep.subr.bf16.mxu0 0
  %887 = vmatpush1.bf16.msra.mxu0 0
  %888 = vmatprep.subr.bf16.mxu0 0
  %889 = vmatpush1.bf16.msra.mxu0 0
  %890 = vmatprep.subr.bf16.mxu0 0
  %891 = vmatpush1.bf16.msra.mxu0 0
  %892 = vmatprep.subr.bf16.mxu0 0
  %893 = vmatpush1.bf16.msra.mxu0 0
  %894 = vmatprep.subr.bf16.mxu0 0
  %895 = vmatpush1.bf16.msra.mxu0 0
  %896 = vmatprep.subr.bf16.mxu0 0
  %897 = vmatpush1.bf16.msra.mxu0 0
  %898 = vmatprep.mubr.bf16.mxu0 0
  %899 = vmatmul.mubr.bf16.gmra.mrb[0].mxu0 %v861
  %v900 = vpop.f32.mrb[0].mxu0
  %v901 = vadd.f32 0.0, %v900
  %v902 = vpop.f32.mrb[0].mxu0
  %v903 = vpop.f32.mrb[0].mxu0
  %v904 = vadd.f32 0.0, %v903
  %v905 = vpop.f32.mrb[0].mxu0
  %906 = vmatprep.mubr.bf16.mxu0 0
  %907 = vmatmul.mubr.bf16.gmra.mrb[0].mxu0 %v864
  %v908 = vpop.f32.mrb[0].mxu0
  %v909 = vadd.f32 0.0, %v908
  %v910 = vpop.f32.mrb[0].mxu0
  %v911 = vpop.f32.mrb[0].mxu0
  %v912 = vadd.f32 0.0, %v911
  %v913 = vpop.f32.mrb[0].mxu0
  %914 = vdwg.mxu0
  %v915 = vmul.f32 %v901, %v357
  %v916 = vmul.f32 %v904, %v360
  %v917 = vmul.f32 %v909, %v365
  %v918 = vmul.f32 %v912, %v368
  %v919 = vmul.f32 %v839, %v850
  %v920 = vmul.f32 %v841, %v851
  %v921 = vmul.f32 %v843, %v852
  %v922 = vmul.f32 %v845, %v853
  %v923 = vpack.c.bf16 %v920, %v919
  %v924 = vpack.c.bf16 %v922, %v921
  %v926 = vsel %vm563, %v923, 0
  %v929 = vsel %vm563, %v924, 0
  %931 = vmatprep.subr.bf16.mxu0 0
  %932 = vmatpush1.bf16.msra.mxu0 %v572
  %933 = vmatprep.subr.bf16.mxu0 0
  %934 = vmatpush1.bf16.msra.mxu0 0
  %935 = vmatprep.subr.bf16.mxu0 0
  %936 = vmatpush1.bf16.msra.mxu0 0
  %937 = vmatprep.subr.bf16.mxu0 0
  %938 = vmatpush1.bf16.msra.mxu0 0
  %939 = vmatprep.subr.bf16.mxu0 0
  %940 = vmatpush1.bf16.msra.mxu0 0
  %941 = vmatprep.subr.bf16.mxu0 0
  %942 = vmatpush1.bf16.msra.mxu0 0
  %943 = vmatprep.subr.bf16.mxu0 0
  %944 = vmatpush1.bf16.msra.mxu0 0
  %945 = vmatprep.subr.bf16.mxu0 0
  %946 = vmatpush1.bf16.msra.mxu0 0
  %947 = vmatprep.subr.bf16.mxu0 0
  %948 = vmatpush1.bf16.msra.mxu0 0
  %949 = vmatprep.subr.bf16.mxu0 0
  %950 = vmatpush1.bf16.msra.mxu0 0
  %951 = vmatprep.subr.bf16.mxu0 0
  %952 = vmatpush1.bf16.msra.mxu0 0
  %953 = vmatprep.subr.bf16.mxu0 0
  %954 = vmatpush1.bf16.msra.mxu0 0
  %955 = vmatprep.subr.bf16.mxu0 0
  %956 = vmatpush1.bf16.msra.mxu0 0
  %957 = vmatprep.subr.bf16.mxu0 0
  %958 = vmatpush1.bf16.msra.mxu0 0
  %959 = vmatprep.subr.bf16.mxu0 0
  %960 = vmatpush1.bf16.msra.mxu0 0
  %961 = vmatprep.subr.bf16.mxu0 0
  %962 = vmatpush1.bf16.msra.mxu0 0
  %963 = vmatprep.mubr.bf16.mxu0 0
  %964 = vmatmul.mubr.bf16.gmra.mrb[0].mxu0 %v926
  %v965 = vpop.f32.mrb[0].mxu0
  %v966 = vadd.f32 0.0, %v965
  %v967 = vpop.f32.mrb[0].mxu0
  %v968 = vpop.f32.mrb[0].mxu0
  %v969 = vadd.f32 0.0, %v968
  %v970 = vpop.f32.mrb[0].mxu0
  %971 = vmatprep.mubr.bf16.mxu0 0
  %972 = vmatmul.mubr.bf16.gmra.mrb[0].mxu0 %v929
  %v973 = vpop.f32.mrb[0].mxu0
  %v974 = vadd.f32 0.0, %v973
  %v975 = vpop.f32.mrb[0].mxu0
  %v976 = vpop.f32.mrb[0].mxu0
  %v977 = vadd.f32 0.0, %v976
  %v978 = vpop.f32.mrb[0].mxu0
  %979 = vdwg.mxu0
  %v980 = vmul.f32 %v966, %v373
  %v981 = vmul.f32 %v969, %v376
  %v982 = vmul.f32 %v974, %v381
  %v983 = vmul.f32 %v977, %v384
  %v984 = vadd.f32 %v915, %v980
  %v985 = vadd.f32 %v916, %v981
  %v986 = vadd.f32 %v917, %v982
  %v987 = vadd.f32 %v918, %v983
  %v988 = vpack.c.bf16 %v693, %v692
  %v989 = vpack.c.bf16 %v695, %v694
  %v990 = vpack.c.bf16 %v985, %v984
  %v991 = vpack.c.bf16 %v987, %v986
  %v992 = vlaneseq
  %v993 = vshrl.u32 %v992, 7
  %v994 = vsub.s32 0, %v993
  %v995 = vrot.slane %v120, %v994
  %v1000 = vunpack.c.l.b16 %v101
  %v1001 = vunpack.c.l.b16 %v102
  %v1002 = vunpack.c.l.b16 %v103
  %v1003 = vunpack.c.l.b16 %v104
  %v1004 = vpack.c.b16 %v1001, %v1000
  %v1005 = vpack.c.b16 %v1003, %v1002
  %v1009 = vsel %vm147, %v988, 0
  %v1012 = vsel %vm147, %v989, 0
  %v1015 = vsel %vm147, %v990, 0
  %v1018 = vsel %vm147, %v991, 0
  %1020 = vmatprep.subr.bf16.mxu0 0
  %1021 = vmatpush1.bf16.msra.mxu0 %v1004
  %1022 = vmatprep.subr.bf16.mxu0 0
  %1023 = vmatpush1.bf16.msra.mxu0 %v1005
  %1024 = vmatprep.subr.bf16.mxu0 0
  %1025 = vmatpush1.bf16.msra.mxu0 0
  %1026 = vmatprep.subr.bf16.mxu0 0
  %1027 = vmatpush1.bf16.msra.mxu0 0
  %1028 = vmatprep.subr.bf16.mxu0 0
  %1029 = vmatpush1.bf16.msra.mxu0 0
  %1030 = vmatprep.subr.bf16.mxu0 0
  %1031 = vmatpush1.bf16.msra.mxu0 0
  %1032 = vmatprep.subr.bf16.mxu0 0
  %1033 = vmatpush1.bf16.msra.mxu0 0
  %1034 = vmatprep.subr.bf16.mxu0 0
  %1035 = vmatpush1.bf16.msra.mxu0 0
  %1036 = vmatprep.subr.bf16.mxu0 0
  %1037 = vmatpush1.bf16.msra.mxu0 0
  %1038 = vmatprep.subr.bf16.mxu0 0
  %1039 = vmatpush1.bf16.msra.mxu0 0
  %1040 = vmatprep.subr.bf16.mxu0 0
  %1041 = vmatpush1.bf16.msra.mxu0 0
  %1042 = vmatprep.subr.bf16.mxu0 0
  %1043 = vmatpush1.bf16.msra.mxu0 0
  %1044 = vmatprep.subr.bf16.mxu0 0
  %1045 = vmatpush1.bf16.msra.mxu0 0
  %1046 = vmatprep.subr.bf16.mxu0 0
  %1047 = vmatpush1.bf16.msra.mxu0 0
  %1048 = vmatprep.subr.bf16.mxu0 0
  %1049 = vmatpush1.bf16.msra.mxu0 0
  %1050 = vmatprep.subr.bf16.mxu0 0
  %1051 = vmatpush1.bf16.msra.mxu0 0
  %1052 = vmatprep.mubr.bf16.mxu0 0
  %1053 = vmatmul.mubr.bf16.gmra.mrb[0].mxu0 %v1009
  %v1054 = vpop.f32.mrb[0].mxu0
  %v1055 = vadd.f32 %v995, %v1054
  %v1056 = vpop.f32.mrb[0].mxu0
  %v1057 = vpop.f32.mrb[0].mxu0
  %v1058 = vadd.f32 %v995, %v1057
  %v1059 = vpop.f32.mrb[0].mxu0
  %1060 = vmatprep.mubr.bf16.mxu0 0
  %1061 = vmatmul.mubr.bf16.gmra.mrb[0].mxu0 %v1012
  %v1062 = vpop.f32.mrb[0].mxu0
  %v1063 = vadd.f32 %v995, %v1062
  %v1064 = vpop.f32.mrb[0].mxu0
  %v1065 = vpop.f32.mrb[0].mxu0
  %v1066 = vadd.f32 %v995, %v1065
  %v1067 = vpop.f32.mrb[0].mxu0
  %1068 = vmatprep.mubr.bf16.mxu0 0
  %1069 = vmatmul.mubr.bf16.gmra.mrb[0].mxu0 %v1015
  %v1070 = vpop.f32.mrb[0].mxu0
  %v1071 = vadd.f32 %v995, %v1070
  %v1072 = vpop.f32.mrb[0].mxu0
  %v1073 = vpop.f32.mrb[0].mxu0
  %v1074 = vadd.f32 %v995, %v1073
  %v1075 = vpop.f32.mrb[0].mxu0
  %1076 = vmatprep.mubr.bf16.mxu0 0
  %1077 = vmatmul.mubr.bf16.gmra.mrb[0].mxu0 %v1018
  %v1078 = vpop.f32.mrb[0].mxu0
  %v1079 = vadd.f32 %v995, %v1078
  %v1080 = vpop.f32.mrb[0].mxu0
  %v1081 = vpop.f32.mrb[0].mxu0
  %v1082 = vadd.f32 %v995, %v1081
  %v1083 = vpop.f32.mrb[0].mxu0
  %1084 = vdwg.mxu0
  %v1085 = vadd.f32 %v51, %v1055
  %v1086 = vadd.f32 %v52, %v1058
  %v1087 = vadd.f32 %v53, %v1063
  %v1088 = vadd.f32 %v54, %v1066
  %v1089 = vadd.f32 %v85, %v1071
  %v1090 = vadd.f32 %v86, %v1074
  %v1091 = vadd.f32 %v87, %v1079
  %v1092 = vadd.f32 %v88, %v1082
  %v1093 = vsel %vm147, %v1085, 0.0
  %1094 = vadd.xlane.f32.xlu0 %v1093
  %v1095 = vpop.xlane.xlu0 %1094
  %v1096 = vsel %vm147, %v1086, 0.0
  %1097 = vadd.xlane.f32.xlu0 %v1096
  %v1098 = vpop.xlane.xlu0 %1097
  %v1099 = vsel %vm147, %v1087, 0.0
  %1100 = vadd.xlane.f32.xlu0 %v1099
  %v1101 = vpop.xlane.xlu0 %1100
  %v1102 = vsel %vm147, %v1088, 0.0
  %1103 = vadd.xlane.f32.xlu0 %v1102
  %v1104 = vpop.xlane.xlu0 %1103
  %v1105 = vsel %vm147, %v1089, 0.0
  %1106 = vadd.xlane.f32.xlu0 %v1105
  %v1107 = vpop.xlane.xlu0 %1106
  %v1108 = vsel %vm147, %v1090, 0.0
  %1109 = vadd.xlane.f32.xlu0 %v1108
  %v1110 = vpop.xlane.xlu0 %1109
  %v1111 = vsel %vm147, %v1091, 0.0
  %1112 = vadd.xlane.f32.xlu0 %v1111
  %v1113 = vpop.xlane.xlu0 %1112
  %v1114 = vsel %vm147, %v1092, 0.0
  %1115 = vadd.xlane.f32.xlu0 %v1114
  %v1116 = vpop.xlane.xlu0 %1115
  %v1117 = vrcp.pop 32.0
  %v1118 = vmul.f32 %v1095, %v1117
  %v1119 = vmul.f32 %v1098, %v1117
  %v1120 = vmul.f32 %v1101, %v1117
  %v1121 = vmul.f32 %v1104, %v1117
  %v1122 = vmul.f32 %v1107, %v1117
  %v1123 = vmul.f32 %v1110, %v1117
  %v1124 = vmul.f32 %v1113, %v1117
  %v1125 = vmul.f32 %v1116, %v1117
  %v1126 = vsub.f32 %v1085, %v1118
  %v1127 = vsub.f32 %v1086, %v1119
  %v1128 = vsub.f32 %v1087, %v1120
  %v1129 = vsub.f32 %v1088, %v1121
  %v1130 = vsub.f32 %v1089, %v1122
  %v1131 = vsub.f32 %v1090, %v1123
  %v1132 = vsub.f32 %v1091, %v1124
  %v1133 = vsub.f32 %v1092, %v1125
  %v1134 = vmul.f32 %v1126, %v1126
  %v1135 = vmul.f32 %v1127, %v1127
  %v1136 = vmul.f32 %v1128, %v1128
  %v1137 = vmul.f32 %v1129, %v1129
  %v1138 = vmul.f32 %v1130, %v1130
  %v1139 = vmul.f32 %v1131, %v1131
  %v1140 = vmul.f32 %v1132, %v1132
  %v1141 = vmul.f32 %v1133, %v1133
  %v1142 = vsel %vm147, %v1134, 0.0
  %1143 = vadd.xlane.f32.xlu0 %v1142
  %v1144 = vpop.xlane.xlu0 %1143
  %v1145 = vsel %vm147, %v1135, 0.0
  %1146 = vadd.xlane.f32.xlu0 %v1145
  %v1147 = vpop.xlane.xlu0 %1146
  %v1148 = vsel %vm147, %v1136, 0.0
  %1149 = vadd.xlane.f32.xlu0 %v1148
  %v1150 = vpop.xlane.xlu0 %1149
  %v1151 = vsel %vm147, %v1137, 0.0
  %1152 = vadd.xlane.f32.xlu0 %v1151
  %v1153 = vpop.xlane.xlu0 %1152
  %v1154 = vsel %vm147, %v1138, 0.0
  %1155 = vadd.xlane.f32.xlu0 %v1154
  %v1156 = vpop.xlane.xlu0 %1155
  %v1157 = vsel %vm147, %v1139, 0.0
  %1158 = vadd.xlane.f32.xlu0 %v1157
  %v1159 = vpop.xlane.xlu0 %1158
  %v1160 = vsel %vm147, %v1140, 0.0
  %1161 = vadd.xlane.f32.xlu0 %v1160
  %v1162 = vpop.xlane.xlu0 %1161
  %v1163 = vsel %vm147, %v1141, 0.0
  %1164 = vadd.xlane.f32.xlu0 %v1163
  %v1165 = vpop.xlane.xlu0 %1164
  %v1166 = vmul.f32 %v1144, %v1117
  %v1167 = vmul.f32 %v1147, %v1117
  %v1168 = vmul.f32 %v1150, %v1117
  %v1169 = vmul.f32 %v1153, %v1117
  %v1170 = vmul.f32 %v1156, %v1117
  %v1171 = vmul.f32 %v1159, %v1117
  %v1172 = vmul.f32 %v1162, %v1117
  %v1173 = vmul.f32 %v1165, %v1117
  %v1174 = vadd.f32 %v1166, 1e-05
  %v1175 = vadd.f32 %v1167, 1e-05
  %v1176 = vadd.f32 %v1168, 1e-05
  %v1177 = vadd.f32 %v1169, 1e-05
  %v1178 = vadd.f32 %v1170, 1e-05
  %v1179 = vadd.f32 %v1171, 1e-05
  %v1180 = vadd.f32 %v1172, 1e-05
  %v1181 = vadd.f32 %v1173, 1e-05
  %v1182 = vrsqrt.pop %v1174
  %v1183 = vrsqrt.pop %v1175
  %v1184 = vrsqrt.pop %v1176
  %v1185 = vrsqrt.pop %v1177
  %v1186 = vrsqrt.pop %v1178
  %v1187 = vrsqrt.pop %v1179
  %v1188 = vrsqrt.pop %v1180
  %v1189 = vrsqrt.pop %v1181
  %v1190 = vmul.f32 %v1126, %v1182
  %v1191 = vmul.f32 %v1127, %v1183
  %v1192 = vmul.f32 %v1128, %v1184
  %v1193 = vmul.f32 %v1129, %v1185
  %v1194 = vmul.f32 %v1130, %v1186
  %v1195 = vmul.f32 %v1131, %v1187
  %v1196 = vmul.f32 %v1132, %v1188
  %v1197 = vmul.f32 %v1133, %v1189
  %v1198 = vlaneseq
  %v1199 = vshrl.u32 %v1198, 7
  %v1200 = vsub.s32 0, %v1199
  %v1201 = vrot.slane %v121, %v1200
  %v1202 = vmul.f32 %v1190, %v1201
  %v1203 = vmul.f32 %v1191, %v1201
  %v1204 = vmul.f32 %v1192, %v1201
  %v1205 = vmul.f32 %v1193, %v1201
  %v1206 = vmul.f32 %v1194, %v1201
  %v1207 = vmul.f32 %v1195, %v1201
  %v1208 = vmul.f32 %v1196, %v1201
  %v1209 = vmul.f32 %v1197, %v1201
  %v1210 = vlaneseq
  %v1211 = vshrl.u32 %v1210, 7
  %v1212 = vsub.s32 0, %v1211
  %v1213 = vrot.slane %v122, %v1212
  %v1214 = vadd.f32 %v1202, %v1213
  %v1215 = vadd.f32 %v1203, %v1213
  %v1216 = vadd.f32 %v1204, %v1213
  %v1217 = vadd.f32 %v1205, %v1213
  %v1218 = vadd.f32 %v1206, %v1213
  %v1219 = vadd.f32 %v1207, %v1213
  %v1220 = vadd.f32 %v1208, %v1213
  %v1221 = vadd.f32 %v1209, %v1213
  %v1222 = vpack.c.bf16 %v1215, %v1214
  %v1223 = vpack.c.bf16 %v1217, %v1216
  %v1224 = vpack.c.bf16 %v1219, %v1218
  %v1225 = vpack.c.bf16 %v1221, %v1220
  %v1226 = vlaneseq
  %v1227 = vshrl.u32 %v1226, 7
  %v1228 = vsub.s32 0, %v1227
  %v1229 = vrot.slane %v123, %v1228
  %v1234 = vunpack.c.l.b16 %v105
  %v1235 = vunpack.c.l.b16 %v106
  %v1236 = vunpack.c.l.b16 %v107
  %v1237 = vunpack.c.l.b16 %v108
  %v1238 = vpack.c.b16 %v1235, %v1234
  %v1239 = vpack.c.b16 %v1237, %v1236
  %v1243 = vsel %vm147, %v1222, 0
  %v1246 = vsel %vm147, %v1223, 0
  %v1249 = vsel %vm147, %v1224, 0
  %v1252 = vsel %vm147, %v1225, 0
  %1254 = vmatprep.subr.bf16.mxu0 0
  %1255 = vmatpush1.bf16.msra.mxu0 %v1238
  %1256 = vmatprep.subr.bf16.mxu0 0
  %1257 = vmatpush1.bf16.msra.mxu0 %v1239
  %1258 = vmatprep.subr.bf16.mxu0 0
  %1259 = vmatpush1.bf16.msra.mxu0 0
  %1260 = vmatprep.subr.bf16.mxu0 0
  %1261 = vmatpush1.bf16.msra.mxu0 0
  %1262 = vmatprep.subr.bf16.mxu0 0
  %1263 = vmatpush1.bf16.msra.mxu0 0
  %1264 = vmatprep.subr.bf16.mxu0 0
  %1265 = vmatpush1.bf16.msra.mxu0 0
  %1266 = vmatprep.subr.bf16.mxu0 0
  %1267 = vmatpush1.bf16.msra.mxu0 0
  %1268 = vmatprep.subr.bf16.mxu0 0
  %1269 = vmatpush1.bf16.msra.mxu0 0
  %1270 = vmatprep.subr.bf16.mxu0 0
  %1271 = vmatpush1.bf16.msra.mxu0 0
  %1272 = vmatprep.subr.bf16.mxu0 0
  %1273 = vmatpush1.bf16.msra.mxu0 0
  %1274 = vmatprep.subr.bf16.mxu0 0
  %1275 = vmatpush1.bf16.msra.mxu0 0
  %1276 = vmatprep.subr.bf16.mxu0 0
  %1277 = vmatpush1.bf16.msra.mxu0 0
  %1278 = vmatprep.subr.bf16.mxu0 0
  %1279 = vmatpush1.bf16.msra.mxu0 0
  %1280 = vmatprep.subr.bf16.mxu0 0
  %1281 = vmatpush1.bf16.msra.mxu0 0
  %1282 = vmatprep.subr.bf16.mxu0 0
  %1283 = vmatpush1.bf16.msra.mxu0 0
  %1284 = vmatprep.subr.bf16.mxu0 0
  %1285 = vmatpush1.bf16.msra.mxu0 0
  %1286 = vmatprep.mubr.bf16.mxu0 0
  %1287 = vmatmul.mubr.bf16.gmra.mrb[0].mxu0 %v1243
  %v1288 = vpop.f32.mrb[0].mxu0
  %v1289 = vadd.f32 %v1229, %v1288
  %v1290 = vpop.f32.mrb[0].mxu0
  %v1291 = vpop.f32.mrb[0].mxu0
  %v1292 = vadd.f32 %v1229, %v1291
  %v1293 = vpop.f32.mrb[0].mxu0
  %1294 = vmatprep.mubr.bf16.mxu0 0
  %1295 = vmatmul.mubr.bf16.gmra.mrb[0].mxu0 %v1246
  %v1296 = vpop.f32.mrb[0].mxu0
  %v1297 = vadd.f32 %v1229, %v1296
  %v1298 = vpop.f32.mrb[0].mxu0
  %v1299 = vpop.f32.mrb[0].mxu0
  %v1300 = vadd.f32 %v1229, %v1299
  %v1301 = vpop.f32.mrb[0].mxu0
  %1302 = vmatprep.mubr.bf16.mxu0 0
  %1303 = vmatmul.mubr.bf16.gmra.mrb[0].mxu0 %v1249
  %v1304 = vpop.f32.mrb[0].mxu0
  %v1305 = vadd.f32 %v1229, %v1304
  %v1306 = vpop.f32.mrb[0].mxu0
  %v1307 = vpop.f32.mrb[0].mxu0
  %v1308 = vadd.f32 %v1229, %v1307
  %v1309 = vpop.f32.mrb[0].mxu0
  %1310 = vmatprep.mubr.bf16.mxu0 0
  %1311 = vmatmul.mubr.bf16.gmra.mrb[0].mxu0 %v1252
  %v1312 = vpop.f32.mrb[0].mxu0
  %v1313 = vadd.f32 %v1229, %v1312
  %v1314 = vpop.f32.mrb[0].mxu0
  %v1315 = vpop.f32.mrb[0].mxu0
  %v1316 = vadd.f32 %v1229, %v1315
  %v1317 = vpop.f32.mrb[0].mxu0
  %1318 = vdwg.mxu0
  %v1319 = vmul.f32 %v1289, 0.5
  %v1320 = vmul.f32 %v1292, 0.5
  %v1321 = vmul.f32 %v1297, 0.5
  %v1322 = vmul.f32 %v1300, 0.5
  %v1323 = vmul.f32 %v1305, 0.5
  %v1324 = vmul.f32 %v1308, 0.5
  %v1325 = vmul.f32 %v1313, 0.5
  %v1326 = vmul.f32 %v1316, 0.5
  %v1327 = vmul.f32 %v1289, 0.70710677
  %v1328 = vmul.f32 %v1292, 0.70710677
  %v1329 = vmul.f32 %v1297, 0.70710677
  %v1330 = vmul.f32 %v1300, 0.70710677
  %v1331 = vmul.f32 %v1305, 0.70710677
  %v1332 = vmul.f32 %v1308, 0.70710677
  %v1333 = vmul.f32 %v1313, 0.70710677
  %v1334 = vmul.f32 %v1316, 0.70710677
  %v1335 = vand.u32 2147483647, %v1327
  %v1336 = vand.u32 2147483647, %v1328
  %v1337 = vand.u32 2147483647, %v1329
  %v1338 = vand.u32 2147483647, %v1330
  %v1339 = vand.u32 2147483647, %v1331
  %v1340 = vand.u32 2147483647, %v1332
  %v1341 = vand.u32 2147483647, %v1333
  %v1342 = vand.u32 2147483647, %v1334
  %v1343 = vmul.f32 %v1335, 0.3275911
  %v1344 = vmul.f32 %v1336, 0.3275911
  %v1345 = vmul.f32 %v1337, 0.3275911
  %v1346 = vmul.f32 %v1338, 0.3275911
  %v1347 = vmul.f32 %v1339, 0.3275911
  %v1348 = vmul.f32 %v1340, 0.3275911
  %v1349 = vmul.f32 %v1341, 0.3275911
  %v1350 = vmul.f32 %v1342, 0.3275911
  %v1351 = vadd.f32 %v1343, 1.0
  %v1352 = vadd.f32 %v1344, 1.0
  %v1353 = vadd.f32 %v1345, 1.0
  %v1354 = vadd.f32 %v1346, 1.0
  %v1355 = vadd.f32 %v1347, 1.0
  %v1356 = vadd.f32 %v1348, 1.0
  %v1357 = vadd.f32 %v1349, 1.0
  %v1358 = vadd.f32 %v1350, 1.0
  %v1359 = vrcp.pop %v1351
  %v1360 = vmul.f32 1.0, %v1359
  %v1361 = vrcp.pop %v1352
  %v1362 = vmul.f32 1.0, %v1361
  %v1363 = vrcp.pop %v1353
  %v1364 = vmul.f32 1.0, %v1363
  %v1365 = vrcp.pop %v1354
  %v1366 = vmul.f32 1.0, %v1365
  %v1367 = vrcp.pop %v1355
  %v1368 = vmul.f32 1.0, %v1367
  %v1369 = vrcp.pop %v1356
  %v1370 = vmul.f32 1.0, %v1369
  %v1371 = vrcp.pop %v1357
  %v1372 = vmul.f32 1.0, %v1371
  %v1373 = vrcp.pop %v1358
  %v1374 = vmul.f32 1.0, %v1373
  %v1375 = vmul.f32 %v1360, 1.0614054
  %v1376 = vmul.f32 %v1362, 1.0614054
  %v1377 = vmul.f32 %v1364, 1.0614054
  %v1378 = vmul.f32 %v1366, 1.0614054
  %v1379 = vmul.f32 %v1368, 1.0614054
  %v1380 = vmul.f32 %v1370, 1.0614054
  %v1381 = vmul.f32 %v1372, 1.0614054
  %v1382 = vmul.f32 %v1374, 1.0614054
  %v1383 = vadd.f32 %v1375, -1.4531521
  %v1384 = vadd.f32 %v1376, -1.4531521
  %v1385 = vadd.f32 %v1377, -1.4531521
  %v1386 = vadd.f32 %v1378, -1.4531521
  %v1387 = vadd.f32 %v1379, -1.4531521
  %v1388 = vadd.f32 %v1380, -1.4531521
  %v1389 = vadd.f32 %v1381, -1.4531521
  %v1390 = vadd.f32 %v1382, -1.4531521
  %v1391 = vmul.f32 %v1383, %v1360
  %v1392 = vmul.f32 %v1384, %v1362
  %v1393 = vmul.f32 %v1385, %v1364
  %v1394 = vmul.f32 %v1386, %v1366
  %v1395 = vmul.f32 %v1387, %v1368
  %v1396 = vmul.f32 %v1388, %v1370
  %v1397 = vmul.f32 %v1389, %v1372
  %v1398 = vmul.f32 %v1390, %v1374
  %v1399 = vadd.f32 %v1391, 1.4214138
  %v1400 = vadd.f32 %v1392, 1.4214138
  %v1401 = vadd.f32 %v1393, 1.4214138
  %v1402 = vadd.f32 %v1394, 1.4214138
  %v1403 = vadd.f32 %v1395, 1.4214138
  %v1404 = vadd.f32 %v1396, 1.4214138
  %v1405 = vadd.f32 %v1397, 1.4214138
  %v1406 = vadd.f32 %v1398, 1.4214138
  %v1407 = vmul.f32 %v1399, %v1360
  %v1408 = vmul.f32 %v1400, %v1362
  %v1409 = vmul.f32 %v1401, %v1364
  %v1410 = vmul.f32 %v1402, %v1366
  %v1411 = vmul.f32 %v1403, %v1368
  %v1412 = vmul.f32 %v1404, %v1370
  %v1413 = vmul.f32 %v1405, %v1372
  %v1414 = vmul.f32 %v1406, %v1374
  %v1415 = vadd.f32 %v1407, -0.28449672
  %v1416 = vadd.f32 %v1408, -0.28449672
  %v1417 = vadd.f32 %v1409, -0.28449672
  %v1418 = vadd.f32 %v1410, -0.28449672
  %v1419 = vadd.f32 %v1411, -0.28449672
  %v1420 = vadd.f32 %v1412, -0.28449672
  %v1421 = vadd.f32 %v1413, -0.28449672
  %v1422 = vadd.f32 %v1414, -0.28449672
  %v1423 = vmul.f32 %v1415, %v1360
  %v1424 = vmul.f32 %v1416, %v1362
  %v1425 = vmul.f32 %v1417, %v1364
  %v1426 = vmul.f32 %v1418, %v1366
  %v1427 = vmul.f32 %v1419, %v1368
  %v1428 = vmul.f32 %v1420, %v1370
  %v1429 = vmul.f32 %v1421, %v1372
  %v1430 = vmul.f32 %v1422, %v1374
  %v1431 = vadd.f32 %v1423, 0.2548296
  %v1432 = vadd.f32 %v1424, 0.2548296
  %v1433 = vadd.f32 %v1425, 0.2548296
  %v1434 = vadd.f32 %v1426, 0.2548296
  %v1435 = vadd.f32 %v1427, 0.2548296
  %v1436 = vadd.f32 %v1428, 0.2548296
  %v1437 = vadd.f32 %v1429, 0.2548296
  %v1438 = vadd.f32 %v1430, 0.2548296
  %v1439 = vmul.f32 %v1431, %v1360
  %v1440 = vmul.f32 %v1432, %v1362
  %v1441 = vmul.f32 %v1433, %v1364
  %v1442 = vmul.f32 %v1434, %v1366
  %v1443 = vmul.f32 %v1435, %v1368
  %v1444 = vmul.f32 %v1436, %v1370
  %v1445 = vmul.f32 %v1437, %v1372
  %v1446 = vmul.f32 %v1438, %v1374
  %v1447 = vsub.f32 0.0, %v1335
  %v1448 = vsub.f32 0.0, %v1336
  %v1449 = vsub.f32 0.0, %v1337
  %v1450 = vsub.f32 0.0, %v1338
  %v1451 = vsub.f32 0.0, %v1339
  %v1452 = vsub.f32 0.0, %v1340
  %v1453 = vsub.f32 0.0, %v1341
  %v1454 = vsub.f32 0.0, %v1342
  %v1455 = vmul.f32 %v1447, %v1335
  %v1456 = vmul.f32 %v1448, %v1336
  %v1457 = vmul.f32 %v1449, %v1337
  %v1458 = vmul.f32 %v1450, %v1338
  %v1459 = vmul.f32 %v1451, %v1339
  %v1460 = vmul.f32 %v1452, %v1340
  %v1461 = vmul.f32 %v1453, %v1341
  %v1462 = vmul.f32 %v1454, %v1342
  %v1463 = vmul.f32 %v1455, 1.442695
  %v1464 = vpow.pop %v1463
  %v1465 = vmul.f32 %v1456, 1.442695
  %v1466 = vpow.pop %v1465
  %v1467 = vmul.f32 %v1457, 1.442695
  %v1468 = vpow.pop %v1467
  %v1469 = vmul.f32 %v1458, 1.442695
  %v1470 = vpow.pop %v1469
  %v1471 = vmul.f32 %v1459, 1.442695
  %v1472 = vpow.pop %v1471
  %v1473 = vmul.f32 %v1460, 1.442695
  %v1474 = vpow.pop %v1473
  %v1475 = vmul.f32 %v1461, 1.442695
  %v1476 = vpow.pop %v1475
  %v1477 = vmul.f32 %v1462, 1.442695
  %v1478 = vpow.pop %v1477
  %v1479 = vmul.f32 %v1439, %v1464
  %v1480 = vmul.f32 %v1440, %v1466
  %v1481 = vmul.f32 %v1441, %v1468
  %v1482 = vmul.f32 %v1442, %v1470
  %v1483 = vmul.f32 %v1443, %v1472
  %v1484 = vmul.f32 %v1444, %v1474
  %v1485 = vmul.f32 %v1445, %v1476
  %v1486 = vmul.f32 %v1446, %v1478
  %v1487 = vsub.f32 1.0, %v1479
  %v1488 = vsub.f32 1.0, %v1480
  %v1489 = vsub.f32 1.0, %v1481
  %v1490 = vsub.f32 1.0, %v1482
  %v1491 = vsub.f32 1.0, %v1483
  %v1492 = vsub.f32 1.0, %v1484
  %v1493 = vsub.f32 1.0, %v1485
  %v1494 = vsub.f32 1.0, %v1486
  %vm1495 = vcmp.lt.f32.partialorder %v1327, 0.0
  %vm1496 = vcmp.lt.f32.partialorder %v1328, 0.0
  %vm1497 = vcmp.lt.f32.partialorder %v1329, 0.0
  %vm1498 = vcmp.lt.f32.partialorder %v1330, 0.0
  %vm1499 = vcmp.lt.f32.partialorder %v1331, 0.0
  %vm1500 = vcmp.lt.f32.partialorder %v1332, 0.0
  %vm1501 = vcmp.lt.f32.partialorder %v1333, 0.0
  %vm1502 = vcmp.lt.f32.partialorder %v1334, 0.0
  %v1503 = vsub.f32 0.0, %v1487
  %v1504 = vsub.f32 0.0, %v1488
  %v1505 = vsub.f32 0.0, %v1489
  %v1506 = vsub.f32 0.0, %v1490
  %v1507 = vsub.f32 0.0, %v1491
  %v1508 = vsub.f32 0.0, %v1492
  %v1509 = vsub.f32 0.0, %v1493
  %v1510 = vsub.f32 0.0, %v1494
  %v1511 = vsel %vm1495, %v1503, %v1487
  %v1512 = vsel %vm1496, %v1504, %v1488
  %v1513 = vsel %vm1497, %v1505, %v1489
  %v1514 = vsel %vm1498, %v1506, %v1490
  %v1515 = vsel %vm1499, %v1507, %v1491
  %v1516 = vsel %vm1500, %v1508, %v1492
  %v1517 = vsel %vm1501, %v1509, %v1493
  %v1518 = vsel %vm1502, %v1510, %v1494
  %v1519 = vadd.f32 %v1511, 1.0
  %v1520 = vadd.f32 %v1512, 1.0
  %v1521 = vadd.f32 %v1513, 1.0
  %v1522 = vadd.f32 %v1514, 1.0
  %v1523 = vadd.f32 %v1515, 1.0
  %v1524 = vadd.f32 %v1516, 1.0
  %v1525 = vadd.f32 %v1517, 1.0
  %v1526 = vadd.f32 %v1518, 1.0
  %v1527 = vmul.f32 %v1319, %v1519
  %v1528 = vmul.f32 %v1320, %v1520
  %v1529 = vmul.f32 %v1321, %v1521
  %v1530 = vmul.f32 %v1322, %v1522
  %v1531 = vmul.f32 %v1323, %v1523
  %v1532 = vmul.f32 %v1324, %v1524
  %v1533 = vmul.f32 %v1325, %v1525
  %v1534 = vmul.f32 %v1326, %v1526
  %v1535 = vpack.c.bf16 %v1528, %v1527
  %v1536 = vpack.c.bf16 %v1530, %v1529
  %v1537 = vpack.c.bf16 %v1532, %v1531
  %v1538 = vpack.c.bf16 %v1534, %v1533
  %v1539 = vlaneseq
  %v1540 = vshrl.u32 %v1539, 7
  %v1541 = vsub.s32 0, %v1540
  %v1542 = vrot.slane %v124, %v1541
  %v1551 = vunpack.c.l.b16 %v109
  %v1552 = vunpack.c.l.b16 %v110
  %v1553 = vunpack.c.l.b16 %v111
  %v1554 = vunpack.c.l.b16 %v112
  %v1555 = vunpack.c.l.b16 %v113
  %v1556 = vunpack.c.l.b16 %v114
  %v1557 = vunpack.c.l.b16 %v115
  %v1558 = vunpack.c.l.b16 %v116
  %v1559 = vpack.c.b16 %v1552, %v1551
  %v1560 = vpack.c.b16 %v1554, %v1553
  %v1561 = vpack.c.b16 %v1556, %v1555
  %v1562 = vpack.c.b16 %v1558, %v1557
  %vm1567 = vcmask 523264
  %v1569 = vsel %vm1567, %v1535, 0
  %v1572 = vsel %vm1567, %v1536, 0
  %v1575 = vsel %vm1567, %v1537, 0
  %v1578 = vsel %vm1567, %v1538, 0
  %1580 = vmatprep.subr.bf16.mxu0 0
  %1581 = vmatpush1.bf16.msra.mxu0 %v1559
  %1582 = vmatprep.subr.bf16.mxu0 0
  %1583 = vmatpush1.bf16.msra.mxu0 %v1560
  %1584 = vmatprep.subr.bf16.mxu0 0
  %1585 = vmatpush1.bf16.msra.mxu0 %v1561
  %1586 = vmatprep.subr.bf16.mxu0 0
  %1587 = vmatpush1.bf16.msra.mxu0 %v1562
  %1588 = vmatprep.subr.bf16.mxu0 0
  %1589 = vmatpush1.bf16.msra.mxu0 0
  %1590 = vmatprep.subr.bf16.mxu0 0
  %1591 = vmatpush1.bf16.msra.mxu0 0
  %1592 = vmatprep.subr.bf16.mxu0 0
  %1593 = vmatpush1.bf16.msra.mxu0 0
  %1594 = vmatprep.subr.bf16.mxu0 0
  %1595 = vmatpush1.bf16.msra.mxu0 0
  %1596 = vmatprep.subr.bf16.mxu0 0
  %1597 = vmatpush1.bf16.msra.mxu0 0
  %1598 = vmatprep.subr.bf16.mxu0 0
  %1599 = vmatpush1.bf16.msra.mxu0 0
  %1600 = vmatprep.subr.bf16.mxu0 0
  %1601 = vmatpush1.bf16.msra.mxu0 0
  %1602 = vmatprep.subr.bf16.mxu0 0
  %1603 = vmatpush1.bf16.msra.mxu0 0
  %1604 = vmatprep.subr.bf16.mxu0 0
  %1605 = vmatpush1.bf16.msra.mxu0 0
  %1606 = vmatprep.subr.bf16.mxu0 0
  %1607 = vmatpush1.bf16.msra.mxu0 0
  %1608 = vmatprep.subr.bf16.mxu0 0
  %1609 = vmatpush1.bf16.msra.mxu0 0
  %1610 = vmatprep.subr.bf16.mxu0 0
  %1611 = vmatpush1.bf16.msra.mxu0 0
  %1612 = vmatprep.mubr.bf16.mxu0 0
  %1613 = vmatmul.mubr.bf16.gmra.mrb[0].mxu0 %v1569
  %v1614 = vpop.f32.mrb[0].mxu0
  %v1615 = vadd.f32 %v1542, %v1614
  %v1616 = vpop.f32.mrb[0].mxu0
  %v1617 = vpop.f32.mrb[0].mxu0
  %v1618 = vadd.f32 %v1542, %v1617
  %v1619 = vpop.f32.mrb[0].mxu0
  %1620 = vmatprep.mubr.bf16.mxu0 0
  %1621 = vmatmul.mubr.bf16.gmra.mrb[0].mxu0 %v1572
  %v1622 = vpop.f32.mrb[0].mxu0
  %v1623 = vadd.f32 %v1542, %v1622
  %v1624 = vpop.f32.mrb[0].mxu0
  %v1625 = vpop.f32.mrb[0].mxu0
  %v1626 = vadd.f32 %v1542, %v1625
  %v1627 = vpop.f32.mrb[0].mxu0
  %1628 = vmatprep.mubr.bf16.mxu0 0
  %1629 = vmatmul.mubr.bf16.gmra.mrb[0].mxu0 %v1575
  %v1630 = vpop.f32.mrb[0].mxu0
  %v1631 = vadd.f32 %v1542, %v1630
  %v1632 = vpop.f32.mrb[0].mxu0
  %v1633 = vpop.f32.mrb[0].mxu0
  %v1634 = vadd.f32 %v1542, %v1633
  %v1635 = vpop.f32.mrb[0].mxu0
  %1636 = vmatprep.mubr.bf16.mxu0 0
  %1637 = vmatmul.mubr.bf16.gmra.mrb[0].mxu0 %v1578
  %v1638 = vpop.f32.mrb[0].mxu0
  %v1639 = vadd.f32 %v1542, %v1638
  %v1640 = vpop.f32.mrb[0].mxu0
  %v1641 = vpop.f32.mrb[0].mxu0
  %v1642 = vadd.f32 %v1542, %v1641
  %v1643 = vpop.f32.mrb[0].mxu0
  %1644 = vdwg.mxu0
  %v1645 = vadd.f32 %v1214, %v1615
  %v1646 = vadd.f32 %v1215, %v1618
  %v1647 = vadd.f32 %v1216, %v1623
  %v1648 = vadd.f32 %v1217, %v1626
  %v1649 = vadd.f32 %v1218, %v1631
  %v1650 = vadd.f32 %v1219, %v1634
  %v1651 = vadd.f32 %v1220, %v1639
  %v1652 = vadd.f32 %v1221, %v1642
  %v1653 = vsel %vm147, %v1645, 0.0
  %1654 = vadd.xlane.f32.xlu0 %v1653
  %v1655 = vpop.xlane.xlu0 %1654
  %v1656 = vsel %vm147, %v1646, 0.0
  %1657 = vadd.xlane.f32.xlu0 %v1656
  %v1658 = vpop.xlane.xlu0 %1657
  %v1659 = vsel %vm147, %v1647, 0.0
  %1660 = vadd.xlane.f32.xlu0 %v1659
  %v1661 = vpop.xlane.xlu0 %1660
  %v1662 = vsel %vm147, %v1648, 0.0
  %1663 = vadd.xlane.f32.xlu0 %v1662
  %v1664 = vpop.xlane.xlu0 %1663
  %v1665 = vsel %vm147, %v1649, 0.0
  %1666 = vadd.xlane.f32.xlu0 %v1665
  %v1667 = vpop.xlane.xlu0 %1666
  %v1668 = vsel %vm147, %v1650, 0.0
  %1669 = vadd.xlane.f32.xlu0 %v1668
  %v1670 = vpop.xlane.xlu0 %1669
  %v1671 = vsel %vm147, %v1651, 0.0
  %1672 = vadd.xlane.f32.xlu0 %v1671
  %v1673 = vpop.xlane.xlu0 %1672
  %v1674 = vsel %vm147, %v1652, 0.0
  %1675 = vadd.xlane.f32.xlu0 %v1674
  %v1676 = vpop.xlane.xlu0 %1675
  %v1677 = vmul.f32 %v1655, %v1117
  %v1678 = vmul.f32 %v1658, %v1117
  %v1679 = vmul.f32 %v1661, %v1117
  %v1680 = vmul.f32 %v1664, %v1117
  %v1681 = vmul.f32 %v1667, %v1117
  %v1682 = vmul.f32 %v1670, %v1117
  %v1683 = vmul.f32 %v1673, %v1117
  %v1684 = vmul.f32 %v1676, %v1117
  %v1685 = vsub.f32 %v1645, %v1677
  %v1686 = vsub.f32 %v1646, %v1678
  %v1687 = vsub.f32 %v1647, %v1679
  %v1688 = vsub.f32 %v1648, %v1680
  %v1689 = vsub.f32 %v1649, %v1681
  %v1690 = vsub.f32 %v1650, %v1682
  %v1691 = vsub.f32 %v1651, %v1683
  %v1692 = vsub.f32 %v1652, %v1684
  %v1693 = vmul.f32 %v1685, %v1685
  %v1694 = vmul.f32 %v1686, %v1686
  %v1695 = vmul.f32 %v1687, %v1687
  %v1696 = vmul.f32 %v1688, %v1688
  %v1697 = vmul.f32 %v1689, %v1689
  %v1698 = vmul.f32 %v1690, %v1690
  %v1699 = vmul.f32 %v1691, %v1691
  %v1700 = vmul.f32 %v1692, %v1692
  %v1701 = vsel %vm147, %v1693, 0.0
  %1702 = vadd.xlane.f32.xlu0 %v1701
  %v1703 = vpop.xlane.xlu0 %1702
  %v1704 = vsel %vm147, %v1694, 0.0
  %1705 = vadd.xlane.f32.xlu0 %v1704
  %v1706 = vpop.xlane.xlu0 %1705
  %v1707 = vsel %vm147, %v1695, 0.0
  %1708 = vadd.xlane.f32.xlu0 %v1707
  %v1709 = vpop.xlane.xlu0 %1708
  %v1710 = vsel %vm147, %v1696, 0.0
  %1711 = vadd.xlane.f32.xlu0 %v1710
  %v1712 = vpop.xlane.xlu0 %1711
  %v1713 = vsel %vm147, %v1697, 0.0
  %1714 = vadd.xlane.f32.xlu0 %v1713
  %v1715 = vpop.xlane.xlu0 %1714
  %v1716 = vsel %vm147, %v1698, 0.0
  %1717 = vadd.xlane.f32.xlu0 %v1716
  %v1718 = vpop.xlane.xlu0 %1717
  %v1719 = vsel %vm147, %v1699, 0.0
  %1720 = vadd.xlane.f32.xlu0 %v1719
  %v1721 = vpop.xlane.xlu0 %1720
  %v1722 = vsel %vm147, %v1700, 0.0
  %1723 = vadd.xlane.f32.xlu0 %v1722
  %v1724 = vpop.xlane.xlu0 %1723
  %v1725 = vmul.f32 %v1703, %v1117
  %v1726 = vmul.f32 %v1706, %v1117
  %v1727 = vmul.f32 %v1709, %v1117
  %v1728 = vmul.f32 %v1712, %v1117
  %v1729 = vmul.f32 %v1715, %v1117
  %v1730 = vmul.f32 %v1718, %v1117
  %v1731 = vmul.f32 %v1721, %v1117
  %v1732 = vmul.f32 %v1724, %v1117
  %v1733 = vadd.f32 %v1725, 1e-05
  %v1734 = vadd.f32 %v1726, 1e-05
  %v1735 = vadd.f32 %v1727, 1e-05
  %v1736 = vadd.f32 %v1728, 1e-05
  %v1737 = vadd.f32 %v1729, 1e-05
  %v1738 = vadd.f32 %v1730, 1e-05
  %v1739 = vadd.f32 %v1731, 1e-05
  %v1740 = vadd.f32 %v1732, 1e-05
  %v1741 = vrsqrt.pop %v1733
  %v1742 = vrsqrt.pop %v1734
  %v1743 = vrsqrt.pop %v1735
  %v1744 = vrsqrt.pop %v1736
  %v1745 = vrsqrt.pop %v1737
  %v1746 = vrsqrt.pop %v1738
  %v1747 = vrsqrt.pop %v1739
  %v1748 = vrsqrt.pop %v1740
  %v1749 = vmul.f32 %v1685, %v1741
  %v1750 = vmul.f32 %v1686, %v1742
  %v1751 = vmul.f32 %v1687, %v1743
  %v1752 = vmul.f32 %v1688, %v1744
  %v1753 = vmul.f32 %v1689, %v1745
  %v1754 = vmul.f32 %v1690, %v1746
  %v1755 = vmul.f32 %v1691, %v1747
  %v1756 = vmul.f32 %v1692, %v1748
  %v1757 = vlaneseq
  %v1758 = vshrl.u32 %v1757, 7
  %v1759 = vsub.s32 0, %v1758
  %v1760 = vrot.slane %v125, %v1759
  %v1761 = vmul.f32 %v1749, %v1760
  %v1762 = vmul.f32 %v1750, %v1760
  %v1763 = vmul.f32 %v1751, %v1760
  %v1764 = vmul.f32 %v1752, %v1760
  %v1765 = vmul.f32 %v1753, %v1760
  %v1766 = vmul.f32 %v1754, %v1760
  %v1767 = vmul.f32 %v1755, %v1760
  %v1768 = vmul.f32 %v1756, %v1760
  %v1769 = vlaneseq
  %v1770 = vshrl.u32 %v1769, 7
  %v1771 = vsub.s32 0, %v1770
  %v1772 = vrot.slane %v126, %v1771
  %v1773 = vadd.f32 %v1761, %v1772
  %v1774 = vadd.f32 %v1762, %v1772
  %v1775 = vadd.f32 %v1763, %v1772
  %v1776 = vadd.f32 %v1764, %v1772
  %v1777 = vadd.f32 %v1765, %v1772
  %v1778 = vadd.f32 %v1766, %v1772
  %v1779 = vadd.f32 %v1767, %v1772
  %v1780 = vadd.f32 %v1768, %v1772
  %v1781 = vld [vmem:[%s2 + $0x80] sm:$0xf]
  %v1782 = vld [vmem:[%s2 + $0x84] sm:$0xf]
  %v1783 = vld [vmem:[%s2 + $0x88] sm:$0xf]
  %v1784 = vld [vmem:[%s2 + $0x8c] sm:$0xf]
  %v1785 = vld [vmem:[%s2 + $0x90] sm:$0xf]
  %v1786 = vld [vmem:[%s2 + $0x94] sm:$0xf]
  %v1787 = vld [vmem:[%s2 + $0x98] sm:$0xf]
  %v1788 = vld [vmem:[%s2 + $0x9c] sm:$0xf]
  %v1789 = vld [vmem:[%s2 + $0xa0] sm:$0xf]
  %v1790 = vld [vmem:[%s2 + $0xa4] sm:$0xf]
  %v1791 = vld [vmem:[%s2 + $0xa8] sm:$0xf]
  %v1792 = vld [vmem:[%s2 + $0xac] sm:$0xf]
  %v1793 = vld [vmem:[%s2 + $0xb0] sm:$0xf]
  %v1794 = vld [vmem:[%s2 + $0xb4] sm:$0xf]
  %v1795 = vld [vmem:[%s2 + $0xb8] sm:$0xf]
  %v1796 = vld [vmem:[%s2 + $0xbc] sm:$0xf]
  %v1797 = vld [vmem:[%s2 + $0xc0] sm:$0xf]
  %v1798 = vld [vmem:[%s2 + $0xc4] sm:$0xf]
  %v1799 = vld [vmem:[%s2 + $0xc8] sm:$0xf]
  %v1800 = vld [vmem:[%s2 + $0xcc] sm:$0xf]
  %v1801 = vld [vmem:[%s2 + $0xd0] sm:$0xf]
  %v1802 = vld [vmem:[%s2 + $0xd4] sm:$0xf]
  %v1803 = vld [vmem:[%s2 + $0xd8] sm:$0xf]
  %v1804 = vld [vmem:[%s2 + $0xdc] sm:$0xf]
  %v1805 = vld [vmem:[%s2 + $0xe0] sm:$0xf]
  %v1806 = vld [vmem:[%s2 + $0xe4] sm:$0xf]
  %v1807 = vld [vmem:[%s2 + $0xe8] sm:$0xf]
  %v1808 = vld [vmem:[%s2 + $0xec] sm:$0xf]
  %v1809 = vld [vmem:[%s3 + $0xa] sm:$0x1]
  %v1810 = vld [vmem:[%s3 + $0xb] sm:$0x1]
  %v1811 = vld [vmem:[%s3 + $0xc] sm:$0x1]
  %v1812 = vld [vmem:[%s3 + $0xd] sm:$0x1]
  %v1813 = vld [vmem:[%s3 + $0xe] sm:$0x1]
  %v1814 = vld [vmem:[%s3 + $0xf] sm:$0x1]
  %v1815 = vld [vmem:[%s3 + $0x10] sm:$0x1]
  %v1816 = vld [vmem:[%s3 + $0x11] sm:$0x1]
  %v1817 = vld [vmem:[%s3 + $0x12] sm:$0x1]
  %v1818 = vld [vmem:[%s3 + $0x13] sm:$0x1]
  %v1819 = vpack.c.bf16 %v1774, %v1773
  %v1820 = vpack.c.bf16 %v1776, %v1775
  %v1821 = vpack.c.bf16 %v1778, %v1777
  %v1822 = vpack.c.bf16 %v1780, %v1779
  %v1823 = vlaneseq
  %v1824 = vshrl.u32 %v1823, 7
  %v1825 = vsub.s32 0, %v1824
  %v1826 = vrot.slane %v1809, %v1825
  %v1831 = vunpack.c.l.b16 %v1781
  %v1832 = vunpack.c.l.b16 %v1782
  %v1833 = vunpack.c.l.b16 %v1783
  %v1834 = vunpack.c.l.b16 %v1784
  %v1835 = vpack.c.b16 %v1832, %v1831
  %v1836 = vpack.c.b16 %v1834, %v1833
  %v1840 = vsel %vm147, %v1819, 0
  %v1843 = vsel %vm147, %v1820, 0
  %v1846 = vsel %vm147, %v1821, 0
  %v1849 = vsel %vm147, %v1822, 0
  %1851 = vmatprep.subr.bf16.mxu0 0
  %1852 = vmatpush1.bf16.msra.mxu0 %v1835
  %1853 = vmatprep.subr.bf16.mxu0 0
  %1854 = vmatpush1.bf16.msra.mxu0 %v1836
  %1855 = vmatprep.subr.bf16.mxu0 0
  %1856 = vmatpush1.bf16.msra.mxu0 0
  %1857 = vmatprep.subr.bf16.mxu0 0
  %1858 = vmatpush1.bf16.msra.mxu0 0
  %1859 = vmatprep.subr.bf16.mxu0 0
  %1860 = vmatpush1.bf16.msra.mxu0 0
  %1861 = vmatprep.subr.bf16.mxu0 0
  %1862 = vmatpush1.bf16.msra.mxu0 0
  %1863 = vmatprep.subr.bf16.mxu0 0
  %1864 = vmatpush1.bf16.msra.mxu0 0
  %1865 = vmatprep.subr.bf16.mxu0 0
  %1866 = vmatpush1.bf16.msra.mxu0 0
  %1867 = vmatprep.subr.bf16.mxu0 0
  %1868 = vmatpush1.bf16.msra.mxu0 0
  %1869 = vmatprep.subr.bf16.mxu0 0
  %1870 = vmatpush1.bf16.msra.mxu0 0
  %1871 = vmatprep.subr.bf16.mxu0 0
  %1872 = vmatpush1.bf16.msra.mxu0 0
  %1873 = vmatprep.subr.bf16.mxu0 0
  %1874 = vmatpush1.bf16.msra.mxu0 0
  %1875 = vmatprep.subr.bf16.mxu0 0
  %1876 = vmatpush1.bf16.msra.mxu0 0
  %1877 = vmatprep.subr.bf16.mxu0 0
  %1878 = vmatpush1.bf16.msra.mxu0 0
  %1879 = vmatprep.subr.bf16.mxu0 0
  %1880 = vmatpush1.bf16.msra.mxu0 0
  %1881 = vmatprep.subr.bf16.mxu0 0
  %1882 = vmatpush1.bf16.msra.mxu0 0
  %1883 = vmatprep.mubr.bf16.mxu0 0
  %1884 = vmatmul.mubr.bf16.gmra.mrb[0].mxu0 %v1840
  %v1885 = vpop.f32.mrb[0].mxu0
  %v1886 = vadd.f32 %v1826, %v1885
  %v1887 = vpop.f32.mrb[0].mxu0
  %v1888 = vpop.f32.mrb[0].mxu0
  %v1889 = vadd.f32 %v1826, %v1888
  %v1890 = vpop.f32.mrb[0].mxu0
  %1891 = vmatprep.mubr.bf16.mxu0 0
  %1892 = vmatmul.mubr.bf16.gmra.mrb[0].mxu0 %v1843
  %v1893 = vpop.f32.mrb[0].mxu0
  %v1894 = vadd.f32 %v1826, %v1893
  %v1895 = vpop.f32.mrb[0].mxu0
  %v1896 = vpop.f32.mrb[0].mxu0
  %v1897 = vadd.f32 %v1826, %v1896
  %v1898 = vpop.f32.mrb[0].mxu0
  %1899 = vmatprep.mubr.bf16.mxu0 0
  %1900 = vmatmul.mubr.bf16.gmra.mrb[0].mxu0 %v1846
  %v1901 = vpop.f32.mrb[0].mxu0
  %v1902 = vadd.f32 %v1826, %v1901
  %v1903 = vpop.f32.mrb[0].mxu0
  %v1904 = vpop.f32.mrb[0].mxu0
  %v1905 = vadd.f32 %v1826, %v1904
  %v1906 = vpop.f32.mrb[0].mxu0
  %1907 = vmatprep.mubr.bf16.mxu0 0
  %1908 = vmatmul.mubr.bf16.gmra.mrb[0].mxu0 %v1849
  %v1909 = vpop.f32.mrb[0].mxu0
  %v1910 = vadd.f32 %v1826, %v1909
  %v1911 = vpop.f32.mrb[0].mxu0
  %v1912 = vpop.f32.mrb[0].mxu0
  %v1913 = vadd.f32 %v1826, %v1912
  %v1914 = vpop.f32.mrb[0].mxu0
  %1915 = vdwg.mxu0
  %v1916 = vlaneseq
  %v1917 = vshrl.u32 %v1916, 7
  %v1918 = vsub.s32 0, %v1917
  %v1919 = vrot.slane %v1810, %v1918
  %v1924 = vunpack.c.l.b16 %v1785
  %v1925 = vunpack.c.l.b16 %v1786
  %v1926 = vunpack.c.l.b16 %v1787
  %v1927 = vunpack.c.l.b16 %v1788
  %v1928 = vpack.c.b16 %v1925, %v1924
  %v1929 = vpack.c.b16 %v1927, %v1926
  %1932 = vmatprep.subr.bf16.mxu0 0
  %1933 = vmatpush1.bf16.msra.mxu0 %v1928
  %1934 = vmatprep.subr.bf16.mxu0 0
  %1935 = vmatpush1.bf16.msra.mxu0 %v1929
  %1936 = vmatprep.subr.bf16.mxu0 0
  %1937 = vmatpush1.bf16.msra.mxu0 0
  %1938 = vmatprep.subr.bf16.mxu0 0
  %1939 = vmatpush1.bf16.msra.mxu0 0
  %1940 = vmatprep.subr.bf16.mxu0 0
  %1941 = vmatpush1.bf16.msra.mxu0 0
  %1942 = vmatprep.subr.bf16.mxu0 0
  %1943 = vmatpush1.bf16.msra.mxu0 0
  %1944 = vmatprep.subr.bf16.mxu0 0
  %1945 = vmatpush1.bf16.msra.mxu0 0
  %1946 = vmatprep.subr.bf16.mxu0 0
  %1947 = vmatpush1.bf16.msra.mxu0 0
  %1948 = vmatprep.subr.bf16.mxu0 0
  %1949 = vmatpush1.bf16.msra.mxu0 0
  %1950 = vmatprep.subr.bf16.mxu0 0
  %1951 = vmatpush1.bf16.msra.mxu0 0
  %1952 = vmatprep.subr.bf16.mxu0 0
  %1953 = vmatpush1.bf16.msra.mxu0 0
  %1954 = vmatprep.subr.bf16.mxu0 0
  %1955 = vmatpush1.bf16.msra.mxu0 0
  %1956 = vmatprep.subr.bf16.mxu0 0
  %1957 = vmatpush1.bf16.msra.mxu0 0
  %1958 = vmatprep.subr.bf16.mxu0 0
  %1959 = vmatpush1.bf16.msra.mxu0 0
  %1960 = vmatprep.subr.bf16.mxu0 0
  %1961 = vmatpush1.bf16.msra.mxu0 0
  %1962 = vmatprep.subr.bf16.mxu0 0
  %1963 = vmatpush1.bf16.msra.mxu0 0
  %1964 = vmatprep.mubr.bf16.mxu0 0
  %1965 = vmatmul.mubr.bf16.gmra.mrb[0].mxu0 %v1840
  %v1966 = vpop.f32.mrb[0].mxu0
  %v1967 = vadd.f32 %v1919, %v1966
  %v1968 = vpop.f32.mrb[0].mxu0
  %v1969 = vpop.f32.mrb[0].mxu0
  %v1970 = vadd.f32 %v1919, %v1969
  %v1971 = vpop.f32.mrb[0].mxu0
  %1972 = vmatprep.mubr.bf16.mxu0 0
  %1973 = vmatmul.mubr.bf16.gmra.mrb[0].mxu0 %v1843
  %v1974 = vpop.f32.mrb[0].mxu0
  %v1975 = vadd.f32 %v1919, %v1974
  %v1976 = vpop.f32.mrb[0].mxu0
  %v1977 = vpop.f32.mrb[0].mxu0
  %v1978 = vadd.f32 %v1919, %v1977
  %v1979 = vpop.f32.mrb[0].mxu0
  %1980 = vmatprep.mubr.bf16.mxu0 0
  %1981 = vmatmul.mubr.bf16.gmra.mrb[0].mxu0 %v1846
  %v1982 = vpop.f32.mrb[0].mxu0
  %v1983 = vadd.f32 %v1919, %v1982
  %v1984 = vpop.f32.mrb[0].mxu0
  %v1985 = vpop.f32.mrb[0].mxu0
  %v1986 = vadd.f32 %v1919, %v1985
  %v1987 = vpop.f32.mrb[0].mxu0
  %1988 = vmatprep.mubr.bf16.mxu0 0
  %1989 = vmatmul.mubr.bf16.gmra.mrb[0].mxu0 %v1849
  %v1990 = vpop.f32.mrb[0].mxu0
  %v1991 = vadd.f32 %v1919, %v1990
  %v1992 = vpop.f32.mrb[0].mxu0
  %v1993 = vpop.f32.mrb[0].mxu0
  %v1994 = vadd.f32 %v1919, %v1993
  %v1995 = vpop.f32.mrb[0].mxu0
  %1996 = vdwg.mxu0
  %v1997 = vlaneseq
  %v1998 = vshrl.u32 %v1997, 7
  %v1999 = vsub.s32 0, %v1998
  %v2000 = vrot.slane %v1811, %v1999
  %v2005 = vunpack.c.l.b16 %v1789
  %v2006 = vunpack.c.l.b16 %v1790
  %v2007 = vunpack.c.l.b16 %v1791
  %v2008 = vunpack.c.l.b16 %v1792
  %v2009 = vpack.c.b16 %v2006, %v2005
  %v2010 = vpack.c.b16 %v2008, %v2007
  %2013 = vmatprep.subr.bf16.mxu0 0
  %2014 = vmatpush1.bf16.msra.mxu0 %v2009
  %2015 = vmatprep.subr.bf16.mxu0 0
  %2016 = vmatpush1.bf16.msra.mxu0 %v2010
  %2017 = vmatprep.subr.bf16.mxu0 0
  %2018 = vmatpush1.bf16.msra.mxu0 0
  %2019 = vmatprep.subr.bf16.mxu0 0
  %2020 = vmatpush1.bf16.msra.mxu0 0
  %2021 = vmatprep.subr.bf16.mxu0 0
  %2022 = vmatpush1.bf16.msra.mxu0 0
  %2023 = vmatprep.subr.bf16.mxu0 0
  %2024 = vmatpush1.bf16.msra.mxu0 0
  %2025 = vmatprep.subr.bf16.mxu0 0
  %2026 = vmatpush1.bf16.msra.mxu0 0
  %2027 = vmatprep.subr.bf16.mxu0 0
  %2028 = vmatpush1.bf16.msra.mxu0 0
  %2029 = vmatprep.subr.bf16.mxu0 0
  %2030 = vmatpush1.bf16.msra.mxu0 0
  %2031 = vmatprep.subr.bf16.mxu0 0
  %2032 = vmatpush1.bf16.msra.mxu0 0
  %2033 = vmatprep.subr.bf16.mxu0 0
  %2034 = vmatpush1.bf16.msra.mxu0 0
  %2035 = vmatprep.subr.bf16.mxu0 0
  %2036 = vmatpush1.bf16.msra.mxu0 0
  %2037 = vmatprep.subr.bf16.mxu0 0
  %2038 = vmatpush1.bf16.msra.mxu0 0
  %2039 = vmatprep.subr.bf16.mxu0 0
  %2040 = vmatpush1.bf16.msra.mxu0 0
  %2041 = vmatprep.subr.bf16.mxu0 0
  %2042 = vmatpush1.bf16.msra.mxu0 0
  %2043 = vmatprep.subr.bf16.mxu0 0
  %2044 = vmatpush1.bf16.msra.mxu0 0
  %2045 = vmatprep.mubr.bf16.mxu0 0
  %2046 = vmatmul.mubr.bf16.gmra.mrb[0].mxu0 %v1840
  %v2047 = vpop.f32.mrb[0].mxu0
  %v2048 = vadd.f32 %v2000, %v2047
  %v2049 = vpop.f32.mrb[0].mxu0
  %v2050 = vpop.f32.mrb[0].mxu0
  %v2051 = vadd.f32 %v2000, %v2050
  %v2052 = vpop.f32.mrb[0].mxu0
  %2053 = vmatprep.mubr.bf16.mxu0 0
  %2054 = vmatmul.mubr.bf16.gmra.mrb[0].mxu0 %v1843
  %v2055 = vpop.f32.mrb[0].mxu0
  %v2056 = vadd.f32 %v2000, %v2055
  %v2057 = vpop.f32.mrb[0].mxu0
  %v2058 = vpop.f32.mrb[0].mxu0
  %v2059 = vadd.f32 %v2000, %v2058
  %v2060 = vpop.f32.mrb[0].mxu0
  %2061 = vmatprep.mubr.bf16.mxu0 0
  %2062 = vmatmul.mubr.bf16.gmra.mrb[0].mxu0 %v1846
  %v2063 = vpop.f32.mrb[0].mxu0
  %v2064 = vadd.f32 %v2000, %v2063
  %v2065 = vpop.f32.mrb[0].mxu0
  %v2066 = vpop.f32.mrb[0].mxu0
  %v2067 = vadd.f32 %v2000, %v2066
  %v2068 = vpop.f32.mrb[0].mxu0
  %2069 = vmatprep.mubr.bf16.mxu0 0
  %2070 = vmatmul.mubr.bf16.gmra.mrb[0].mxu0 %v1849
  %v2071 = vpop.f32.mrb[0].mxu0
  %v2072 = vadd.f32 %v2000, %v2071
  %v2073 = vpop.f32.mrb[0].mxu0
  %v2074 = vpop.f32.mrb[0].mxu0
  %v2075 = vadd.f32 %v2000, %v2074
  %v2076 = vpop.f32.mrb[0].mxu0
  %2077 = vdwg.mxu0
  %v2078 = vmul.f32 %v1886, %v1967
  %v2079 = vmul.f32 %v1889, %v1970
  %v2080 = vmul.f32 %v1894, %v1975
  %v2081 = vmul.f32 %v1897, %v1978
  %v2082 = vpack.c.bf16 %v2079, %v2078
  %v2083 = vpack.c.bf16 %v2081, %v2080
  %v2085 = vsel %vm147, %v2082, 0
  %v2088 = vsel %vm147, %v2083, 0
  %2090 = vmatprep.subr.bf16.mxu0 0
  %2091 = vmatpush1.bf16.msra.mxu0 %v401
  %2092 = vmatprep.subr.bf16.mxu0 0
  %2093 = vmatpush1.bf16.msra.mxu0 %v402
  %2094 = vmatprep.subr.bf16.mxu0 0
  %2095 = vmatpush1.bf16.msra.mxu0 0
  %2096 = vmatprep.subr.bf16.mxu0 0
  %2097 = vmatpush1.bf16.msra.mxu0 0
  %2098 = vmatprep.subr.bf16.mxu0 0
  %2099 = vmatpush1.bf16.msra.mxu0 0
  %2100 = vmatprep.subr.bf16.mxu0 0
  %2101 = vmatpush1.bf16.msra.mxu0 0
  %2102 = vmatprep.subr.bf16.mxu0 0
  %2103 = vmatpush1.bf16.msra.mxu0 0
  %2104 = vmatprep.subr.bf16.mxu0 0
  %2105 = vmatpush1.bf16.msra.mxu0 0
  %2106 = vmatprep.subr.bf16.mxu0 0
  %2107 = vmatpush1.bf16.msra.mxu0 0
  %2108 = vmatprep.subr.bf16.mxu0 0
  %2109 = vmatpush1.bf16.msra.mxu0 0
  %2110 = vmatprep.subr.bf16.mxu0 0
  %2111 = vmatpush1.bf16.msra.mxu0 0
  %2112 = vmatprep.subr.bf16.mxu0 0
  %2113 = vmatpush1.bf16.msra.mxu0 0
  %2114 = vmatprep.subr.bf16.mxu0 0
  %2115 = vmatpush1.bf16.msra.mxu0 0
  %2116 = vmatprep.subr.bf16.mxu0 0
  %2117 = vmatpush1.bf16.msra.mxu0 0
  %2118 = vmatprep.subr.bf16.mxu0 0
  %2119 = vmatpush1.bf16.msra.mxu0 0
  %2120 = vmatprep.subr.bf16.mxu0 0
  %2121 = vmatpush1.bf16.msra.mxu0 0
  %2122 = vmatprep.mubr.bf16.mxu0 0
  %2123 = vmatmul.mubr.bf16.gmra.mrb[0].mxu0 %v2085
  %v2124 = vpop.f32.mrb[0].mxu0
  %v2125 = vadd.f32 0.0, %v2124
  %v2126 = vpop.f32.mrb[0].mxu0
  %v2127 = vpop.f32.mrb[0].mxu0
  %v2128 = vadd.f32 0.0, %v2127
  %v2129 = vpop.f32.mrb[0].mxu0
  %2130 = vmatprep.mubr.bf16.mxu0 0
  %2131 = vmatmul.mubr.bf16.gmra.mrb[0].mxu0 %v2088
  %v2132 = vpop.f32.mrb[0].mxu0
  %v2133 = vadd.f32 0.0, %v2132
  %v2134 = vpop.f32.mrb[0].mxu0
  %v2135 = vpop.f32.mrb[0].mxu0
  %v2136 = vadd.f32 0.0, %v2135
  %v2137 = vpop.f32.mrb[0].mxu0
  %2138 = vdwg.mxu0
  %v2139 = vmul.f32 %v1886, %v1983
  %v2140 = vmul.f32 %v1889, %v1986
  %v2141 = vmul.f32 %v1894, %v1991
  %v2142 = vmul.f32 %v1897, %v1994
  %v2143 = vpack.c.bf16 %v2140, %v2139
  %v2144 = vpack.c.bf16 %v2142, %v2141
  %v2146 = vsel %vm147, %v2143, 0
  %v2149 = vsel %vm147, %v2144, 0
  %2151 = vmatprep.subr.bf16.mxu0 0
  %2152 = vmatpush1.bf16.msra.mxu0 %v401
  %2153 = vmatprep.subr.bf16.mxu0 0
  %2154 = vmatpush1.bf16.msra.mxu0 %v402
  %2155 = vmatprep.subr.bf16.mxu0 0
  %2156 = vmatpush1.bf16.msra.mxu0 0
  %2157 = vmatprep.subr.bf16.mxu0 0
  %2158 = vmatpush1.bf16.msra.mxu0 0
  %2159 = vmatprep.subr.bf16.mxu0 0
  %2160 = vmatpush1.bf16.msra.mxu0 0
  %2161 = vmatprep.subr.bf16.mxu0 0
  %2162 = vmatpush1.bf16.msra.mxu0 0
  %2163 = vmatprep.subr.bf16.mxu0 0
  %2164 = vmatpush1.bf16.msra.mxu0 0
  %2165 = vmatprep.subr.bf16.mxu0 0
  %2166 = vmatpush1.bf16.msra.mxu0 0
  %2167 = vmatprep.subr.bf16.mxu0 0
  %2168 = vmatpush1.bf16.msra.mxu0 0
  %2169 = vmatprep.subr.bf16.mxu0 0
  %2170 = vmatpush1.bf16.msra.mxu0 0
  %2171 = vmatprep.subr.bf16.mxu0 0
  %2172 = vmatpush1.bf16.msra.mxu0 0
  %2173 = vmatprep.subr.bf16.mxu0 0
  %2174 = vmatpush1.bf16.msra.mxu0 0
  %2175 = vmatprep.subr.bf16.mxu0 0
  %2176 = vmatpush1.bf16.msra.mxu0 0
  %2177 = vmatprep.subr.bf16.mxu0 0
  %2178 = vmatpush1.bf16.msra.mxu0 0
  %2179 = vmatprep.subr.bf16.mxu0 0
  %2180 = vmatpush1.bf16.msra.mxu0 0
  %2181 = vmatprep.subr.bf16.mxu0 0
  %2182 = vmatpush1.bf16.msra.mxu0 0
  %2183 = vmatprep.mubr.bf16.mxu0 0
  %2184 = vmatmul.mubr.bf16.gmra.mrb[0].mxu0 %v2146
  %v2185 = vpop.f32.mrb[0].mxu0
  %v2186 = vadd.f32 0.0, %v2185
  %v2187 = vpop.f32.mrb[0].mxu0
  %v2188 = vpop.f32.mrb[0].mxu0
  %v2189 = vadd.f32 0.0, %v2188
  %v2190 = vpop.f32.mrb[0].mxu0
  %2191 = vmatprep.mubr.bf16.mxu0 0
  %2192 = vmatmul.mubr.bf16.gmra.mrb[0].mxu0 %v2149
  %v2193 = vpop.f32.mrb[0].mxu0
  %v2194 = vadd.f32 0.0, %v2193
  %v2195 = vpop.f32.mrb[0].mxu0
  %v2196 = vpop.f32.mrb[0].mxu0
  %v2197 = vadd.f32 0.0, %v2196
  %v2198 = vpop.f32.mrb[0].mxu0
  %2199 = vdwg.mxu0
  %v2200 = vmax.f32 %v2125, %v2186
  %v2201 = vmax.f32 %v2128, %v2189
  %v2202 = vmax.f32 %v2133, %v2194
  %v2203 = vmax.f32 %v2136, %v2197
  %v2204 = vsub.f32 %v2125, %v2200
  %v2205 = vsub.f32 %v2128, %v2201
  %v2206 = vsub.f32 %v2133, %v2202
  %v2207 = vsub.f32 %v2136, %v2203
  %v2208 = vmul.f32 %v2204, 1.442695
  %v2209 = vpow.pop %v2208
  %v2210 = vmul.f32 %v2205, 1.442695
  %v2211 = vpow.pop %v2210
  %v2212 = vmul.f32 %v2206, 1.442695
  %v2213 = vpow.pop %v2212
  %v2214 = vmul.f32 %v2207, 1.442695
  %v2215 = vpow.pop %v2214
  %v2216 = vsub.f32 %v2186, %v2200
  %v2217 = vsub.f32 %v2189, %v2201
  %v2218 = vsub.f32 %v2194, %v2202
  %v2219 = vsub.f32 %v2197, %v2203
  %v2220 = vmul.f32 %v2216, 1.442695
  %v2221 = vpow.pop %v2220
  %v2222 = vmul.f32 %v2217, 1.442695
  %v2223 = vpow.pop %v2222
  %v2224 = vmul.f32 %v2218, 1.442695
  %v2225 = vpow.pop %v2224
  %v2226 = vmul.f32 %v2219, 1.442695
  %v2227 = vpow.pop %v2226
  %v2228 = vadd.f32 %v2209, %v2221
  %v2229 = vadd.f32 %v2211, %v2223
  %v2230 = vadd.f32 %v2213, %v2225
  %v2231 = vadd.f32 %v2215, %v2227
  %v2232 = vrcp.pop %v2228
  %v2233 = vrcp.pop %v2229
  %v2234 = vrcp.pop %v2230
  %v2235 = vrcp.pop %v2231
  %v2236 = vmul.f32 %v2209, %v2232
  %v2237 = vmul.f32 %v2211, %v2233
  %v2238 = vmul.f32 %v2213, %v2234
  %v2239 = vmul.f32 %v2215, %v2235
  %v2240 = vpack.c.bf16 %v2237, %v2236
  %v2241 = vpack.c.bf16 %v2239, %v2238
  %v2243 = vsel %vm563, %v2240, 0
  %v2246 = vsel %vm563, %v2241, 0
  %2248 = vmatprep.subr.bf16.mxu0 0
  %2249 = vmatpush1.bf16.msra.mxu0 %v572
  %2250 = vmatprep.subr.bf16.mxu0 0
  %2251 = vmatpush1.bf16.msra.mxu0 0
  %2252 = vmatprep.subr.bf16.mxu0 0
  %2253 = vmatpush1.bf16.msra.mxu0 0
  %2254 = vmatprep.subr.bf16.mxu0 0
  %2255 = vmatpush1.bf16.msra.mxu0 0
  %2256 = vmatprep.subr.bf16.mxu0 0
  %2257 = vmatpush1.bf16.msra.mxu0 0
  %2258 = vmatprep.subr.bf16.mxu0 0
  %2259 = vmatpush1.bf16.msra.mxu0 0
  %2260 = vmatprep.subr.bf16.mxu0 0
  %2261 = vmatpush1.bf16.msra.mxu0 0
  %2262 = vmatprep.subr.bf16.mxu0 0
  %2263 = vmatpush1.bf16.msra.mxu0 0
  %2264 = vmatprep.subr.bf16.mxu0 0
  %2265 = vmatpush1.bf16.msra.mxu0 0
  %2266 = vmatprep.subr.bf16.mxu0 0
  %2267 = vmatpush1.bf16.msra.mxu0 0
  %2268 = vmatprep.subr.bf16.mxu0 0
  %2269 = vmatpush1.bf16.msra.mxu0 0
  %2270 = vmatprep.subr.bf16.mxu0 0
  %2271 = vmatpush1.bf16.msra.mxu0 0
  %2272 = vmatprep.subr.bf16.mxu0 0
  %2273 = vmatpush1.bf16.msra.mxu0 0
  %2274 = vmatprep.subr.bf16.mxu0 0
  %2275 = vmatpush1.bf16.msra.mxu0 0
  %2276 = vmatprep.subr.bf16.mxu0 0
  %2277 = vmatpush1.bf16.msra.mxu0 0
  %2278 = vmatprep.subr.bf16.mxu0 0
  %2279 = vmatpush1.bf16.msra.mxu0 0
  %2280 = vmatprep.mubr.bf16.mxu0 0
  %2281 = vmatmul.mubr.bf16.gmra.mrb[0].mxu0 %v2243
  %v2282 = vpop.f32.mrb[0].mxu0
  %v2283 = vadd.f32 0.0, %v2282
  %v2284 = vpop.f32.mrb[0].mxu0
  %v2285 = vpop.f32.mrb[0].mxu0
  %v2286 = vadd.f32 0.0, %v2285
  %v2287 = vpop.f32.mrb[0].mxu0
  %2288 = vmatprep.mubr.bf16.mxu0 0
  %2289 = vmatmul.mubr.bf16.gmra.mrb[0].mxu0 %v2246
  %v2290 = vpop.f32.mrb[0].mxu0
  %v2291 = vadd.f32 0.0, %v2290
  %v2292 = vpop.f32.mrb[0].mxu0
  %v2293 = vpop.f32.mrb[0].mxu0
  %v2294 = vadd.f32 0.0, %v2293
  %v2295 = vpop.f32.mrb[0].mxu0
  %2296 = vdwg.mxu0
  %v2297 = vmul.f32 %v2283, %v2048
  %v2298 = vmul.f32 %v2286, %v2051
  %v2299 = vmul.f32 %v2291, %v2056
  %v2300 = vmul.f32 %v2294, %v2059
  %v2301 = vmul.f32 %v2221, %v2232
  %v2302 = vmul.f32 %v2223, %v2233
  %v2303 = vmul.f32 %v2225, %v2234
  %v2304 = vmul.f32 %v2227, %v2235
  %v2305 = vpack.c.bf16 %v2302, %v2301
  %v2306 = vpack.c.bf16 %v2304, %v2303
  %v2308 = vsel %vm563, %v2305, 0
  %v2311 = vsel %vm563, %v2306, 0
  %2313 = vmatprep.subr.bf16.mxu0 0
  %2314 = vmatpush1.bf16.msra.mxu0 %v572
  %2315 = vmatprep.subr.bf16.mxu0 0
  %2316 = vmatpush1.bf16.msra.mxu0 0
  %2317 = vmatprep.subr.bf16.mxu0 0
  %2318 = vmatpush1.bf16.msra.mxu0 0
  %2319 = vmatprep.subr.bf16.mxu0 0
  %2320 = vmatpush1.bf16.msra.mxu0 0
  %2321 = vmatprep.subr.bf16.mxu0 0
  %2322 = vmatpush1.bf16.msra.mxu0 0
  %2323 = vmatprep.subr.bf16.mxu0 0
  %2324 = vmatpush1.bf16.msra.mxu0 0
  %2325 = vmatprep.subr.bf16.mxu0 0
  %2326 = vmatpush1.bf16.msra.mxu0 0
  %2327 = vmatprep.subr.bf16.mxu0 0
  %2328 = vmatpush1.bf16.msra.mxu0 0
  %2329 = vmatprep.subr.bf16.mxu0 0
  %2330 = vmatpush1.bf16.msra.mxu0 0
  %2331 = vmatprep.subr.bf16.mxu0 0
  %2332 = vmatpush1.bf16.msra.mxu0 0
  %2333 = vmatprep.subr.bf16.mxu0 0
  %2334 = vmatpush1.bf16.msra.mxu0 0
  %2335 = vmatprep.subr.bf16.mxu0 0
  %2336 = vmatpush1.bf16.msra.mxu0 0
  %2337 = vmatprep.subr.bf16.mxu0 0
  %2338 = vmatpush1.bf16.msra.mxu0 0
  %2339 = vmatprep.subr.bf16.mxu0 0
  %2340 = vmatpush1.bf16.msra.mxu0 0
  %2341 = vmatprep.subr.bf16.mxu0 0
  %2342 = vmatpush1.bf16.msra.mxu0 0
  %2343 = vmatprep.subr.bf16.mxu0 0
  %2344 = vmatpush1.bf16.msra.mxu0 0
  %2345 = vmatprep.mubr.bf16.mxu0 0
  %2346 = vmatmul.mubr.bf16.gmra.mrb[0].mxu0 %v2308
  %v2347 = vpop.f32.mrb[0].mxu0
  %v2348 = vadd.f32 0.0, %v2347
  %v2349 = vpop.f32.mrb[0].mxu0
  %v2350 = vpop.f32.mrb[0].mxu0
  %v2351 = vadd.f32 0.0, %v2350
  %v2352 = vpop.f32.mrb[0].mxu0
  %2353 = vmatprep.mubr.bf16.mxu0 0
  %2354 = vmatmul.mubr.bf16.gmra.mrb[0].mxu0 %v2311
  %v2355 = vpop.f32.mrb[0].mxu0
  %v2356 = vadd.f32 0.0, %v2355
  %v2357 = vpop.f32.mrb[0].mxu0
  %v2358 = vpop.f32.mrb[0].mxu0
  %v2359 = vadd.f32 0.0, %v2358
  %v2360 = vpop.f32.mrb[0].mxu0
  %2361 = vdwg.mxu0
  %v2362 = vmul.f32 %v2348, %v2064
  %v2363 = vmul.f32 %v2351, %v2067
  %v2364 = vmul.f32 %v2356, %v2072
  %v2365 = vmul.f32 %v2359, %v2075
  %v2366 = vadd.f32 %v2297, %v2362
  %v2367 = vadd.f32 %v2298, %v2363
  %v2368 = vadd.f32 %v2299, %v2364
  %v2369 = vadd.f32 %v2300, %v2365
  %v2370 = vmul.f32 %v1902, %v1967
  %v2371 = vmul.f32 %v1905, %v1970
  %v2372 = vmul.f32 %v1910, %v1975
  %v2373 = vmul.f32 %v1913, %v1978
  %v2374 = vpack.c.bf16 %v2371, %v2370
  %v2375 = vpack.c.bf16 %v2373, %v2372
  %v2377 = vsel %vm147, %v2374, 0
  %v2380 = vsel %vm147, %v2375, 0
  %2382 = vmatprep.subr.bf16.mxu0 0
  %2383 = vmatpush1.bf16.msra.mxu0 %v401
  %2384 = vmatprep.subr.bf16.mxu0 0
  %2385 = vmatpush1.bf16.msra.mxu0 %v402
  %2386 = vmatprep.subr.bf16.mxu0 0
  %2387 = vmatpush1.bf16.msra.mxu0 0
  %2388 = vmatprep.subr.bf16.mxu0 0
  %2389 = vmatpush1.bf16.msra.mxu0 0
  %2390 = vmatprep.subr.bf16.mxu0 0
  %2391 = vmatpush1.bf16.msra.mxu0 0
  %2392 = vmatprep.subr.bf16.mxu0 0
  %2393 = vmatpush1.bf16.msra.mxu0 0
  %2394 = vmatprep.subr.bf16.mxu0 0
  %2395 = vmatpush1.bf16.msra.mxu0 0
  %2396 = vmatprep.subr.bf16.mxu0 0
  %2397 = vmatpush1.bf16.msra.mxu0 0
  %2398 = vmatprep.subr.bf16.mxu0 0
  %2399 = vmatpush1.bf16.msra.mxu0 0
  %2400 = vmatprep.subr.bf16.mxu0 0
  %2401 = vmatpush1.bf16.msra.mxu0 0
  %2402 = vmatprep.subr.bf16.mxu0 0
  %2403 = vmatpush1.bf16.msra.mxu0 0
  %2404 = vmatprep.subr.bf16.mxu0 0
  %2405 = vmatpush1.bf16.msra.mxu0 0
  %2406 = vmatprep.subr.bf16.mxu0 0
  %2407 = vmatpush1.bf16.msra.mxu0 0
  %2408 = vmatprep.subr.bf16.mxu0 0
  %2409 = vmatpush1.bf16.msra.mxu0 0
  %2410 = vmatprep.subr.bf16.mxu0 0
  %2411 = vmatpush1.bf16.msra.mxu0 0
  %2412 = vmatprep.subr.bf16.mxu0 0
  %2413 = vmatpush1.bf16.msra.mxu0 0
  %2414 = vmatprep.mubr.bf16.mxu0 0
  %2415 = vmatmul.mubr.bf16.gmra.mrb[0].mxu0 %v2377
  %v2416 = vpop.f32.mrb[0].mxu0
  %v2417 = vadd.f32 0.0, %v2416
  %v2418 = vpop.f32.mrb[0].mxu0
  %v2419 = vpop.f32.mrb[0].mxu0
  %v2420 = vadd.f32 0.0, %v2419
  %v2421 = vpop.f32.mrb[0].mxu0
  %2422 = vmatprep.mubr.bf16.mxu0 0
  %2423 = vmatmul.mubr.bf16.gmra.mrb[0].mxu0 %v2380
  %v2424 = vpop.f32.mrb[0].mxu0
  %v2425 = vadd.f32 0.0, %v2424
  %v2426 = vpop.f32.mrb[0].mxu0
  %v2427 = vpop.f32.mrb[0].mxu0
  %v2428 = vadd.f32 0.0, %v2427
  %v2429 = vpop.f32.mrb[0].mxu0
  %2430 = vdwg.mxu0
  %v2431 = vmul.f32 %v1902, %v1983
  %v2432 = vmul.f32 %v1905, %v1986
  %v2433 = vmul.f32 %v1910, %v1991
  %v2434 = vmul.f32 %v1913, %v1994
  %v2435 = vpack.c.bf16 %v2432, %v2431
  %v2436 = vpack.c.bf16 %v2434, %v2433
  %v2438 = vsel %vm147, %v2435, 0
  %v2441 = vsel %vm147, %v2436, 0
  %2443 = vmatprep.subr.bf16.mxu0 0
  %2444 = vmatpush1.bf16.msra.mxu0 %v401
  %2445 = vmatprep.subr.bf16.mxu0 0
  %2446 = vmatpush1.bf16.msra.mxu0 %v402
  %2447 = vmatprep.subr.bf16.mxu0 0
  %2448 = vmatpush1.bf16.msra.mxu0 0
  %2449 = vmatprep.subr.bf16.mxu0 0
  %2450 = vmatpush1.bf16.msra.mxu0 0
  %2451 = vmatprep.subr.bf16.mxu0 0
  %2452 = vmatpush1.bf16.msra.mxu0 0
  %2453 = vmatprep.subr.bf16.mxu0 0
  %2454 = vmatpush1.bf16.msra.mxu0 0
  %2455 = vmatprep.subr.bf16.mxu0 0
  %2456 = vmatpush1.bf16.msra.mxu0 0
  %2457 = vmatprep.subr.bf16.mxu0 0
  %2458 = vmatpush1.bf16.msra.mxu0 0
  %2459 = vmatprep.subr.bf16.mxu0 0
  %2460 = vmatpush1.bf16.msra.mxu0 0
  %2461 = vmatprep.subr.bf16.mxu0 0
  %2462 = vmatpush1.bf16.msra.mxu0 0
  %2463 = vmatprep.subr.bf16.mxu0 0
  %2464 = vmatpush1.bf16.msra.mxu0 0
  %2465 = vmatprep.subr.bf16.mxu0 0
  %2466 = vmatpush1.bf16.msra.mxu0 0
  %2467 = vmatprep.subr.bf16.mxu0 0
  %2468 = vmatpush1.bf16.msra.mxu0 0
  %2469 = vmatprep.subr.bf16.mxu0 0
  %2470 = vmatpush1.bf16.msra.mxu0 0
  %2471 = vmatprep.subr.bf16.mxu0 0
  %2472 = vmatpush1.bf16.msra.mxu0 0
  %2473 = vmatprep.subr.bf16.mxu0 0
  %2474 = vmatpush1.bf16.msra.mxu0 0
  %2475 = vmatprep.mubr.bf16.mxu0 0
  %2476 = vmatmul.mubr.bf16.gmra.mrb[0].mxu0 %v2438
  %v2477 = vpop.f32.mrb[0].mxu0
  %v2478 = vadd.f32 0.0, %v2477
  %v2479 = vpop.f32.mrb[0].mxu0
  %v2480 = vpop.f32.mrb[0].mxu0
  %v2481 = vadd.f32 0.0, %v2480
  %v2482 = vpop.f32.mrb[0].mxu0
  %2483 = vmatprep.mubr.bf16.mxu0 0
  %2484 = vmatmul.mubr.bf16.gmra.mrb[0].mxu0 %v2441
  %v2485 = vpop.f32.mrb[0].mxu0
  %v2486 = vadd.f32 0.0, %v2485
  %v2487 = vpop.f32.mrb[0].mxu0
  %v2488 = vpop.f32.mrb[0].mxu0
  %v2489 = vadd.f32 0.0, %v2488
  %v2490 = vpop.f32.mrb[0].mxu0
  %2491 = vdwg.mxu0
  %v2492 = vmax.f32 %v2417, %v2478
  %v2493 = vmax.f32 %v2420, %v2481
  %v2494 = vmax.f32 %v2425, %v2486
  %v2495 = vmax.f32 %v2428, %v2489
  %v2496 = vsub.f32 %v2417, %v2492
  %v2497 = vsub.f32 %v2420, %v2493
  %v2498 = vsub.f32 %v2425, %v2494
  %v2499 = vsub.f32 %v2428, %v2495
  %v2500 = vmul.f32 %v2496, 1.442695
  %v2501 = vpow.pop %v2500
  %v2502 = vmul.f32 %v2497, 1.442695
  %v2503 = vpow.pop %v2502
  %v2504 = vmul.f32 %v2498, 1.442695
  %v2505 = vpow.pop %v2504
  %v2506 = vmul.f32 %v2499, 1.442695
  %v2507 = vpow.pop %v2506
  %v2508 = vsub.f32 %v2478, %v2492
  %v2509 = vsub.f32 %v2481, %v2493
  %v2510 = vsub.f32 %v2486, %v2494
  %v2511 = vsub.f32 %v2489, %v2495
  %v2512 = vmul.f32 %v2508, 1.442695
  %v2513 = vpow.pop %v2512
  %v2514 = vmul.f32 %v2509, 1.442695
  %v2515 = vpow.pop %v2514
  %v2516 = vmul.f32 %v2510, 1.442695
  %v2517 = vpow.pop %v2516
  %v2518 = vmul.f32 %v2511, 1.442695
  %v2519 = vpow.pop %v2518
  %v2520 = vadd.f32 %v2501, %v2513
  %v2521 = vadd.f32 %v2503, %v2515
  %v2522 = vadd.f32 %v2505, %v2517
  %v2523 = vadd.f32 %v2507, %v2519
  %v2524 = vrcp.pop %v2520
  %v2525 = vrcp.pop %v2521
  %v2526 = vrcp.pop %v2522
  %v2527 = vrcp.pop %v2523
  %v2528 = vmul.f32 %v2501, %v2524
  %v2529 = vmul.f32 %v2503, %v2525
  %v2530 = vmul.f32 %v2505, %v2526
  %v2531 = vmul.f32 %v2507, %v2527
  %v2532 = vpack.c.bf16 %v2529, %v2528
  %v2533 = vpack.c.bf16 %v2531, %v2530
  %v2535 = vsel %vm563, %v2532, 0
  %v2538 = vsel %vm563, %v2533, 0
  %2540 = vmatprep.subr.bf16.mxu0 0
  %2541 = vmatpush1.bf16.msra.mxu0 %v572
  %2542 = vmatprep.subr.bf16.mxu0 0
  %2543 = vmatpush1.bf16.msra.mxu0 0
  %2544 = vmatprep.subr.bf16.mxu0 0
  %2545 = vmatpush1.bf16.msra.mxu0 0
  %2546 = vmatprep.subr.bf16.mxu0 0
  %2547 = vmatpush1.bf16.msra.mxu0 0
  %2548 = vmatprep.subr.bf16.mxu0 0
  %2549 = vmatpush1.bf16.msra.mxu0 0
  %2550 = vmatprep.subr.bf16.mxu0 0
  %2551 = vmatpush1.bf16.msra.mxu0 0
  %2552 = vmatprep.subr.bf16.mxu0 0
  %2553 = vmatpush1.bf16.msra.mxu0 0
  %2554 = vmatprep.subr.bf16.mxu0 0
  %2555 = vmatpush1.bf16.msra.mxu0 0
  %2556 = vmatprep.subr.bf16.mxu0 0
  %2557 = vmatpush1.bf16.msra.mxu0 0
  %2558 = vmatprep.subr.bf16.mxu0 0
  %2559 = vmatpush1.bf16.msra.mxu0 0
  %2560 = vmatprep.subr.bf16.mxu0 0
  %2561 = vmatpush1.bf16.msra.mxu0 0
  %2562 = vmatprep.subr.bf16.mxu0 0
  %2563 = vmatpush1.bf16.msra.mxu0 0
  %2564 = vmatprep.subr.bf16.mxu0 0
  %2565 = vmatpush1.bf16.msra.mxu0 0
  %2566 = vmatprep.subr.bf16.mxu0 0
  %2567 = vmatpush1.bf16.msra.mxu0 0
  %2568 = vmatprep.subr.bf16.mxu0 0
  %2569 = vmatpush1.bf16.msra.mxu0 0
  %2570 = vmatprep.subr.bf16.mxu0 0
  %2571 = vmatpush1.bf16.msra.mxu0 0
  %2572 = vmatprep.mubr.bf16.mxu0 0
  %2573 = vmatmul.mubr.bf16.gmra.mrb[0].mxu0 %v2535
  %v2574 = vpop.f32.mrb[0].mxu0
  %v2575 = vadd.f32 0.0, %v2574
  %v2576 = vpop.f32.mrb[0].mxu0
  %v2577 = vpop.f32.mrb[0].mxu0
  %v2578 = vadd.f32 0.0, %v2577
  %v2579 = vpop.f32.mrb[0].mxu0
  %2580 = vmatprep.mubr.bf16.mxu0 0
  %2581 = vmatmul.mubr.bf16.gmra.mrb[0].mxu0 %v2538
  %v2582 = vpop.f32.mrb[0].mxu0
  %v2583 = vadd.f32 0.0, %v2582
  %v2584 = vpop.f32.mrb[0].mxu0
  %v2585 = vpop.f32.mrb[0].mxu0
  %v2586 = vadd.f32 0.0, %v2585
  %v2587 = vpop.f32.mrb[0].mxu0
  %2588 = vdwg.mxu0
  %v2589 = vmul.f32 %v2575, %v2048
  %v2590 = vmul.f32 %v2578, %v2051
  %v2591 = vmul.f32 %v2583, %v2056
  %v2592 = vmul.f32 %v2586, %v2059
  %v2593 = vmul.f32 %v2513, %v2524
  %v2594 = vmul.f32 %v2515, %v2525
  %v2595 = vmul.f32 %v2517, %v2526
  %v2596 = vmul.f32 %v2519, %v2527
  %v2597 = vpack.c.bf16 %v2594, %v2593
  %v2598 = vpack.c.bf16 %v2596, %v2595
  %v2600 = vsel %vm563, %v2597, 0
  %v2603 = vsel %vm563, %v2598, 0
  %2605 = vmatprep.subr.bf16.mxu0 0
  %2606 = vmatpush1.bf16.msra.mxu0 %v572
  %2607 = vmatprep.subr.bf16.mxu0 0
  %2608 = vmatpush1.bf16.msra.mxu0 0
  %2609 = vmatprep.subr.bf16.mxu0 0
  %2610 = vmatpush1.bf16.msra.mxu0 0
  %2611 = vmatprep.subr.bf16.mxu0 0
  %2612 = vmatpush1.bf16.msra.mxu0 0
  %2613 = vmatprep.subr.bf16.mxu0 0
  %2614 = vmatpush1.bf16.msra.mxu0 0
  %2615 = vmatprep.subr.bf16.mxu0 0
  %2616 = vmatpush1.bf16.msra.mxu0 0
  %2617 = vmatprep.subr.bf16.mxu0 0
  %2618 = vmatpush1.bf16.msra.mxu0 0
  %2619 = vmatprep.subr.bf16.mxu0 0
  %2620 = vmatpush1.bf16.msra.mxu0 0
  %2621 = vmatprep.subr.bf16.mxu0 0
  %2622 = vmatpush1.bf16.msra.mxu0 0
  %2623 = vmatprep.subr.bf16.mxu0 0
  %2624 = vmatpush1.bf16.msra.mxu0 0
  %2625 = vmatprep.subr.bf16.mxu0 0
  %2626 = vmatpush1.bf16.msra.mxu0 0
  %2627 = vmatprep.subr.bf16.mxu0 0
  %2628 = vmatpush1.bf16.msra.mxu0 0
  %2629 = vmatprep.subr.bf16.mxu0 0
  %2630 = vmatpush1.bf16.msra.mxu0 0
  %2631 = vmatprep.subr.bf16.mxu0 0
  %2632 = vmatpush1.bf16.msra.mxu0 0
  %2633 = vmatprep.subr.bf16.mxu0 0
  %2634 = vmatpush1.bf16.msra.mxu0 0
  %2635 = vmatprep.subr.bf16.mxu0 0
  %2636 = vmatpush1.bf16.msra.mxu0 0
  %2637 = vmatprep.mubr.bf16.mxu0 0
  %2638 = vmatmul.mubr.bf16.gmra.mrb[0].mxu0 %v2600
  %v2639 = vpop.f32.mrb[0].mxu0
  %v2640 = vadd.f32 0.0, %v2639
  %v2641 = vpop.f32.mrb[0].mxu0
  %v2642 = vpop.f32.mrb[0].mxu0
  %v2643 = vadd.f32 0.0, %v2642
  %v2644 = vpop.f32.mrb[0].mxu0
  %2645 = vmatprep.mubr.bf16.mxu0 0
  %2646 = vmatmul.mubr.bf16.gmra.mrb[0].mxu0 %v2603
  %v2647 = vpop.f32.mrb[0].mxu0
  %v2648 = vadd.f32 0.0, %v2647
  %v2649 = vpop.f32.mrb[0].mxu0
  %v2650 = vpop.f32.mrb[0].mxu0
  %v2651 = vadd.f32 0.0, %v2650
  %v2652 = vpop.f32.mrb[0].mxu0
  %2653 = vdwg.mxu0
  %v2654 = vmul.f32 %v2640, %v2064
  %v2655 = vmul.f32 %v2643, %v2067
  %v2656 = vmul.f32 %v2648, %v2072
  %v2657 = vmul.f32 %v2651, %v2075
  %v2658 = vadd.f32 %v2589, %v2654
  %v2659 = vadd.f32 %v2590, %v2655
  %v2660 = vadd.f32 %v2591, %v2656
  %v2661 = vadd.f32 %v2592, %v2657
  %v2662 = vpack.c.bf16 %v2367, %v2366
  %v2663 = vpack.c.bf16 %v2369, %v2368
  %v2664 = vpack.c.bf16 %v2659, %v2658
  %v2665 = vpack.c.bf16 %v2661, %v2660
  %v2666 = vlaneseq
  %v2667 = vshrl.u32 %v2666, 7
  %v2668 = vsub.s32 0, %v2667
  %v2669 = vrot.slane %v1812, %v2668
  %v2674 = vunpack.c.l.b16 %v1793
  %v2675 = vunpack.c.l.b16 %v1794
  %v2676 = vunpack.c.l.b16 %v1795
  %v2677 = vunpack.c.l.b16 %v1796
  %v2678 = vpack.c.b16 %v2675, %v2674
  %v2679 = vpack.c.b16 %v2677, %v2676
  %v2683 = vsel %vm147, %v2662, 0
  %v2686 = vsel %vm147, %v2663, 0
  %v2689 = vsel %vm147, %v2664, 0
  %v2692 = vsel %vm147, %v2665, 0
  %2694 = vmatprep.subr.bf16.mxu0 0
  %2695 = vmatpush1.bf16.msra.mxu0 %v2678
  %2696 = vmatprep.subr.bf16.mxu0 0
  %2697 = vmatpush1.bf16.msra.mxu0 %v2679
  %2698 = vmatprep.subr.bf16.mxu0 0
  %2699 = vmatpush1.bf16.msra.mxu0 0
  %2700 = vmatprep.subr.bf16.mxu0 0
  %2701 = vmatpush1.bf16.msra.mxu0 0
  %2702 = vmatprep.subr.bf16.mxu0 0
  %2703 = vmatpush1.bf16.msra.mxu0 0
  %2704 = vmatprep.subr.bf16.mxu0 0
  %2705 = vmatpush1.bf16.msra.mxu0 0
  %2706 = vmatprep.subr.bf16.mxu0 0
  %2707 = vmatpush1.bf16.msra.mxu0 0
  %2708 = vmatprep.subr.bf16.mxu0 0
  %2709 = vmatpush1.bf16.msra.mxu0 0
  %2710 = vmatprep.subr.bf16.mxu0 0
  %2711 = vmatpush1.bf16.msra.mxu0 0
  %2712 = vmatprep.subr.bf16.mxu0 0
  %2713 = vmatpush1.bf16.msra.mxu0 0
  %2714 = vmatprep.subr.bf16.mxu0 0
  %2715 = vmatpush1.bf16.msra.mxu0 0
  %2716 = vmatprep.subr.bf16.mxu0 0
  %2717 = vmatpush1.bf16.msra.mxu0 0
  %2718 = vmatprep.subr.bf16.mxu0 0
  %2719 = vmatpush1.bf16.msra.mxu0 0
  %2720 = vmatprep.subr.bf16.mxu0 0
  %2721 = vmatpush1.bf16.msra.mxu0 0
  %2722 = vmatprep.subr.bf16.mxu0 0
  %2723 = vmatpush1.bf16.msra.mxu0 0
  %2724 = vmatprep.subr.bf16.mxu0 0
  %2725 = vmatpush1.bf16.msra.mxu0 0
  %2726 = vmatprep.mubr.bf16.mxu0 0
  %2727 = vmatmul.mubr.bf16.gmra.mrb[0].mxu0 %v2683
  %v2728 = vpop.f32.mrb[0].mxu0
  %v2729 = vadd.f32 %v2669, %v2728
  %v2730 = vpop.f32.mrb[0].mxu0
  %v2731 = vpop.f32.mrb[0].mxu0
  %v2732 = vadd.f32 %v2669, %v2731
  %v2733 = vpop.f32.mrb[0].mxu0
  %2734 = vmatprep.mubr.bf16.mxu0 0
  %2735 = vmatmul.mubr.bf16.gmra.mrb[0].mxu0 %v2686
  %v2736 = vpop.f32.mrb[0].mxu0
  %v2737 = vadd.f32 %v2669, %v2736
  %v2738 = vpop.f32.mrb[0].mxu0
  %v2739 = vpop.f32.mrb[0].mxu0
  %v2740 = vadd.f32 %v2669, %v2739
  %v2741 = vpop.f32.mrb[0].mxu0
  %2742 = vmatprep.mubr.bf16.mxu0 0
  %2743 = vmatmul.mubr.bf16.gmra.mrb[0].mxu0 %v2689
  %v2744 = vpop.f32.mrb[0].mxu0
  %v2745 = vadd.f32 %v2669, %v2744
  %v2746 = vpop.f32.mrb[0].mxu0
  %v2747 = vpop.f32.mrb[0].mxu0
  %v2748 = vadd.f32 %v2669, %v2747
  %v2749 = vpop.f32.mrb[0].mxu0
  %2750 = vmatprep.mubr.bf16.mxu0 0
  %2751 = vmatmul.mubr.bf16.gmra.mrb[0].mxu0 %v2692
  %v2752 = vpop.f32.mrb[0].mxu0
  %v2753 = vadd.f32 %v2669, %v2752
  %v2754 = vpop.f32.mrb[0].mxu0
  %v2755 = vpop.f32.mrb[0].mxu0
  %v2756 = vadd.f32 %v2669, %v2755
  %v2757 = vpop.f32.mrb[0].mxu0
  %2758 = vdwg.mxu0
  %v2759 = vadd.f32 %v1773, %v2729
  %v2760 = vadd.f32 %v1774, %v2732
  %v2761 = vadd.f32 %v1775, %v2737
  %v2762 = vadd.f32 %v1776, %v2740
  %v2763 = vadd.f32 %v1777, %v2745
  %v2764 = vadd.f32 %v1778, %v2748
  %v2765 = vadd.f32 %v1779, %v2753
  %v2766 = vadd.f32 %v1780, %v2756
  %v2767 = vsel %vm147, %v2759, 0.0
  %2768 = vadd.xlane.f32.xlu0 %v2767
  %v2769 = vpop.xlane.xlu0 %2768
  %v2770 = vsel %vm147, %v2760, 0.0
  %2771 = vadd.xlane.f32.xlu0 %v2770
  %v2772 = vpop.xlane.xlu0 %2771
  %v2773 = vsel %vm147, %v2761, 0.0
  %2774 = vadd.xlane.f32.xlu0 %v2773
  %v2775 = vpop.xlane.xlu0 %2774
  %v2776 = vsel %vm147, %v2762, 0.0
  %2777 = vadd.xlane.f32.xlu0 %v2776
  %v2778 = vpop.xlane.xlu0 %2777
  %v2779 = vsel %vm147, %v2763, 0.0
  %2780 = vadd.xlane.f32.xlu0 %v2779
  %v2781 = vpop.xlane.xlu0 %2780
  %v2782 = vsel %vm147, %v2764, 0.0
  %2783 = vadd.xlane.f32.xlu0 %v2782
  %v2784 = vpop.xlane.xlu0 %2783
  %v2785 = vsel %vm147, %v2765, 0.0
  %2786 = vadd.xlane.f32.xlu0 %v2785
  %v2787 = vpop.xlane.xlu0 %2786
  %v2788 = vsel %vm147, %v2766, 0.0
  %2789 = vadd.xlane.f32.xlu0 %v2788
  %v2790 = vpop.xlane.xlu0 %2789
  %v2791 = vmul.f32 %v2769, %v1117
  %v2792 = vmul.f32 %v2772, %v1117
  %v2793 = vmul.f32 %v2775, %v1117
  %v2794 = vmul.f32 %v2778, %v1117
  %v2795 = vmul.f32 %v2781, %v1117
  %v2796 = vmul.f32 %v2784, %v1117
  %v2797 = vmul.f32 %v2787, %v1117
  %v2798 = vmul.f32 %v2790, %v1117
  %v2799 = vsub.f32 %v2759, %v2791
  %v2800 = vsub.f32 %v2760, %v2792
  %v2801 = vsub.f32 %v2761, %v2793
  %v2802 = vsub.f32 %v2762, %v2794
  %v2803 = vsub.f32 %v2763, %v2795
  %v2804 = vsub.f32 %v2764, %v2796
  %v2805 = vsub.f32 %v2765, %v2797
  %v2806 = vsub.f32 %v2766, %v2798
  %v2807 = vmul.f32 %v2799, %v2799
  %v2808 = vmul.f32 %v2800, %v2800
  %v2809 = vmul.f32 %v2801, %v2801
  %v2810 = vmul.f32 %v2802, %v2802
  %v2811 = vmul.f32 %v2803, %v2803
  %v2812 = vmul.f32 %v2804, %v2804
  %v2813 = vmul.f32 %v2805, %v2805
  %v2814 = vmul.f32 %v2806, %v2806
  %v2815 = vsel %vm147, %v2807, 0.0
  %2816 = vadd.xlane.f32.xlu0 %v2815
  %v2817 = vpop.xlane.xlu0 %2816
  %v2818 = vsel %vm147, %v2808, 0.0
  %2819 = vadd.xlane.f32.xlu0 %v2818
  %v2820 = vpop.xlane.xlu0 %2819
  %v2821 = vsel %vm147, %v2809, 0.0
  %2822 = vadd.xlane.f32.xlu0 %v2821
  %v2823 = vpop.xlane.xlu0 %2822
  %v2824 = vsel %vm147, %v2810, 0.0
  %2825 = vadd.xlane.f32.xlu0 %v2824
  %v2826 = vpop.xlane.xlu0 %2825
  %v2827 = vsel %vm147, %v2811, 0.0
  %2828 = vadd.xlane.f32.xlu0 %v2827
  %v2829 = vpop.xlane.xlu0 %2828
  %v2830 = vsel %vm147, %v2812, 0.0
  %2831 = vadd.xlane.f32.xlu0 %v2830
  %v2832 = vpop.xlane.xlu0 %2831
  %v2833 = vsel %vm147, %v2813, 0.0
  %2834 = vadd.xlane.f32.xlu0 %v2833
  %v2835 = vpop.xlane.xlu0 %2834
  %v2836 = vsel %vm147, %v2814, 0.0
  %2837 = vadd.xlane.f32.xlu0 %v2836
  %v2838 = vpop.xlane.xlu0 %2837
  %v2839 = vmul.f32 %v2817, %v1117
  %v2840 = vmul.f32 %v2820, %v1117
  %v2841 = vmul.f32 %v2823, %v1117
  %v2842 = vmul.f32 %v2826, %v1117
  %v2843 = vmul.f32 %v2829, %v1117
  %v2844 = vmul.f32 %v2832, %v1117
  %v2845 = vmul.f32 %v2835, %v1117
  %v2846 = vmul.f32 %v2838, %v1117
  %v2847 = vadd.f32 %v2839, 1e-05
  %v2848 = vadd.f32 %v2840, 1e-05
  %v2849 = vadd.f32 %v2841, 1e-05
  %v2850 = vadd.f32 %v2842, 1e-05
  %v2851 = vadd.f32 %v2843, 1e-05
  %v2852 = vadd.f32 %v2844, 1e-05
  %v2853 = vadd.f32 %v2845, 1e-05
  %v2854 = vadd.f32 %v2846, 1e-05
  %v2855 = vrsqrt.pop %v2847
  %v2856 = vrsqrt.pop %v2848
  %v2857 = vrsqrt.pop %v2849
  %v2858 = vrsqrt.pop %v2850
  %v2859 = vrsqrt.pop %v2851
  %v2860 = vrsqrt.pop %v2852
  %v2861 = vrsqrt.pop %v2853
  %v2862 = vrsqrt.pop %v2854
  %v2863 = vmul.f32 %v2799, %v2855
  %v2864 = vmul.f32 %v2800, %v2856
  %v2865 = vmul.f32 %v2801, %v2857
  %v2866 = vmul.f32 %v2802, %v2858
  %v2867 = vmul.f32 %v2803, %v2859
  %v2868 = vmul.f32 %v2804, %v2860
  %v2869 = vmul.f32 %v2805, %v2861
  %v2870 = vmul.f32 %v2806, %v2862
  %v2871 = vlaneseq
  %v2872 = vshrl.u32 %v2871, 7
  %v2873 = vsub.s32 0, %v2872
  %v2874 = vrot.slane %v1813, %v2873
  %v2875 = vmul.f32 %v2863, %v2874
  %v2876 = vmul.f32 %v2864, %v2874
  %v2877 = vmul.f32 %v2865, %v2874
  %v2878 = vmul.f32 %v2866, %v2874
  %v2879 = vmul.f32 %v2867, %v2874
  %v2880 = vmul.f32 %v2868, %v2874
  %v2881 = vmul.f32 %v2869, %v2874
  %v2882 = vmul.f32 %v2870, %v2874
  %v2883 = vlaneseq
  %v2884 = vshrl.u32 %v2883, 7
  %v2885 = vsub.s32 0, %v2884
  %v2886 = vrot.slane %v1814, %v2885
  %v2887 = vadd.f32 %v2875, %v2886
  %v2888 = vadd.f32 %v2876, %v2886
  %v2889 = vadd.f32 %v2877, %v2886
  %v2890 = vadd.f32 %v2878, %v2886
  %v2891 = vadd.f32 %v2879, %v2886
  %v2892 = vadd.f32 %v2880, %v2886
  %v2893 = vadd.f32 %v2881, %v2886
  %v2894 = vadd.f32 %v2882, %v2886
  %v2895 = vpack.c.bf16 %v2888, %v2887
  %v2896 = vpack.c.bf16 %v2890, %v2889
  %v2897 = vpack.c.bf16 %v2892, %v2891
  %v2898 = vpack.c.bf16 %v2894, %v2893
  %v2899 = vlaneseq
  %v2900 = vshrl.u32 %v2899, 7
  %v2901 = vsub.s32 0, %v2900
  %v2902 = vrot.slane %v1815, %v2901
  %v2907 = vunpack.c.l.b16 %v1797
  %v2908 = vunpack.c.l.b16 %v1798
  %v2909 = vunpack.c.l.b16 %v1799
  %v2910 = vunpack.c.l.b16 %v1800
  %v2911 = vpack.c.b16 %v2908, %v2907
  %v2912 = vpack.c.b16 %v2910, %v2909
  %v2916 = vsel %vm147, %v2895, 0
  %v2919 = vsel %vm147, %v2896, 0
  %v2922 = vsel %vm147, %v2897, 0
  %v2925 = vsel %vm147, %v2898, 0
  %2927 = vmatprep.subr.bf16.mxu0 0
  %2928 = vmatpush1.bf16.msra.mxu0 %v2911
  %2929 = vmatprep.subr.bf16.mxu0 0
  %2930 = vmatpush1.bf16.msra.mxu0 %v2912
  %2931 = vmatprep.subr.bf16.mxu0 0
  %2932 = vmatpush1.bf16.msra.mxu0 0
  %2933 = vmatprep.subr.bf16.mxu0 0
  %2934 = vmatpush1.bf16.msra.mxu0 0
  %2935 = vmatprep.subr.bf16.mxu0 0
  %2936 = vmatpush1.bf16.msra.mxu0 0
  %2937 = vmatprep.subr.bf16.mxu0 0
  %2938 = vmatpush1.bf16.msra.mxu0 0
  %2939 = vmatprep.subr.bf16.mxu0 0
  %2940 = vmatpush1.bf16.msra.mxu0 0
  %2941 = vmatprep.subr.bf16.mxu0 0
  %2942 = vmatpush1.bf16.msra.mxu0 0
  %2943 = vmatprep.subr.bf16.mxu0 0
  %2944 = vmatpush1.bf16.msra.mxu0 0
  %2945 = vmatprep.subr.bf16.mxu0 0
  %2946 = vmatpush1.bf16.msra.mxu0 0
  %2947 = vmatprep.subr.bf16.mxu0 0
  %2948 = vmatpush1.bf16.msra.mxu0 0
  %2949 = vmatprep.subr.bf16.mxu0 0
  %2950 = vmatpush1.bf16.msra.mxu0 0
  %2951 = vmatprep.subr.bf16.mxu0 0
  %2952 = vmatpush1.bf16.msra.mxu0 0
  %2953 = vmatprep.subr.bf16.mxu0 0
  %2954 = vmatpush1.bf16.msra.mxu0 0
  %2955 = vmatprep.subr.bf16.mxu0 0
  %2956 = vmatpush1.bf16.msra.mxu0 0
  %2957 = vmatprep.subr.bf16.mxu0 0
  %2958 = vmatpush1.bf16.msra.mxu0 0
  %2959 = vmatprep.mubr.bf16.mxu0 0
  %2960 = vmatmul.mubr.bf16.gmra.mrb[0].mxu0 %v2916
  %v2961 = vpop.f32.mrb[0].mxu0
  %v2962 = vadd.f32 %v2902, %v2961
  %v2963 = vpop.f32.mrb[0].mxu0
  %v2964 = vpop.f32.mrb[0].mxu0
  %v2965 = vadd.f32 %v2902, %v2964
  %v2966 = vpop.f32.mrb[0].mxu0
  %2967 = vmatprep.mubr.bf16.mxu0 0
  %2968 = vmatmul.mubr.bf16.gmra.mrb[0].mxu0 %v2919
  %v2969 = vpop.f32.mrb[0].mxu0
  %v2970 = vadd.f32 %v2902, %v2969
  %v2971 = vpop.f32.mrb[0].mxu0
  %v2972 = vpop.f32.mrb[0].mxu0
  %v2973 = vadd.f32 %v2902, %v2972
  %v2974 = vpop.f32.mrb[0].mxu0
  %2975 = vmatprep.mubr.bf16.mxu0 0
  %2976 = vmatmul.mubr.bf16.gmra.mrb[0].mxu0 %v2922
  %v2977 = vpop.f32.mrb[0].mxu0
  %v2978 = vadd.f32 %v2902, %v2977
  %v2979 = vpop.f32.mrb[0].mxu0
  %v2980 = vpop.f32.mrb[0].mxu0
  %v2981 = vadd.f32 %v2902, %v2980
  %v2982 = vpop.f32.mrb[0].mxu0
  %2983 = vmatprep.mubr.bf16.mxu0 0
  %2984 = vmatmul.mubr.bf16.gmra.mrb[0].mxu0 %v2925
  %v2985 = vpop.f32.mrb[0].mxu0
  %v2986 = vadd.f32 %v2902, %v2985
  %v2987 = vpop.f32.mrb[0].mxu0
  %v2988 = vpop.f32.mrb[0].mxu0
  %v2989 = vadd.f32 %v2902, %v2988
  %v2990 = vpop.f32.mrb[0].mxu0
  %2991 = vdwg.mxu0
  %v2992 = vmul.f32 %v2962, 0.5
  %v2993 = vmul.f32 %v2965, 0.5
  %v2994 = vmul.f32 %v2970, 0.5
  %v2995 = vmul.f32 %v2973, 0.5
  %v2996 = vmul.f32 %v2978, 0.5
  %v2997 = vmul.f32 %v2981, 0.5
  %v2998 = vmul.f32 %v2986, 0.5
  %v2999 = vmul.f32 %v2989, 0.5
  %v3000 = vmul.f32 %v2962, 0.70710677
  %v3001 = vmul.f32 %v2965, 0.70710677
  %v3002 = vmul.f32 %v2970, 0.70710677
  %v3003 = vmul.f32 %v2973, 0.70710677
  %v3004 = vmul.f32 %v2978, 0.70710677
  %v3005 = vmul.f32 %v2981, 0.70710677
  %v3006 = vmul.f32 %v2986, 0.70710677
  %v3007 = vmul.f32 %v2989, 0.70710677
  %v3008 = vand.u32 2147483647, %v3000
  %v3009 = vand.u32 2147483647, %v3001
  %v3010 = vand.u32 2147483647, %v3002
  %v3011 = vand.u32 2147483647, %v3003
  %v3012 = vand.u32 2147483647, %v3004
  %v3013 = vand.u32 2147483647, %v3005
  %v3014 = vand.u32 2147483647, %v3006
  %v3015 = vand.u32 2147483647, %v3007
  %v3016 = vmul.f32 %v3008, 0.3275911
  %v3017 = vmul.f32 %v3009, 0.3275911
  %v3018 = vmul.f32 %v3010, 0.3275911
  %v3019 = vmul.f32 %v3011, 0.3275911
  %v3020 = vmul.f32 %v3012, 0.3275911
  %v3021 = vmul.f32 %v3013, 0.3275911
  %v3022 = vmul.f32 %v3014, 0.3275911
  %v3023 = vmul.f32 %v3015, 0.3275911
  %v3024 = vadd.f32 %v3016, 1.0
  %v3025 = vadd.f32 %v3017, 1.0
  %v3026 = vadd.f32 %v3018, 1.0
  %v3027 = vadd.f32 %v3019, 1.0
  %v3028 = vadd.f32 %v3020, 1.0
  %v3029 = vadd.f32 %v3021, 1.0
  %v3030 = vadd.f32 %v3022, 1.0
  %v3031 = vadd.f32 %v3023, 1.0
  %v3032 = vrcp.pop %v3024
  %v3033 = vmul.f32 1.0, %v3032
  %v3034 = vrcp.pop %v3025
  %v3035 = vmul.f32 1.0, %v3034
  %v3036 = vrcp.pop %v3026
  %v3037 = vmul.f32 1.0, %v3036
  %v3038 = vrcp.pop %v3027
  %v3039 = vmul.f32 1.0, %v3038
  %v3040 = vrcp.pop %v3028
  %v3041 = vmul.f32 1.0, %v3040
  %v3042 = vrcp.pop %v3029
  %v3043 = vmul.f32 1.0, %v3042
  %v3044 = vrcp.pop %v3030
  %v3045 = vmul.f32 1.0, %v3044
  %v3046 = vrcp.pop %v3031
  %v3047 = vmul.f32 1.0, %v3046
  %v3048 = vmul.f32 %v3033, 1.0614054
  %v3049 = vmul.f32 %v3035, 1.0614054
  %v3050 = vmul.f32 %v3037, 1.0614054
  %v3051 = vmul.f32 %v3039, 1.0614054
  %v3052 = vmul.f32 %v3041, 1.0614054
  %v3053 = vmul.f32 %v3043, 1.0614054
  %v3054 = vmul.f32 %v3045, 1.0614054
  %v3055 = vmul.f32 %v3047, 1.0614054
  %v3056 = vadd.f32 %v3048, -1.4531521
  %v3057 = vadd.f32 %v3049, -1.4531521
  %v3058 = vadd.f32 %v3050, -1.4531521
  %v3059 = vadd.f32 %v3051, -1.4531521
  %v3060 = vadd.f32 %v3052, -1.4531521
  %v3061 = vadd.f32 %v3053, -1.4531521
  %v3062 = vadd.f32 %v3054, -1.4531521
  %v3063 = vadd.f32 %v3055, -1.4531521
  %v3064 = vmul.f32 %v3056, %v3033
  %v3065 = vmul.f32 %v3057, %v3035
  %v3066 = vmul.f32 %v3058, %v3037
  %v3067 = vmul.f32 %v3059, %v3039
  %v3068 = vmul.f32 %v3060, %v3041
  %v3069 = vmul.f32 %v3061, %v3043
  %v3070 = vmul.f32 %v3062, %v3045
  %v3071 = vmul.f32 %v3063, %v3047
  %v3072 = vadd.f32 %v3064, 1.4214138
  %v3073 = vadd.f32 %v3065, 1.4214138
  %v3074 = vadd.f32 %v3066, 1.4214138
  %v3075 = vadd.f32 %v3067, 1.4214138
  %v3076 = vadd.f32 %v3068, 1.4214138
  %v3077 = vadd.f32 %v3069, 1.4214138
  %v3078 = vadd.f32 %v3070, 1.4214138
  %v3079 = vadd.f32 %v3071, 1.4214138
  %v3080 = vmul.f32 %v3072, %v3033
  %v3081 = vmul.f32 %v3073, %v3035
  %v3082 = vmul.f32 %v3074, %v3037
  %v3083 = vmul.f32 %v3075, %v3039
  %v3084 = vmul.f32 %v3076, %v3041
  %v3085 = vmul.f32 %v3077, %v3043
  %v3086 = vmul.f32 %v3078, %v3045
  %v3087 = vmul.f32 %v3079, %v3047
  %v3088 = vadd.f32 %v3080, -0.28449672
  %v3089 = vadd.f32 %v3081, -0.28449672
  %v3090 = vadd.f32 %v3082, -0.28449672
  %v3091 = vadd.f32 %v3083, -0.28449672
  %v3092 = vadd.f32 %v3084, -0.28449672
  %v3093 = vadd.f32 %v3085, -0.28449672
  %v3094 = vadd.f32 %v3086, -0.28449672
  %v3095 = vadd.f32 %v3087, -0.28449672
  %v3096 = vmul.f32 %v3088, %v3033
  %v3097 = vmul.f32 %v3089, %v3035
  %v3098 = vmul.f32 %v3090, %v3037
  %v3099 = vmul.f32 %v3091, %v3039
  %v3100 = vmul.f32 %v3092, %v3041
  %v3101 = vmul.f32 %v3093, %v3043
  %v3102 = vmul.f32 %v3094, %v3045
  %v3103 = vmul.f32 %v3095, %v3047
  %v3104 = vadd.f32 %v3096, 0.2548296
  %v3105 = vadd.f32 %v3097, 0.2548296
  %v3106 = vadd.f32 %v3098, 0.2548296
  %v3107 = vadd.f32 %v3099, 0.2548296
  %v3108 = vadd.f32 %v3100, 0.2548296
  %v3109 = vadd.f32 %v3101, 0.2548296
  %v3110 = vadd.f32 %v3102, 0.2548296
  %v3111 = vadd.f32 %v3103, 0.2548296
  %v3112 = vmul.f32 %v3104, %v3033
  %v3113 = vmul.f32 %v3105, %v3035
  %v3114 = vmul.f32 %v3106, %v3037
  %v3115 = vmul.f32 %v3107, %v3039
  %v3116 = vmul.f32 %v3108, %v3041
  %v3117 = vmul.f32 %v3109, %v3043
  %v3118 = vmul.f32 %v3110, %v3045
  %v3119 = vmul.f32 %v3111, %v3047
  %v3120 = vsub.f32 0.0, %v3008
  %v3121 = vsub.f32 0.0, %v3009
  %v3122 = vsub.f32 0.0, %v3010
  %v3123 = vsub.f32 0.0, %v3011
  %v3124 = vsub.f32 0.0, %v3012
  %v3125 = vsub.f32 0.0, %v3013
  %v3126 = vsub.f32 0.0, %v3014
  %v3127 = vsub.f32 0.0, %v3015
  %v3128 = vmul.f32 %v3120, %v3008
  %v3129 = vmul.f32 %v3121, %v3009
  %v3130 = vmul.f32 %v3122, %v3010
  %v3131 = vmul.f32 %v3123, %v3011
  %v3132 = vmul.f32 %v3124, %v3012
  %v3133 = vmul.f32 %v3125, %v3013
  %v3134 = vmul.f32 %v3126, %v3014
  %v3135 = vmul.f32 %v3127, %v3015
  %v3136 = vmul.f32 %v3128, 1.442695
  %v3137 = vpow.pop %v3136
  %v3138 = vmul.f32 %v3129, 1.442695
  %v3139 = vpow.pop %v3138
  %v3140 = vmul.f32 %v3130, 1.442695
  %v3141 = vpow.pop %v3140
  %v3142 = vmul.f32 %v3131, 1.442695
  %v3143 = vpow.pop %v3142
  %v3144 = vmul.f32 %v3132, 1.442695
  %v3145 = vpow.pop %v3144
  %v3146 = vmul.f32 %v3133, 1.442695
  %v3147 = vpow.pop %v3146
  %v3148 = vmul.f32 %v3134, 1.442695
  %v3149 = vpow.pop %v3148
  %v3150 = vmul.f32 %v3135, 1.442695
  %v3151 = vpow.pop %v3150
  %v3152 = vmul.f32 %v3112, %v3137
  %v3153 = vmul.f32 %v3113, %v3139
  %v3154 = vmul.f32 %v3114, %v3141
  %v3155 = vmul.f32 %v3115, %v3143
  %v3156 = vmul.f32 %v3116, %v3145
  %v3157 = vmul.f32 %v3117, %v3147
  %v3158 = vmul.f32 %v3118, %v3149
  %v3159 = vmul.f32 %v3119, %v3151
  %v3160 = vsub.f32 1.0, %v3152
  %v3161 = vsub.f32 1.0, %v3153
  %v3162 = vsub.f32 1.0, %v3154
  %v3163 = vsub.f32 1.0, %v3155
  %v3164 = vsub.f32 1.0, %v3156
  %v3165 = vsub.f32 1.0, %v3157
  %v3166 = vsub.f32 1.0, %v3158
  %v3167 = vsub.f32 1.0, %v3159
  %vm3168 = vcmp.lt.f32.partialorder %v3000, 0.0
  %vm3169 = vcmp.lt.f32.partialorder %v3001, 0.0
  %vm3170 = vcmp.lt.f32.partialorder %v3002, 0.0
  %vm3171 = vcmp.lt.f32.partialorder %v3003, 0.0
  %vm3172 = vcmp.lt.f32.partialorder %v3004, 0.0
  %vm3173 = vcmp.lt.f32.partialorder %v3005, 0.0
  %vm3174 = vcmp.lt.f32.partialorder %v3006, 0.0
  %vm3175 = vcmp.lt.f32.partialorder %v3007, 0.0
  %v3176 = vsub.f32 0.0, %v3160
  %v3177 = vsub.f32 0.0, %v3161
  %v3178 = vsub.f32 0.0, %v3162
  %v3179 = vsub.f32 0.0, %v3163
  %v3180 = vsub.f32 0.0, %v3164
  %v3181 = vsub.f32 0.0, %v3165
  %v3182 = vsub.f32 0.0, %v3166
  %v3183 = vsub.f32 0.0, %v3167
  %v3184 = vsel %vm3168, %v3176, %v3160
  %v3185 = vsel %vm3169, %v3177, %v3161
  %v3186 = vsel %vm3170, %v3178, %v3162
  %v3187 = vsel %vm3171, %v3179, %v3163
  %v3188 = vsel %vm3172, %v3180, %v3164
  %v3189 = vsel %vm3173, %v3181, %v3165
  %v3190 = vsel %vm3174, %v3182, %v3166
  %v3191 = vsel %vm3175, %v3183, %v3167
  %v3192 = vadd.f32 %v3184, 1.0
  %v3193 = vadd.f32 %v3185, 1.0
  %v3194 = vadd.f32 %v3186, 1.0
  %v3195 = vadd.f32 %v3187, 1.0
  %v3196 = vadd.f32 %v3188, 1.0
  %v3197 = vadd.f32 %v3189, 1.0
  %v3198 = vadd.f32 %v3190, 1.0
  %v3199 = vadd.f32 %v3191, 1.0
  %v3200 = vmul.f32 %v2992, %v3192
  %v3201 = vmul.f32 %v2993, %v3193
  %v3202 = vmul.f32 %v2994, %v3194
  %v3203 = vmul.f32 %v2995, %v3195
  %v3204 = vmul.f32 %v2996, %v3196
  %v3205 = vmul.f32 %v2997, %v3197
  %v3206 = vmul.f32 %v2998, %v3198
  %v3207 = vmul.f32 %v2999, %v3199
  %v3208 = vpack.c.bf16 %v3201, %v3200
  %v3209 = vpack.c.bf16 %v3203, %v3202
  %v3210 = vpack.c.bf16 %v3205, %v3204
  %v3211 = vpack.c.bf16 %v3207, %v3206
  %v3212 = vlaneseq
  %v3213 = vshrl.u32 %v3212, 7
  %v3214 = vsub.s32 0, %v3213
  %v3215 = vrot.slane %v1816, %v3214
  %v3224 = vunpack.c.l.b16 %v1801
  %v3225 = vunpack.c.l.b16 %v1802
  %v3226 = vunpack.c.l.b16 %v1803
  %v3227 = vunpack.c.l.b16 %v1804
  %v3228 = vunpack.c.l.b16 %v1805
  %v3229 = vunpack.c.l.b16 %v1806
  %v3230 = vunpack.c.l.b16 %v1807
  %v3231 = vunpack.c.l.b16 %v1808
  %v3232 = vpack.c.b16 %v3225, %v3224
  %v3233 = vpack.c.b16 %v3227, %v3226
  %v3234 = vpack.c.b16 %v3229, %v3228
  %v3235 = vpack.c.b16 %v3231, %v3230
  %v3241 = vsel %vm1567, %v3208, 0
  %v3244 = vsel %vm1567, %v3209, 0
  %v3247 = vsel %vm1567, %v3210, 0
  %v3250 = vsel %vm1567, %v3211, 0
  %3252 = vmatprep.subr.bf16.mxu0 0
  %3253 = vmatpush1.bf16.msra.mxu0 %v3232
  %3254 = vmatprep.subr.bf16.mxu0 0
  %3255 = vmatpush1.bf16.msra.mxu0 %v3233
  %3256 = vmatprep.subr.bf16.mxu0 0
  %3257 = vmatpush1.bf16.msra.mxu0 %v3234
  %3258 = vmatprep.subr.bf16.mxu0 0
  %3259 = vmatpush1.bf16.msra.mxu0 %v3235
  %3260 = vmatprep.subr.bf16.mxu0 0
  %3261 = vmatpush1.bf16.msra.mxu0 0
  %3262 = vmatprep.subr.bf16.mxu0 0
  %3263 = vmatpush1.bf16.msra.mxu0 0
  %3264 = vmatprep.subr.bf16.mxu0 0
  %3265 = vmatpush1.bf16.msra.mxu0 0
  %3266 = vmatprep.subr.bf16.mxu0 0
  %3267 = vmatpush1.bf16.msra.mxu0 0
  %3268 = vmatprep.subr.bf16.mxu0 0
  %3269 = vmatpush1.bf16.msra.mxu0 0
  %3270 = vmatprep.subr.bf16.mxu0 0
  %3271 = vmatpush1.bf16.msra.mxu0 0
  %3272 = vmatprep.subr.bf16.mxu0 0
  %3273 = vmatpush1.bf16.msra.mxu0 0
  %3274 = vmatprep.subr.bf16.mxu0 0
  %3275 = vmatpush1.bf16.msra.mxu0 0
  %3276 = vmatprep.subr.bf16.mxu0 0
  %3277 = vmatpush1.bf16.msra.mxu0 0
  %3278 = vmatprep.subr.bf16.mxu0 0
  %3279 = vmatpush1.bf16.msra.mxu0 0
  %3280 = vmatprep.subr.bf16.mxu0 0
  %3281 = vmatpush1.bf16.msra.mxu0 0
  %3282 = vmatprep.subr.bf16.mxu0 0
  %3283 = vmatpush1.bf16.msra.mxu0 0
  %3284 = vmatprep.mubr.bf16.mxu0 0
  %3285 = vmatmul.mubr.bf16.gmra.mrb[0].mxu0 %v3241
  %v3286 = vpop.f32.mrb[0].mxu0
  %v3287 = vadd.f32 %v3215, %v3286
  %v3288 = vpop.f32.mrb[0].mxu0
  %v3289 = vpop.f32.mrb[0].mxu0
  %v3290 = vadd.f32 %v3215, %v3289
  %v3291 = vpop.f32.mrb[0].mxu0
  %3292 = vmatprep.mubr.bf16.mxu0 0
  %3293 = vmatmul.mubr.bf16.gmra.mrb[0].mxu0 %v3244
  %v3294 = vpop.f32.mrb[0].mxu0
  %v3295 = vadd.f32 %v3215, %v3294
  %v3296 = vpop.f32.mrb[0].mxu0
  %v3297 = vpop.f32.mrb[0].mxu0
  %v3298 = vadd.f32 %v3215, %v3297
  %v3299 = vpop.f32.mrb[0].mxu0
  %3300 = vmatprep.mubr.bf16.mxu0 0
  %3301 = vmatmul.mubr.bf16.gmra.mrb[0].mxu0 %v3247
  %v3302 = vpop.f32.mrb[0].mxu0
  %v3303 = vadd.f32 %v3215, %v3302
  %v3304 = vpop.f32.mrb[0].mxu0
  %v3305 = vpop.f32.mrb[0].mxu0
  %v3306 = vadd.f32 %v3215, %v3305
  %v3307 = vpop.f32.mrb[0].mxu0
  %3308 = vmatprep.mubr.bf16.mxu0 0
  %3309 = vmatmul.mubr.bf16.gmra.mrb[0].mxu0 %v3250
  %v3310 = vpop.f32.mrb[0].mxu0
  %v3311 = vadd.f32 %v3215, %v3310
  %v3312 = vpop.f32.mrb[0].mxu0
  %v3313 = vpop.f32.mrb[0].mxu0
  %v3314 = vadd.f32 %v3215, %v3313
  %v3315 = vpop.f32.mrb[0].mxu0
  %3316 = vdwg.mxu0
  %v3317 = vadd.f32 %v2887, %v3287
  %v3318 = vadd.f32 %v2888, %v3290
  %v3319 = vadd.f32 %v2889, %v3295
  %v3320 = vadd.f32 %v2890, %v3298
  %v3321 = vadd.f32 %v2891, %v3303
  %v3322 = vadd.f32 %v2892, %v3306
  %v3323 = vadd.f32 %v2893, %v3311
  %v3324 = vadd.f32 %v2894, %v3314
  %v3325 = vsel %vm147, %v3317, 0.0
  %3326 = vadd.xlane.f32.xlu0 %v3325
  %v3327 = vpop.xlane.xlu0 %3326
  %v3328 = vsel %vm147, %v3318, 0.0
  %3329 = vadd.xlane.f32.xlu0 %v3328
  %v3330 = vpop.xlane.xlu0 %3329
  %v3331 = vsel %vm147, %v3319, 0.0
  %3332 = vadd.xlane.f32.xlu0 %v3331
  %v3333 = vpop.xlane.xlu0 %3332
  %v3334 = vsel %vm147, %v3320, 0.0
  %3335 = vadd.xlane.f32.xlu0 %v3334
  %v3336 = vpop.xlane.xlu0 %3335
  %v3337 = vsel %vm147, %v3321, 0.0
  %3338 = vadd.xlane.f32.xlu0 %v3337
  %v3339 = vpop.xlane.xlu0 %3338
  %v3340 = vsel %vm147, %v3322, 0.0
  %3341 = vadd.xlane.f32.xlu0 %v3340
  %v3342 = vpop.xlane.xlu0 %3341
  %v3343 = vsel %vm147, %v3323, 0.0
  %3344 = vadd.xlane.f32.xlu0 %v3343
  %v3345 = vpop.xlane.xlu0 %3344
  %v3346 = vsel %vm147, %v3324, 0.0
  %3347 = vadd.xlane.f32.xlu0 %v3346
  %v3348 = vpop.xlane.xlu0 %3347
  %v3349 = vmul.f32 %v3327, %v1117
  %v3350 = vmul.f32 %v3330, %v1117
  %v3351 = vmul.f32 %v3333, %v1117
  %v3352 = vmul.f32 %v3336, %v1117
  %v3353 = vmul.f32 %v3339, %v1117
  %v3354 = vmul.f32 %v3342, %v1117
  %v3355 = vmul.f32 %v3345, %v1117
  %v3356 = vmul.f32 %v3348, %v1117
  %v3357 = vsub.f32 %v3317, %v3349
  %v3358 = vsub.f32 %v3318, %v3350
  %v3359 = vsub.f32 %v3319, %v3351
  %v3360 = vsub.f32 %v3320, %v3352
  %v3361 = vsub.f32 %v3321, %v3353
  %v3362 = vsub.f32 %v3322, %v3354
  %v3363 = vsub.f32 %v3323, %v3355
  %v3364 = vsub.f32 %v3324, %v3356
  %v3365 = vmul.f32 %v3357, %v3357
  %v3366 = vmul.f32 %v3358, %v3358
  %v3367 = vmul.f32 %v3359, %v3359
  %v3368 = vmul.f32 %v3360, %v3360
  %v3369 = vmul.f32 %v3361, %v3361
  %v3370 = vmul.f32 %v3362, %v3362
  %v3371 = vmul.f32 %v3363, %v3363
  %v3372 = vmul.f32 %v3364, %v3364
  %v3373 = vsel %vm147, %v3365, 0.0
  %3374 = vadd.xlane.f32.xlu0 %v3373
  %v3375 = vpop.xlane.xlu0 %3374
  %v3376 = vsel %vm147, %v3366, 0.0
  %3377 = vadd.xlane.f32.xlu0 %v3376
  %v3378 = vpop.xlane.xlu0 %3377
  %v3379 = vsel %vm147, %v3367, 0.0
  %3380 = vadd.xlane.f32.xlu0 %v3379
  %v3381 = vpop.xlane.xlu0 %3380
  %v3382 = vsel %vm147, %v3368, 0.0
  %3383 = vadd.xlane.f32.xlu0 %v3382
  %v3384 = vpop.xlane.xlu0 %3383
  %v3385 = vsel %vm147, %v3369, 0.0
  %3386 = vadd.xlane.f32.xlu0 %v3385
  %v3387 = vpop.xlane.xlu0 %3386
  %v3388 = vsel %vm147, %v3370, 0.0
  %3389 = vadd.xlane.f32.xlu0 %v3388
  %v3390 = vpop.xlane.xlu0 %3389
  %v3391 = vsel %vm147, %v3371, 0.0
  %3392 = vadd.xlane.f32.xlu0 %v3391
  %v3393 = vpop.xlane.xlu0 %3392
  %v3394 = vsel %vm147, %v3372, 0.0
  %3395 = vadd.xlane.f32.xlu0 %v3394
  %v3396 = vpop.xlane.xlu0 %3395
  %v3397 = vmul.f32 %v3375, %v1117
  %v3398 = vmul.f32 %v3378, %v1117
  %v3399 = vmul.f32 %v3381, %v1117
  %v3400 = vmul.f32 %v3384, %v1117
  %v3401 = vmul.f32 %v3387, %v1117
  %v3402 = vmul.f32 %v3390, %v1117
  %v3403 = vmul.f32 %v3393, %v1117
  %v3404 = vmul.f32 %v3396, %v1117
  %v3405 = vadd.f32 %v3397, 1e-05
  %v3406 = vadd.f32 %v3398, 1e-05
  %v3407 = vadd.f32 %v3399, 1e-05
  %v3408 = vadd.f32 %v3400, 1e-05
  %v3409 = vadd.f32 %v3401, 1e-05
  %v3410 = vadd.f32 %v3402, 1e-05
  %v3411 = vadd.f32 %v3403, 1e-05
  %v3412 = vadd.f32 %v3404, 1e-05
  %v3413 = vrsqrt.pop %v3405
  %v3414 = vrsqrt.pop %v3406
  %v3415 = vrsqrt.pop %v3407
  %v3416 = vrsqrt.pop %v3408
  %v3417 = vrsqrt.pop %v3409
  %v3418 = vrsqrt.pop %v3410
  %v3419 = vrsqrt.pop %v3411
  %v3420 = vrsqrt.pop %v3412
  %v3421 = vmul.f32 %v3357, %v3413
  %v3422 = vmul.f32 %v3358, %v3414
  %v3423 = vmul.f32 %v3359, %v3415
  %v3424 = vmul.f32 %v3360, %v3416
  %v3425 = vmul.f32 %v3361, %v3417
  %v3426 = vmul.f32 %v3362, %v3418
  %v3427 = vmul.f32 %v3363, %v3419
  %v3428 = vmul.f32 %v3364, %v3420
  %v3429 = vlaneseq
  %v3430 = vshrl.u32 %v3429, 7
  %v3431 = vsub.s32 0, %v3430
  %v3432 = vrot.slane %v1817, %v3431
  %v3433 = vmul.f32 %v3421, %v3432
  %v3434 = vmul.f32 %v3422, %v3432
  %v3435 = vmul.f32 %v3423, %v3432
  %v3436 = vmul.f32 %v3424, %v3432
  %v3437 = vmul.f32 %v3425, %v3432
  %v3438 = vmul.f32 %v3426, %v3432
  %v3439 = vmul.f32 %v3427, %v3432
  %v3440 = vmul.f32 %v3428, %v3432
  %v3441 = vlaneseq
  %v3442 = vshrl.u32 %v3441, 7
  %v3443 = vsub.s32 0, %v3442
  %v3444 = vrot.slane %v1818, %v3443
  %v3445 = vadd.f32 %v3433, %v3444
  %v3446 = vadd.f32 %v3434, %v3444
  %v3447 = vadd.f32 %v3435, %v3444
  %v3448 = vadd.f32 %v3436, %v3444
  %v3449 = vadd.f32 %v3437, %v3444
  %v3450 = vadd.f32 %v3438, %v3444
  %v3451 = vadd.f32 %v3439, %v3444
  %v3452 = vadd.f32 %v3440, %v3444
  %v3453 = vld [vmem:[%s2 + $0xf0] sm:$0xf]
  %v3454 = vld [vmem:[%s2 + $0xf4] sm:$0xf]
  %v3455 = vld [vmem:[%s2 + $0xf8] sm:$0xf]
  %v3456 = vld [vmem:[%s2 + $0xfc] sm:$0xf]
  %v3457 = vld [vmem:[%s2 + $0x100] sm:$0xf]
  %v3458 = vld [vmem:[%s2 + $0x104] sm:$0xf]
  %v3459 = vld [vmem:[%s2 + $0x108] sm:$0xf]
  %v3460 = vld [vmem:[%s2 + $0x10c] sm:$0xf]
  %v3461 = vld [vmem:[%s2 + $0x110] sm:$0xf]
  %v3462 = vld [vmem:[%s2 + $0x114] sm:$0xf]
  %v3463 = vld [vmem:[%s2 + $0x118] sm:$0xf]
  %v3464 = vld [vmem:[%s2 + $0x11c] sm:$0xf]
  %v3465 = vld [vmem:[%s3 + $0x14] sm:$0x1]
  %v3466 = vld [vmem:[%s3 + $0x15] sm:$0x1]
  %v3467 = vld [vmem:[%s3 + $0x16] sm:$0x1]
  %v3468 = vld [vmem:[%s3 + $0x17] sm:$0x1]
  %v3469 = vld [vmem:[%s3 + $0x18] sm:$0x1]
  %v3470 = vld [vmem:[%s3 + $0x19] sm:$0x1]
  %v3471 = vsel %vm147, %v3445, 0.0
  %3472 = vadd.xlane.f32.xlu0 %v3471
  %v3473 = vpop.xlane.xlu0 %3472
  %v3474 = vsel %vm147, %v3446, 0.0
  %3475 = vadd.xlane.f32.xlu0 %v3474
  %v3476 = vpop.xlane.xlu0 %3475
  %v3477 = vsel %vm147, %v3447, 0.0
  %3478 = vadd.xlane.f32.xlu0 %v3477
  %v3479 = vpop.xlane.xlu0 %3478
  %v3480 = vsel %vm147, %v3448, 0.0
  %3481 = vadd.xlane.f32.xlu0 %v3480
  %v3482 = vpop.xlane.xlu0 %3481
  %v3483 = vsel %vm147, %v3449, 0.0
  %3484 = vadd.xlane.f32.xlu0 %v3483
  %v3485 = vpop.xlane.xlu0 %3484
  %v3486 = vsel %vm147, %v3450, 0.0
  %3487 = vadd.xlane.f32.xlu0 %v3486
  %v3488 = vpop.xlane.xlu0 %3487
  %v3489 = vsel %vm147, %v3451, 0.0
  %3490 = vadd.xlane.f32.xlu0 %v3489
  %v3491 = vpop.xlane.xlu0 %3490
  %v3492 = vsel %vm147, %v3452, 0.0
  %3493 = vadd.xlane.f32.xlu0 %v3492
  %v3494 = vpop.xlane.xlu0 %3493
  %v3495 = vmul.f32 %v3473, %v1117
  %v3496 = vmul.f32 %v3476, %v1117
  %v3497 = vmul.f32 %v3479, %v1117
  %v3498 = vmul.f32 %v3482, %v1117
  %v3499 = vmul.f32 %v3485, %v1117
  %v3500 = vmul.f32 %v3488, %v1117
  %v3501 = vmul.f32 %v3491, %v1117
  %v3502 = vmul.f32 %v3494, %v1117
  %v3503 = vsub.f32 %v3445, %v3495
  %v3504 = vsub.f32 %v3446, %v3496
  %v3505 = vsub.f32 %v3447, %v3497
  %v3506 = vsub.f32 %v3448, %v3498
  %v3507 = vsub.f32 %v3449, %v3499
  %v3508 = vsub.f32 %v3450, %v3500
  %v3509 = vsub.f32 %v3451, %v3501
  %v3510 = vsub.f32 %v3452, %v3502
  %v3511 = vmul.f32 %v3503, %v3503
  %v3512 = vmul.f32 %v3504, %v3504
  %v3513 = vmul.f32 %v3505, %v3505
  %v3514 = vmul.f32 %v3506, %v3506
  %v3515 = vmul.f32 %v3507, %v3507
  %v3516 = vmul.f32 %v3508, %v3508
  %v3517 = vmul.f32 %v3509, %v3509
  %v3518 = vmul.f32 %v3510, %v3510
  %v3519 = vsel %vm147, %v3511, 0.0
  %3520 = vadd.xlane.f32.xlu0 %v3519
  %v3521 = vpop.xlane.xlu0 %3520
  %v3522 = vsel %vm147, %v3512, 0.0
  %3523 = vadd.xlane.f32.xlu0 %v3522
  %v3524 = vpop.xlane.xlu0 %3523
  %v3525 = vsel %vm147, %v3513, 0.0
  %3526 = vadd.xlane.f32.xlu0 %v3525
  %v3527 = vpop.xlane.xlu0 %3526
  %v3528 = vsel %vm147, %v3514, 0.0
  %3529 = vadd.xlane.f32.xlu0 %v3528
  %v3530 = vpop.xlane.xlu0 %3529
  %v3531 = vsel %vm147, %v3515, 0.0
  %3532 = vadd.xlane.f32.xlu0 %v3531
  %v3533 = vpop.xlane.xlu0 %3532
  %v3534 = vsel %vm147, %v3516, 0.0
  %3535 = vadd.xlane.f32.xlu0 %v3534
  %v3536 = vpop.xlane.xlu0 %3535
  %v3537 = vsel %vm147, %v3517, 0.0
  %3538 = vadd.xlane.f32.xlu0 %v3537
  %v3539 = vpop.xlane.xlu0 %3538
  %v3540 = vsel %vm147, %v3518, 0.0
  %3541 = vadd.xlane.f32.xlu0 %v3540
  %v3542 = vpop.xlane.xlu0 %3541
  %v3543 = vmul.f32 %v3521, %v1117
  %v3544 = vmul.f32 %v3524, %v1117
  %v3545 = vmul.f32 %v3527, %v1117
  %v3546 = vmul.f32 %v3530, %v1117
  %v3547 = vmul.f32 %v3533, %v1117
  %v3548 = vmul.f32 %v3536, %v1117
  %v3549 = vmul.f32 %v3539, %v1117
  %v3550 = vmul.f32 %v3542, %v1117
  %v3551 = vadd.f32 %v3543, 1e-05
  %v3552 = vadd.f32 %v3544, 1e-05
  %v3553 = vadd.f32 %v3545, 1e-05
  %v3554 = vadd.f32 %v3546, 1e-05
  %v3555 = vadd.f32 %v3547, 1e-05
  %v3556 = vadd.f32 %v3548, 1e-05
  %v3557 = vadd.f32 %v3549, 1e-05
  %v3558 = vadd.f32 %v3550, 1e-05
  %v3559 = vrsqrt.pop %v3551
  %v3560 = vrsqrt.pop %v3552
  %v3561 = vrsqrt.pop %v3553
  %v3562 = vrsqrt.pop %v3554
  %v3563 = vrsqrt.pop %v3555
  %v3564 = vrsqrt.pop %v3556
  %v3565 = vrsqrt.pop %v3557
  %v3566 = vrsqrt.pop %v3558
  %v3567 = vmul.f32 %v3503, %v3559
  %v3568 = vmul.f32 %v3504, %v3560
  %v3569 = vmul.f32 %v3505, %v3561
  %v3570 = vmul.f32 %v3506, %v3562
  %v3571 = vmul.f32 %v3507, %v3563
  %v3572 = vmul.f32 %v3508, %v3564
  %v3573 = vmul.f32 %v3509, %v3565
  %v3574 = vmul.f32 %v3510, %v3566
  %v3575 = vlaneseq
  %v3576 = vshrl.u32 %v3575, 7
  %v3577 = vsub.s32 0, %v3576
  %v3578 = vrot.slane %v3465, %v3577
  %v3579 = vmul.f32 %v3567, %v3578
  %v3580 = vmul.f32 %v3568, %v3578
  %v3581 = vmul.f32 %v3569, %v3578
  %v3582 = vmul.f32 %v3570, %v3578
  %v3583 = vmul.f32 %v3571, %v3578
  %v3584 = vmul.f32 %v3572, %v3578
  %v3585 = vmul.f32 %v3573, %v3578
  %v3586 = vmul.f32 %v3574, %v3578
  %v3587 = vlaneseq
  %v3588 = vshrl.u32 %v3587, 7
  %v3589 = vsub.s32 0, %v3588
  %v3590 = vrot.slane %v3466, %v3589
  %v3591 = vadd.f32 %v3579, %v3590
  %v3592 = vadd.f32 %v3580, %v3590
  %v3593 = vadd.f32 %v3581, %v3590
  %v3594 = vadd.f32 %v3582, %v3590
  %v3595 = vadd.f32 %v3583, %v3590
  %v3596 = vadd.f32 %v3584, %v3590
  %v3597 = vadd.f32 %v3585, %v3590
  %v3598 = vadd.f32 %v3586, %v3590
  %v3599 = vpack.c.bf16 %v3592, %v3591
  %v3600 = vpack.c.bf16 %v3594, %v3593
  %v3601 = vpack.c.bf16 %v3596, %v3595
  %v3602 = vpack.c.bf16 %v3598, %v3597
  %v3603 = vlaneseq
  %v3604 = vshrl.u32 %v3603, 7
  %v3605 = vsub.s32 0, %v3604
  %v3606 = vrot.slane %v3467, %v3605
  %v3611 = vunpack.c.l.b16 %v3453
  %v3612 = vunpack.c.l.b16 %v3454
  %v3613 = vunpack.c.l.b16 %v3455
  %v3614 = vunpack.c.l.b16 %v3456
  %v3615 = vpack.c.b16 %v3612, %v3611
  %v3616 = vpack.c.b16 %v3614, %v3613
  %v3620 = vsel %vm147, %v3599, 0
  %v3623 = vsel %vm147, %v3600, 0
  %v3626 = vsel %vm147, %v3601, 0
  %v3629 = vsel %vm147, %v3602, 0
  %3631 = vmatprep.subr.bf16.mxu0 0
  %3632 = vmatpush1.bf16.msra.mxu0 %v3615
  %3633 = vmatprep.subr.bf16.mxu0 0
  %3634 = vmatpush1.bf16.msra.mxu0 %v3616
  %3635 = vmatprep.subr.bf16.mxu0 0
  %3636 = vmatpush1.bf16.msra.mxu0 0
  %3637 = vmatprep.subr.bf16.mxu0 0
  %3638 = vmatpush1.bf16.msra.mxu0 0
  %3639 = vmatprep.subr.bf16.mxu0 0
  %3640 = vmatpush1.bf16.msra.mxu0 0
  %3641 = vmatprep.subr.bf16.mxu0 0
  %3642 = vmatpush1.bf16.msra.mxu0 0
  %3643 = vmatprep.subr.bf16.mxu0 0
  %3644 = vmatpush1.bf16.msra.mxu0 0
  %3645 = vmatprep.subr.bf16.mxu0 0
  %3646 = vmatpush1.bf16.msra.mxu0 0
  %3647 = vmatprep.subr.bf16.mxu0 0
  %3648 = vmatpush1.bf16.msra.mxu0 0
  %3649 = vmatprep.subr.bf16.mxu0 0
  %3650 = vmatpush1.bf16.msra.mxu0 0
  %3651 = vmatprep.subr.bf16.mxu0 0
  %3652 = vmatpush1.bf16.msra.mxu0 0
  %3653 = vmatprep.subr.bf16.mxu0 0
  %3654 = vmatpush1.bf16.msra.mxu0 0
  %3655 = vmatprep.subr.bf16.mxu0 0
  %3656 = vmatpush1.bf16.msra.mxu0 0
  %3657 = vmatprep.subr.bf16.mxu0 0
  %3658 = vmatpush1.bf16.msra.mxu0 0
  %3659 = vmatprep.subr.bf16.mxu0 0
  %3660 = vmatpush1.bf16.msra.mxu0 0
  %3661 = vmatprep.subr.bf16.mxu0 0
  %3662 = vmatpush1.bf16.msra.mxu0 0
  %3663 = vmatprep.mubr.bf16.mxu0 0
  %3664 = vmatmul.mubr.bf16.gmra.mrb[0].mxu0 %v3620
  %v3665 = vpop.f32.mrb[0].mxu0
  %v3666 = vadd.f32 %v3606, %v3665
  %v3667 = vpop.f32.mrb[0].mxu0
  %v3668 = vpop.f32.mrb[0].mxu0
  %v3669 = vadd.f32 %v3606, %v3668
  %v3670 = vpop.f32.mrb[0].mxu0
  %3671 = vmatprep.mubr.bf16.mxu0 0
  %3672 = vmatmul.mubr.bf16.gmra.mrb[0].mxu0 %v3623
  %v3673 = vpop.f32.mrb[0].mxu0
  %v3674 = vadd.f32 %v3606, %v3673
  %v3675 = vpop.f32.mrb[0].mxu0
  %v3676 = vpop.f32.mrb[0].mxu0
  %v3677 = vadd.f32 %v3606, %v3676
  %v3678 = vpop.f32.mrb[0].mxu0
  %3679 = vmatprep.mubr.bf16.mxu0 0
  %3680 = vmatmul.mubr.bf16.gmra.mrb[0].mxu0 %v3626
  %v3681 = vpop.f32.mrb[0].mxu0
  %v3682 = vadd.f32 %v3606, %v3681
  %v3683 = vpop.f32.mrb[0].mxu0
  %v3684 = vpop.f32.mrb[0].mxu0
  %v3685 = vadd.f32 %v3606, %v3684
  %v3686 = vpop.f32.mrb[0].mxu0
  %3687 = vmatprep.mubr.bf16.mxu0 0
  %3688 = vmatmul.mubr.bf16.gmra.mrb[0].mxu0 %v3629
  %v3689 = vpop.f32.mrb[0].mxu0
  %v3690 = vadd.f32 %v3606, %v3689
  %v3691 = vpop.f32.mrb[0].mxu0
  %v3692 = vpop.f32.mrb[0].mxu0
  %v3693 = vadd.f32 %v3606, %v3692
  %v3694 = vpop.f32.mrb[0].mxu0
  %3695 = vdwg.mxu0
  %v3696 = vmax.f32 %v3666, 0.0
  %v3697 = vmax.f32 %v3669, 0.0
  %v3698 = vmax.f32 %v3674, 0.0
  %v3699 = vmax.f32 %v3677, 0.0
  %v3700 = vmax.f32 %v3682, 0.0
  %v3701 = vmax.f32 %v3685, 0.0
  %v3702 = vmax.f32 %v3690, 0.0
  %v3703 = vmax.f32 %v3693, 0.0
  %v3704 = vpack.c.bf16 %v3697, %v3696
  %v3705 = vpack.c.bf16 %v3699, %v3698
  %v3706 = vpack.c.bf16 %v3701, %v3700
  %v3707 = vpack.c.bf16 %v3703, %v3702
  %v3708 = vlaneseq
  %v3709 = vshrl.u32 %v3708, 7
  %v3710 = vsub.s32 0, %v3709
  %v3711 = vrot.slane %v3468, %v3710
  %v3720 = vunpack.c.l.b16 %v3457
  %v3721 = vunpack.c.l.b16 %v3458
  %v3722 = vunpack.c.l.b16 %v3459
  %v3723 = vunpack.c.l.b16 %v3460
  %v3724 = vunpack.c.l.b16 %v3461
  %v3725 = vunpack.c.l.b16 %v3462
  %v3726 = vunpack.c.l.b16 %v3463
  %v3727 = vunpack.c.l.b16 %v3464
  %v3728 = vpack.c.b16 %v3721, %v3720
  %v3729 = vpack.c.b16 %v3723, %v3722
  %v3730 = vpack.c.b16 %v3725, %v3724
  %v3731 = vpack.c.b16 %v3727, %v3726
  %v3737 = vsel %vm1567, %v3704, 0
  %v3740 = vsel %vm1567, %v3705, 0
  %v3743 = vsel %vm1567, %v3706, 0
  %v3746 = vsel %vm1567, %v3707, 0
  %3748 = vmatprep.subr.bf16.mxu0 0
  %3749 = vmatpush1.bf16.msra.mxu0 %v3728
  %3750 = vmatprep.subr.bf16.mxu0 0
  %3751 = vmatpush1.bf16.msra.mxu0 %v3729
  %3752 = vmatprep.subr.bf16.mxu0 0
  %3753 = vmatpush1.bf16.msra.mxu0 %v3730
  %3754 = vmatprep.subr.bf16.mxu0 0
  %3755 = vmatpush1.bf16.msra.mxu0 %v3731
  %3756 = vmatprep.subr.bf16.mxu0 0
  %3757 = vmatpush1.bf16.msra.mxu0 0
  %3758 = vmatprep.subr.bf16.mxu0 0
  %3759 = vmatpush1.bf16.msra.mxu0 0
  %3760 = vmatprep.subr.bf16.mxu0 0
  %3761 = vmatpush1.bf16.msra.mxu0 0
  %3762 = vmatprep.subr.bf16.mxu0 0
  %3763 = vmatpush1.bf16.msra.mxu0 0
  %3764 = vmatprep.subr.bf16.mxu0 0
  %3765 = vmatpush1.bf16.msra.mxu0 0
  %3766 = vmatprep.subr.bf16.mxu0 0
  %3767 = vmatpush1.bf16.msra.mxu0 0
  %3768 = vmatprep.subr.bf16.mxu0 0
  %3769 = vmatpush1.bf16.msra.mxu0 0
  %3770 = vmatprep.subr.bf16.mxu0 0
  %3771 = vmatpush1.bf16.msra.mxu0 0
  %3772 = vmatprep.subr.bf16.mxu0 0
  %3773 = vmatpush1.bf16.msra.mxu0 0
  %3774 = vmatprep.subr.bf16.mxu0 0
  %3775 = vmatpush1.bf16.msra.mxu0 0
  %3776 = vmatprep.subr.bf16.mxu0 0
  %3777 = vmatpush1.bf16.msra.mxu0 0
  %3778 = vmatprep.subr.bf16.mxu0 0
  %3779 = vmatpush1.bf16.msra.mxu0 0
  %3780 = vmatprep.mubr.bf16.mxu0 0
  %3781 = vmatmul.mubr.bf16.gmra.mrb[0].mxu0 %v3737
  %v3782 = vpop.f32.mrb[0].mxu0
  %v3783 = vadd.f32 %v3711, %v3782
  %v3784 = vpop.f32.mrb[0].mxu0
  %v3785 = vpop.f32.mrb[0].mxu0
  %v3786 = vadd.f32 %v3711, %v3785
  %v3787 = vpop.f32.mrb[0].mxu0
  %3788 = vmatprep.mubr.bf16.mxu0 0
  %3789 = vmatmul.mubr.bf16.gmra.mrb[0].mxu0 %v3740
  %v3790 = vpop.f32.mrb[0].mxu0
  %v3791 = vadd.f32 %v3711, %v3790
  %v3792 = vpop.f32.mrb[0].mxu0
  %v3793 = vpop.f32.mrb[0].mxu0
  %v3794 = vadd.f32 %v3711, %v3793
  %v3795 = vpop.f32.mrb[0].mxu0
  %3796 = vmatprep.mubr.bf16.mxu0 0
  %3797 = vmatmul.mubr.bf16.gmra.mrb[0].mxu0 %v3743
  %v3798 = vpop.f32.mrb[0].mxu0
  %v3799 = vadd.f32 %v3711, %v3798
  %v3800 = vpop.f32.mrb[0].mxu0
  %v3801 = vpop.f32.mrb[0].mxu0
  %v3802 = vadd.f32 %v3711, %v3801
  %v3803 = vpop.f32.mrb[0].mxu0
  %3804 = vmatprep.mubr.bf16.mxu0 0
  %3805 = vmatmul.mubr.bf16.gmra.mrb[0].mxu0 %v3746
  %v3806 = vpop.f32.mrb[0].mxu0
  %v3807 = vadd.f32 %v3711, %v3806
  %v3808 = vpop.f32.mrb[0].mxu0
  %v3809 = vpop.f32.mrb[0].mxu0
  %v3810 = vadd.f32 %v3711, %v3809
  %v3811 = vpop.f32.mrb[0].mxu0
  %3812 = vdwg.mxu0
  %v3813 = vmax.f32 %v3783, 0.0
  %v3814 = vmax.f32 %v3786, 0.0
  %v3815 = vmax.f32 %v3791, 0.0
  %v3816 = vmax.f32 %v3794, 0.0
  %v3817 = vmax.f32 %v3799, 0.0
  %v3818 = vmax.f32 %v3802, 0.0
  %v3819 = vmax.f32 %v3807, 0.0
  %v3820 = vmax.f32 %v3810, 0.0
  %v3821 = vlaneseq
  %v3822 = vshrl.u32 %v3821, 7
  %v3823 = vsub.s32 0, %v3822
  %v3824 = vrot.slane %v3469, %v3823
  %v3825 = vmul.f32 %v3813, %v3824
  %v3826 = vmul.f32 %v3814, %v3824
  %v3827 = vmul.f32 %v3815, %v3824
  %v3828 = vmul.f32 %v3816, %v3824
  %v3829 = vmul.f32 %v3817, %v3824
  %v3830 = vmul.f32 %v3818, %v3824
  %v3831 = vmul.f32 %v3819, %v3824
  %v3832 = vmul.f32 %v3820, %v3824
  %v3833 = vsel %vm147, %v3825, 0.0
  %3834 = vadd.xlane.f32.xlu0 %v3833
  %v3835 = vpop.xlane.xlu0 %3834
  %v3836 = vsel %vm147, %v3826, 0.0
  %3837 = vadd.xlane.f32.xlu0 %v3836
  %v3838 = vpop.xlane.xlu0 %3837
  %v3839 = vsel %vm147, %v3827, 0.0
  %3840 = vadd.xlane.f32.xlu0 %v3839
  %v3841 = vpop.xlane.xlu0 %3840
  %v3842 = vsel %vm147, %v3828, 0.0
  %3843 = vadd.xlane.f32.xlu0 %v3842
  %v3844 = vpop.xlane.xlu0 %3843
  %v3845 = vsel %vm147, %v3829, 0.0
  %3846 = vadd.xlane.f32.xlu0 %v3845
  %v3847 = vpop.xlane.xlu0 %3846
  %v3848 = vsel %vm147, %v3830, 0.0
  %3849 = vadd.xlane.f32.xlu0 %v3848
  %v3850 = vpop.xlane.xlu0 %3849
  %v3851 = vsel %vm147, %v3831, 0.0
  %3852 = vadd.xlane.f32.xlu0 %v3851
  %v3853 = vpop.xlane.xlu0 %3852
  %v3854 = vsel %vm147, %v3832, 0.0
  %3855 = vadd.xlane.f32.xlu0 %v3854
  %v3856 = vpop.xlane.xlu0 %3855
  %s3858 = vtos %v3470
  %v3859 = vstv %s3858
  %v3861 = vadd.f32 %v3835, %v3859
  %v3862 = vadd.f32 %v3838, %v3859
  %v3863 = vadd.f32 %v3841, %v3859
  %v3864 = vadd.f32 %v3844, %v3859
  %v3865 = vadd.f32 %v3847, %v3859
  %v3866 = vadd.f32 %v3850, %v3859
  %v3867 = vadd.f32 %v3853, %v3859
  %v3868 = vadd.f32 %v3856, %v3859
  %v3877 = vlaneseq
  %v3878 = vand.u32 %v3877, 127
  %v3879 = vlaneseq
  %v3880 = vshrl.u32 %v3879, 7
  %v3881 = vsub.s32 %v3878, %v3880
  %v3882 = vrot.slane %v3861, %v3881
  %v3883 = vadd.s32 %v3878, 4294967288
  %v3884 = vlaneseq
  %v3885 = vshrl.u32 %v3884, 7
  %v3886 = vsub.s32 %v3883, %v3885
  %v3887 = vrot.slane %v3862, %v3886
  %vm3888 = vcmask 130112
  %v3889 = vsel %vm3888, %v3887, %v3882
  %v3890 = vadd.s32 %v3878, 4294967280
  %v3891 = vlaneseq
  %v3892 = vshrl.u32 %v3891, 7
  %v3893 = vsub.s32 %v3890, %v3892
  %v3894 = vrot.slane %v3863, %v3893
  %vm3895 = vcmask 195712
  %v3896 = vsel %vm3895, %v3894, %v3889
  %v3897 = vadd.s32 %v3878, 4294967272
  %v3898 = vlaneseq
  %v3899 = vshrl.u32 %v3898, 7
  %v3900 = vsub.s32 %v3897, %v3899
  %v3901 = vrot.slane %v3864, %v3900
  %vm3902 = vcmask 261312
  %v3903 = vsel %vm3902, %v3901, %v3896
  %v3904 = vlaneseq
  %v3905 = vshrl.u32 %v3904, 7
  %v3906 = vsub.s32 %v3878, %v3905
  %v3907 = vrot.slane %v3865, %v3906
  %v3908 = vlaneseq
  %v3909 = vshrl.u32 %v3908, 7
  %v3910 = vsub.s32 %v3883, %v3909
  %v3911 = vrot.slane %v3866, %v3910
  %v3912 = vsel %vm3888, %v3911, %v3907
  %v3913 = vlaneseq
  %v3914 = vshrl.u32 %v3913, 7
  %v3915 = vsub.s32 %v3890, %v3914
  %v3916 = vrot.slane %v3867, %v3915
  %v3917 = vsel %vm3895, %v3916, %v3912
  %v3918 = vlaneseq
  %v3919 = vshrl.u32 %v3918, 7
  %v3920 = vsub.s32 %v3897, %v3919
  %v3921 = vrot.slane %v3868, %v3920
  %v3922 = vsel %vm3902, %v3921, %v3917
  %vm3923 = vcmask 1041409
  %v3924 = vsel %vm3923, %v3922, %v3903
  %vm3926 = vcmask 254976
  %3927 = vst.msk [vmem:[%s4] sm:$0x3] %vm3926, %v3924
  // Predicated region
  $region18: #{transformer_forward.1} parent=0 // pred_check
    _
  $region19: #{transformer_forward.1} parent=0 // pred_check_branch
    %3929 = sbr.rel (0) target = $region21
  $region20: #{transformer_forward.1} parent=0 // pred_region
    _
  $region21: #{transformer_forward.1} parent=0 // pred_fallthru
    _
  // Predicated region
  $region22: #{transformer_forward.1} parent=0 // pred_check
    _
  $region23: #{transformer_forward.1} parent=0 // pred_check_branch
    %3931 = sbr.rel (0) target = $region25
  $region24: #{transformer_forward.1} parent=0 // pred_region
    _
  $region25: #{transformer_forward.1} parent=0 // pred_fallthru
    _

</llo_original>
